<compile_context>
chip_gen: v7x
topology: tpu7x:2x2x1
jax: 0.10.0
libtpu: 0.0.40
codegen_flags: <defaults>
</compile_context>

<pallas_src>
import functools

import jax
import jax.numpy as jnp
from jax.experimental import pallas as pl
from jax.experimental.pallas import tpu as pltpu


def _conditioning_kernel(z_ref, wphi_ref, bphi_ref, wmlp_t_ref, bmlp_ref,
                         o_ref, *, k, inv_s):
    # z_ref     : (bt, C, S) VMEM      wphi_ref  : (1, 1, C) VMEM
    # bphi_ref  : (1,)       SMEM      wmlp_t_ref: (C, C)    VMEM (in x out)
    # bmlp_ref  : (1, C)     VMEM      o_ref     : (1, bt, C) VMEM
    bt, C, S = z_ref.shape
    z = z_ref[...]                                             # read z once

    # ---- phi 1x1 conv: per-row scores = w(1,C) @ z(C,S), batched over bt ----
    w_b = jnp.broadcast_to(wphi_ref[...], (bt, 1, C))
    scores = jnp.einsum("boc,bcs->bos", w_b, z,
                        preferred_element_type=jnp.float32) + bphi_ref[0]

    # ---- exact k-th largest per row: 32-step bitwise binary search ----------
    # Map f32 -> order-preserving signed int32 key.  (Note: -0.0 and +0.0 get
    # distinct keys and NaNs sort as largest; negligible for real activations.)
    bits = pltpu.bitcast(scores, jnp.int32)                    # (bt, 1, S)
    keys = jnp.where(bits >= 0, bits, bits ^ jnp.int32(0x7FFFFFFF))

    # Greedy bit-build of the largest t with count(keys >= t) >= k.
    # Sign-bit step first (fixes the previous bug where thresholds >= +0.0
    # could never be represented), then bits 30..0.  int32 counts, vectorized
    # over the bt rows -> one (bt,1,S)->(bt,1,1) reduce per step.
    best = jnp.full((bt, 1, 1), -2147483648, dtype=jnp.int32)
    cnt = jnp.sum((keys >= 0).astype(jnp.int32), axis=-1, keepdims=True)
    best = jnp.where(cnt >= k, jnp.zeros_like(best), best)
    for shift in range(30, -1, -1):                            # static unroll
        cand = best + jnp.int32(1 << shift)
        cnt = jnp.sum((keys >= cand).astype(jnp.int32), axis=-1, keepdims=True)
        best = jnp.where(cnt >= k, cand, best)

    # Strict '>' exactly as the reference: x = x > beta_val[..., -1, None]
    mask = keys > best                                         # (bt, 1, S)

    # ---- masked global average pool (no transpose / relayout of z) ----------
    gap = jnp.sum(jnp.where(mask, z, 0.0), axis=-1) * inv_s    # (bt, C)

    # ---- MLP (Linear C->C): (bt,C) @ (C,C) + b, lane-dense store ------------
    o_ref[0] = jnp.dot(gap, wmlp_t_ref[...],
                       preferred_element_type=jnp.float32) + bmlp_ref[...]


def _pick_batch_block(B, C, S, itemsize):
    """Largest divisor of B that (a) keeps >=2 grid steps when B >= 2 (v7x
    megacore) and (b) keeps pipelined z blocks + in-kernel temporaries small
    enough for the default scoped VMEM on v5e/v6e/v7x."""
    per_row = C * S * itemsize
    cap = max(1, (20 << 20) // (4 * per_row))    # ~2x double-buffer + temps
    cap = int(min(cap, 32, B))
    bt = 1
    for cand in range(1, cap + 1):
        if B % cand:
            continue
        if B >= 2 and B // cand < 2:
            continue                             # keep both v7x TCs busy
        bt = cand
    return bt


def conditioning_layer_forward(z_in, w_phi, b_phi, w_mlp, b_mlp,
                               beta_percentage=0.3):
    """Pallas forward of conditioning_layer.

    z_in : (B, C, H, W) f32      w_phi: (1, C, 1, 1), b_phi: (1,)
    w_mlp: (C, C) (out, in),     b_mlp: (C,)
    returns (B, C)
    """
    B, C, H, W = z_in.shape
    S = H * W
    k = int(beta_percentage * W * H)
    if not 1 <= k <= S:
        raise ValueError(f"beta_rank={k} must be in [1, {S}]")

    # Free reshapes only — no HBM-doubling transpose of z.
    # TODO(synk): optionally stream z as bf16 (cast upstream) to halve HBM
    # traffic; keep f32 accumulation in the dots (may flip borderline top-k ties).
    z = z_in.reshape(B, C, S).astype(jnp.float32)
    wphi = w_phi.reshape(1, 1, C).astype(jnp.float32)
    bphi = b_phi.reshape(1).astype(jnp.float32)
    wmlp_t = jnp.transpose(w_mlp).astype(jnp.float32)     # (in, out), tiny
    bmlp = b_mlp.reshape(1, C).astype(jnp.float32)

    bt = _pick_batch_block(B, C, S, z.dtype.itemsize)
    n_blocks = B // bt

    z_block_bytes = bt * C * S * z.dtype.itemsize
    vmem_limit = int(min(max(4 * z_block_bytes + (4 << 20), 16 << 20), 32 << 20))

    # TODO(synk): for very large H*W (S beyond ~16K on v5e / ~30K on v7x with
    # f32), add an S-tiled reduction grid axis + two-pass in-kernel top-k.
    out = pl.pallas_call(
        functools.partial(_conditioning_kernel, k=k, inv_s=1.0 / S),
        out_shape=jax.ShapeDtypeStruct((n_blocks, bt, C), jnp.float32),
        grid=(n_blocks,),
        in_specs=[
            pl.BlockSpec((bt, C, S), lambda b: (b, 0, 0)),       # z (read once)
            pl.BlockSpec((1, 1, C), lambda b: (0, 0, 0)),        # w_phi
            pl.BlockSpec(memory_space=pltpu.MemorySpace.SMEM),   # b_phi scalar
            pl.BlockSpec((C, C), lambda b: (0, 0)),              # w_mlp^T
            pl.BlockSpec((1, C), lambda b: (0, 0)),              # b_mlp
        ],
        out_specs=pl.BlockSpec((1, bt, C), lambda b: (b, 0, 0)),
        compiler_params=pltpu.CompilerParams(
            dimension_semantics=("parallel",),
            vmem_limit_bytes=vmem_limit),
    )(z, wphi, bphi, wmlp_t, bmlp)

    # (n_blocks, bt, C) -> (B, C): contiguous reshape, metadata-only in XLA.
    return out.reshape(B, C)


if __name__ == "__main__":
    # Small TPU-friendly shapes consistent with the module (in_dim=C=128).
    # B=8 so batch blocking (bt=4) and a 2-step parallel grid are exercised.
    B, C, H, W = 8, 128, 16, 16
    beta = 0.3
    key = jax.random.PRNGKey(0)
    k1, k2, k3, k4, k5 = jax.random.split(key, 5)

    # phi_layer = Conv2d(C, 1, 1): kaiming_normal_(fan_out) -> std = sqrt(2/1)
    w_phi = jax.random.normal(k1, (1, C, 1, 1), jnp.float32) * jnp.sqrt(2.0)
    b_phi = jax.random.normal(k2, (1,), jnp.float32) * 0.01
    # mlp_layer = Linear(C, C)
    w_mlp = jax.random.normal(k3, (C, C), jnp.float32) * (1.0 / jnp.sqrt(C))
    b_mlp = jax.random.normal(k4, (C,), jnp.float32) * 0.01
    z_in = jax.random.normal(k5, (B, C, H, W), jnp.float32)

    out = conditioning_layer_forward(z_in, w_phi, b_phi, w_mlp, b_mlp, beta)
    out = jax.block_until_ready(out)

    # Pure-JAX reference of the PyTorch forward (sanity check).
    S = H * W
    kk = int(beta * W * H)
    z_flat = z_in.reshape(B, C, S)
    scores = jnp.einsum("c,bcs->bs", w_phi.reshape(C), z_flat) + b_phi[0]
    thr = jax.lax.top_k(scores, kk)[0][:, -1]
    mask = (scores > thr[:, None]).astype(jnp.float32)
    gap = jnp.einsum("bcs,bs->bc", z_flat, mask) / S
    ref = gap @ w_mlp.T + b_mlp

    assert out.shape == (B, C), out.shape
    assert bool(jnp.all(jnp.isfinite(out)))
    err = float(jnp.max(jnp.abs(out - ref)))
    # Tight tolerance: a single wrong mask element would shift the output by
    # ~4e-3 here, so this catches threshold/sign/count bugs, while f32
    # accumulation-order noise stays well below it.
    assert err < 1e-3, err
    print("KERNEL_OK")
</pallas_src>

<mosaic_0001>
module attributes {stable_mosaic.version = 11 : i64} {
  func.func @_conditioning_kernel(%arg0: i32, %arg1: memref<4x128x256xf32, #tpu.memory_space<vmem>>, %arg2: memref<1x1x128xf32, #tpu.memory_space<vmem>>, %arg3: memref<1xf32, #tpu.memory_space<smem>>, %arg4: memref<128x128xf32, #tpu.memory_space<vmem>>, %arg5: memref<1x128xf32, #tpu.memory_space<vmem>>, %arg6: memref<1x4x128xf32, #tpu.memory_space<vmem>>) attributes {dimension_semantics = [#tpu.dimension_semantics<parallel>], iteration_bounds = array<i64: 2>, scalar_prefetch = 0 : i64, scratch_operands = 0 : i64, tpu.core_type = #tpu.core_type<tc>, window_params = [{transform_indices = @transform_0, window_bounds = array<i64: 4, 128, 256>}, {pipeline_mode = #tpu.pipeline_mode<synchronous>, transform_indices = @transform_1, window_bounds = array<i64: 1, 1, 128>}, {transform_indices = @transform_2, window_bounds = array<i64: 1>}, {pipeline_mode = #tpu.pipeline_mode<synchronous>, transform_indices = @transform_3, window_bounds = array<i64: 128, 128>}, {pipeline_mode = #tpu.pipeline_mode<synchronous>, transform_indices = @transform_4, window_bounds = array<i64: 1, 128>}, {transform_indices = @transform_5, window_bounds = array<i64: 1, 4, 128>}]} {
    %c0 = arith.constant 0 : index
    %c0_0 = arith.constant 0 : index
    %c0_1 = arith.constant 0 : index
    %0 = vector.load %arg1[%c0, %c0_0, %c0_1] : memref<4x128x256xf32, #tpu.memory_space<vmem>>, vector<4x128x256xf32>
    %c0_2 = arith.constant 0 : index
    %c0_3 = arith.constant 0 : index
    %c0_4 = arith.constant 0 : index
    %1 = vector.load %arg2[%c0_2, %c0_3, %c0_4] : memref<1x1x128xf32, #tpu.memory_space<vmem>>, vector<1x1x128xf32>
    %2 = vector.shape_cast %1 : vector<1x1x128xf32> to vector<1x1x128xf32>
    %3 = vector.broadcast %2 : vector<1x1x128xf32> to vector<4x1x128xf32>
    "tpu.trace_start"() <{level = 10 : i32, message = "boc,bcs->bos"}> : () -> ()
    %cst = arith.constant dense<0.000000e+00> : vector<4x1x256xf32>
    %4 = tpu.matmul %3, %0, %cst {dimension_numbers = #tpu.dot_dimension_numbers<[2], [1], [1], [2], [0, 0, 0, 1, 1, 2], [0], [0]>} : vector<4x1x128xf32>, vector<4x128x256xf32>, vector<4x1x256xf32> -> vector<4x1x256xf32>
    "tpu.trace_stop"() : () -> ()
    %c0_5 = arith.constant 0 : index
    %5 = memref.load %arg3[%c0_5] : memref<1xf32, #tpu.memory_space<smem>>
    %6 = vector.broadcast %5 : f32 to vector<4x1x256xf32>
    %7 = arith.addf %4, %6 : vector<4x1x256xf32>
    %8 = tpu.bitcast %7 : vector<4x1x256xf32> -> vector<4x1x256xi32>
    %c0_i32 = arith.constant 0 : i32
    %9 = vector.broadcast %c0_i32 : i32 to vector<4x1x256xi32>
    %10 = arith.cmpi sge, %8, %9 : vector<4x1x256xi32>
    %c2147483647_i32 = arith.constant 2147483647 : i32
    %11 = vector.broadcast %c2147483647_i32 : i32 to vector<4x1x256xi32>
    %12 = arith.xori %8, %11 : vector<4x1x256xi32>
    %13 = arith.select %10, %8, %12 : vector<4x1x256xi1>, vector<4x1x256xi32>
    %c-2147483648_i32 = arith.constant -2147483648 : i32
    %14 = vector.broadcast %c-2147483648_i32 : i32 to vector<4x1x1xi32>
    %c0_i32_6 = arith.constant 0 : i32
    %15 = vector.broadcast %c0_i32_6 : i32 to vector<4x1x256xi32>
    %16 = arith.cmpi sge, %13, %15 : vector<4x1x256xi32>
    %17 = arith.extui %16 : vector<4x1x256xi1> to vector<4x1x256xi32>
    %cst_7 = arith.constant dense<0> : vector<4x1xi32>
    %18 = vector.multi_reduction <add>, %17, %cst_7 [2] : vector<4x1x256xi32> to vector<4x1xi32>
    %19 = vector.shape_cast %18 : vector<4x1xi32> to vector<4x1x1xi32>
    %c76_i32 = arith.constant 76 : i32
    %20 = vector.broadcast %c76_i32 : i32 to vector<4x1x1xi32>
    %21 = arith.cmpi sge, %19, %20 : vector<4x1x1xi32>
    %c0_i32_8 = arith.constant 0 : i32
    %22 = vector.broadcast %c0_i32_8 : i32 to vector<4x1x1xi32>
    %23 = arith.select %21, %22, %14 : vector<4x1x1xi1>, vector<4x1x1xi32>
    %c1073741824_i32 = arith.constant 1073741824 : i32
    %24 = vector.broadcast %c1073741824_i32 : i32 to vector<4x1x1xi32>
    %25 = arith.addi %23, %24 : vector<4x1x1xi32>
    %26 = vector.broadcast %25 : vector<4x1x1xi32> to vector<4x1x256xi32>
    %27 = arith.cmpi sge, %13, %26 : vector<4x1x256xi32>
    %28 = arith.extui %27 : vector<4x1x256xi1> to vector<4x1x256xi32>
    %cst_9 = arith.constant dense<0> : vector<4x1xi32>
    %29 = vector.multi_reduction <add>, %28, %cst_9 [2] : vector<4x1x256xi32> to vector<4x1xi32>
    %30 = vector.shape_cast %29 : vector<4x1xi32> to vector<4x1x1xi32>
    %c76_i32_10 = arith.constant 76 : i32
    %31 = vector.broadcast %c76_i32_10 : i32 to vector<4x1x1xi32>
    %32 = arith.cmpi sge, %30, %31 : vector<4x1x1xi32>
    %33 = arith.select %32, %25, %23 : vector<4x1x1xi1>, vector<4x1x1xi32>
    %c536870912_i32 = arith.constant 536870912 : i32
    %34 = vector.broadcast %c536870912_i32 : i32 to vector<4x1x1xi32>
    %35 = arith.addi %33, %34 : vector<4x1x1xi32>
    %36 = vector.broadcast %35 : vector<4x1x1xi32> to vector<4x1x256xi32>
    %37 = arith.cmpi sge, %13, %36 : vector<4x1x256xi32>
    %38 = arith.extui %37 : vector<4x1x256xi1> to vector<4x1x256xi32>
    %cst_11 = arith.constant dense<0> : vector<4x1xi32>
    %39 = vector.multi_reduction <add>, %38, %cst_11 [2] : vector<4x1x256xi32> to vector<4x1xi32>
    %40 = vector.shape_cast %39 : vector<4x1xi32> to vector<4x1x1xi32>
    %c76_i32_12 = arith.constant 76 : i32
    %41 = vector.broadcast %c76_i32_12 : i32 to vector<4x1x1xi32>
    %42 = arith.cmpi sge, %40, %41 : vector<4x1x1xi32>
    %43 = arith.select %42, %35, %33 : vector<4x1x1xi1>, vector<4x1x1xi32>
    %c268435456_i32 = arith.constant 268435456 : i32
    %44 = vector.broadcast %c268435456_i32 : i32 to vector<4x1x1xi32>
    %45 = arith.addi %43, %44 : vector<4x1x1xi32>
    %46 = vector.broadcast %45 : vector<4x1x1xi32> to vector<4x1x256xi32>
    %47 = arith.cmpi sge, %13, %46 : vector<4x1x256xi32>
    %48 = arith.extui %47 : vector<4x1x256xi1> to vector<4x1x256xi32>
    %cst_13 = arith.constant dense<0> : vector<4x1xi32>
    %49 = vector.multi_reduction <add>, %48, %cst_13 [2] : vector<4x1x256xi32> to vector<4x1xi32>
    %50 = vector.shape_cast %49 : vector<4x1xi32> to vector<4x1x1xi32>
    %c76_i32_14 = arith.constant 76 : i32
    %51 = vector.broadcast %c76_i32_14 : i32 to vector<4x1x1xi32>
    %52 = arith.cmpi sge, %50, %51 : vector<4x1x1xi32>
    %53 = arith.select %52, %45, %43 : vector<4x1x1xi1>, vector<4x1x1xi32>
    %c134217728_i32 = arith.constant 134217728 : i32
    %54 = vector.broadcast %c134217728_i32 : i32 to vector<4x1x1xi32>
    %55 = arith.addi %53, %54 : vector<4x1x1xi32>
    %56 = vector.broadcast %55 : vector<4x1x1xi32> to vector<4x1x256xi32>
    %57 = arith.cmpi sge, %13, %56 : vector<4x1x256xi32>
    %58 = arith.extui %57 : vector<4x1x256xi1> to vector<4x1x256xi32>
    %cst_15 = arith.constant dense<0> : vector<4x1xi32>
    %59 = vector.multi_reduction <add>, %58, %cst_15 [2] : vector<4x1x256xi32> to vector<4x1xi32>
    %60 = vector.shape_cast %59 : vector<4x1xi32> to vector<4x1x1xi32>
    %c76_i32_16 = arith.constant 76 : i32
    %61 = vector.broadcast %c76_i32_16 : i32 to vector<4x1x1xi32>
    %62 = arith.cmpi sge, %60, %61 : vector<4x1x1xi32>
    %63 = arith.select %62, %55, %53 : vector<4x1x1xi1>, vector<4x1x1xi32>
    %c67108864_i32 = arith.constant 67108864 : i32
    %64 = vector.broadcast %c67108864_i32 : i32 to vector<4x1x1xi32>
    %65 = arith.addi %63, %64 : vector<4x1x1xi32>
    %66 = vector.broadcast %65 : vector<4x1x1xi32> to vector<4x1x256xi32>
    %67 = arith.cmpi sge, %13, %66 : vector<4x1x256xi32>
    %68 = arith.extui %67 : vector<4x1x256xi1> to vector<4x1x256xi32>
    %cst_17 = arith.constant dense<0> : vector<4x1xi32>
    %69 = vector.multi_reduction <add>, %68, %cst_17 [2] : vector<4x1x256xi32> to vector<4x1xi32>
    %70 = vector.shape_cast %69 : vector<4x1xi32> to vector<4x1x1xi32>
    %c76_i32_18 = arith.constant 76 : i32
    %71 = vector.broadcast %c76_i32_18 : i32 to vector<4x1x1xi32>
    %72 = arith.cmpi sge, %70, %71 : vector<4x1x1xi32>
    %73 = arith.select %72, %65, %63 : vector<4x1x1xi1>, vector<4x1x1xi32>
    %c33554432_i32 = arith.constant 33554432 : i32
    %74 = vector.broadcast %c33554432_i32 : i32 to vector<4x1x1xi32>
    %75 = arith.addi %73, %74 : vector<4x1x1xi32>
    %76 = vector.broadcast %75 : vector<4x1x1xi32> to vector<4x1x256xi32>
    %77 = arith.cmpi sge, %13, %76 : vector<4x1x256xi32>
    %78 = arith.extui %77 : vector<4x1x256xi1> to vector<4x1x256xi32>
    %cst_19 = arith.constant dense<0> : vector<4x1xi32>
    %79 = vector.multi_reduction <add>, %78, %cst_19 [2] : vector<4x1x256xi32> to vector<4x1xi32>
    %80 = vector.shape_cast %79 : vector<4x1xi32> to vector<4x1x1xi32>
    %c76_i32_20 = arith.constant 76 : i32
    %81 = vector.broadcast %c76_i32_20 : i32 to vector<4x1x1xi32>
    %82 = arith.cmpi sge, %80, %81 : vector<4x1x1xi32>
    %83 = arith.select %82, %75, %73 : vector<4x1x1xi1>, vector<4x1x1xi32>
    %c16777216_i32 = arith.constant 16777216 : i32
    %84 = vector.broadcast %c16777216_i32 : i32 to vector<4x1x1xi32>
    %85 = arith.addi %83, %84 : vector<4x1x1xi32>
    %86 = vector.broadcast %85 : vector<4x1x1xi32> to vector<4x1x256xi32>
    %87 = arith.cmpi sge, %13, %86 : vector<4x1x256xi32>
    %88 = arith.extui %87 : vector<4x1x256xi1> to vector<4x1x256xi32>
    %cst_21 = arith.constant dense<0> : vector<4x1xi32>
    %89 = vector.multi_reduction <add>, %88, %cst_21 [2] : vector<4x1x256xi32> to vector<4x1xi32>
    %90 = vector.shape_cast %89 : vector<4x1xi32> to vector<4x1x1xi32>
    %c76_i32_22 = arith.constant 76 : i32
    %91 = vector.broadcast %c76_i32_22 : i32 to vector<4x1x1xi32>
    %92 = arith.cmpi sge, %90, %91 : vector<4x1x1xi32>
    %93 = arith.select %92, %85, %83 : vector<4x1x1xi1>, vector<4x1x1xi32>
    %c8388608_i32 = arith.constant 8388608 : i32
    %94 = vector.broadcast %c8388608_i32 : i32 to vector<4x1x1xi32>
    %95 = arith.addi %93, %94 : vector<4x1x1xi32>
    %96 = vector.broadcast %95 : vector<4x1x1xi32> to vector<4x1x256xi32>
    %97 = arith.cmpi sge, %13, %96 : vector<4x1x256xi32>
    %98 = arith.extui %97 : vector<4x1x256xi1> to vector<4x1x256xi32>
    %cst_23 = arith.constant dense<0> : vector<4x1xi32>
    %99 = vector.multi_reduction <add>, %98, %cst_23 [2] : vector<4x1x256xi32> to vector<4x1xi32>
    %100 = vector.shape_cast %99 : vector<4x1xi32> to vector<4x1x1xi32>
    %c76_i32_24 = arith.constant 76 : i32
    %101 = vector.broadcast %c76_i32_24 : i32 to vector<4x1x1xi32>
    %102 = arith.cmpi sge, %100, %101 : vector<4x1x1xi32>
    %103 = arith.select %102, %95, %93 : vector<4x1x1xi1>, vector<4x1x1xi32>
    %c4194304_i32 = arith.constant 4194304 : i32
    %104 = vector.broadcast %c4194304_i32 : i32 to vector<4x1x1xi32>
    %105 = arith.addi %103, %104 : vector<4x1x1xi32>
    %106 = vector.broadcast %105 : vector<4x1x1xi32> to vector<4x1x256xi32>
    %107 = arith.cmpi sge, %13, %106 : vector<4x1x256xi32>
    %108 = arith.extui %107 : vector<4x1x256xi1> to vector<4x1x256xi32>
    %cst_25 = arith.constant dense<0> : vector<4x1xi32>
    %109 = vector.multi_reduction <add>, %108, %cst_25 [2] : vector<4x1x256xi32> to vector<4x1xi32>
    %110 = vector.shape_cast %109 : vector<4x1xi32> to vector<4x1x1xi32>
    %c76_i32_26 = arith.constant 76 : i32
    %111 = vector.broadcast %c76_i32_26 : i32 to vector<4x1x1xi32>
    %112 = arith.cmpi sge, %110, %111 : vector<4x1x1xi32>
    %113 = arith.select %112, %105, %103 : vector<4x1x1xi1>, vector<4x1x1xi32>
    %c2097152_i32 = arith.constant 2097152 : i32
    %114 = vector.broadcast %c2097152_i32 : i32 to vector<4x1x1xi32>
    %115 = arith.addi %113, %114 : vector<4x1x1xi32>
    %116 = vector.broadcast %115 : vector<4x1x1xi32> to vector<4x1x256xi32>
    %117 = arith.cmpi sge, %13, %116 : vector<4x1x256xi32>
    %118 = arith.extui %117 : vector<4x1x256xi1> to vector<4x1x256xi32>
    %cst_27 = arith.constant dense<0> : vector<4x1xi32>
    %119 = vector.multi_reduction <add>, %118, %cst_27 [2] : vector<4x1x256xi32> to vector<4x1xi32>
    %120 = vector.shape_cast %119 : vector<4x1xi32> to vector<4x1x1xi32>
    %c76_i32_28 = arith.constant 76 : i32
    %121 = vector.broadcast %c76_i32_28 : i32 to vector<4x1x1xi32>
    %122 = arith.cmpi sge, %120, %121 : vector<4x1x1xi32>
    %123 = arith.select %122, %115, %113 : vector<4x1x1xi1>, vector<4x1x1xi32>
    %c1048576_i32 = arith.constant 1048576 : i32
    %124 = vector.broadcast %c1048576_i32 : i32 to vector<4x1x1xi32>
    %125 = arith.addi %123, %124 : vector<4x1x1xi32>
    %126 = vector.broadcast %125 : vector<4x1x1xi32> to vector<4x1x256xi32>
    %127 = arith.cmpi sge, %13, %126 : vector<4x1x256xi32>
    %128 = arith.extui %127 : vector<4x1x256xi1> to vector<4x1x256xi32>
    %cst_29 = arith.constant dense<0> : vector<4x1xi32>
    %129 = vector.multi_reduction <add>, %128, %cst_29 [2] : vector<4x1x256xi32> to vector<4x1xi32>
    %130 = vector.shape_cast %129 : vector<4x1xi32> to vector<4x1x1xi32>
    %c76_i32_30 = arith.constant 76 : i32
    %131 = vector.broadcast %c76_i32_30 : i32 to vector<4x1x1xi32>
    %132 = arith.cmpi sge, %130, %131 : vector<4x1x1xi32>
    %133 = arith.select %132, %125, %123 : vector<4x1x1xi1>, vector<4x1x1xi32>
    %c524288_i32 = arith.constant 524288 : i32
    %134 = vector.broadcast %c524288_i32 : i32 to vector<4x1x1xi32>
    %135 = arith.addi %133, %134 : vector<4x1x1xi32>
    %136 = vector.broadcast %135 : vector<4x1x1xi32> to vector<4x1x256xi32>
    %137 = arith.cmpi sge, %13, %136 : vector<4x1x256xi32>
    %138 = arith.extui %137 : vector<4x1x256xi1> to vector<4x1x256xi32>
    %cst_31 = arith.constant dense<0> : vector<4x1xi32>
    %139 = vector.multi_reduction <add>, %138, %cst_31 [2] : vector<4x1x256xi32> to vector<4x1xi32>
    %140 = vector.shape_cast %139 : vector<4x1xi32> to vector<4x1x1xi32>
    %c76_i32_32 = arith.constant 76 : i32
    %141 = vector.broadcast %c76_i32_32 : i32 to vector<4x1x1xi32>
    %142 = arith.cmpi sge, %140, %141 : vector<4x1x1xi32>
    %143 = arith.select %142, %135, %133 : vector<4x1x1xi1>, vector<4x1x1xi32>
    %c262144_i32 = arith.constant 262144 : i32
    %144 = vector.broadcast %c262144_i32 : i32 to vector<4x1x1xi32>
    %145 = arith.addi %143, %144 : vector<4x1x1xi32>
    %146 = vector.broadcast %145 : vector<4x1x1xi32> to vector<4x1x256xi32>
    %147 = arith.cmpi sge, %13, %146 : vector<4x1x256xi32>
    %148 = arith.extui %147 : vector<4x1x256xi1> to vector<4x1x256xi32>
    %cst_33 = arith.constant dense<0> : vector<4x1xi32>
    %149 = vector.multi_reduction <add>, %148, %cst_33 [2] : vector<4x1x256xi32> to vector<4x1xi32>
    %150 = vector.shape_cast %149 : vector<4x1xi32> to vector<4x1x1xi32>
    %c76_i32_34 = arith.constant 76 : i32
    %151 = vector.broadcast %c76_i32_34 : i32 to vector<4x1x1xi32>
    %152 = arith.cmpi sge, %150, %151 : vector<4x1x1xi32>
    %153 = arith.select %152, %145, %143 : vector<4x1x1xi1>, vector<4x1x1xi32>
    %c131072_i32 = arith.constant 131072 : i32
    %154 = vector.broadcast %c131072_i32 : i32 to vector<4x1x1xi32>
    %155 = arith.addi %153, %154 : vector<4x1x1xi32>
    %156 = vector.broadcast %155 : vector<4x1x1xi32> to vector<4x1x256xi32>
    %157 = arith.cmpi sge, %13, %156 : vector<4x1x256xi32>
    %158 = arith.extui %157 : vector<4x1x256xi1> to vector<4x1x256xi32>
    %cst_35 = arith.constant dense<0> : vector<4x1xi32>
    %159 = vector.multi_reduction <add>, %158, %cst_35 [2] : vector<4x1x256xi32> to vector<4x1xi32>
    %160 = vector.shape_cast %159 : vector<4x1xi32> to vector<4x1x1xi32>
    %c76_i32_36 = arith.constant 76 : i32
    %161 = vector.broadcast %c76_i32_36 : i32 to vector<4x1x1xi32>
    %162 = arith.cmpi sge, %160, %161 : vector<4x1x1xi32>
    %163 = arith.select %162, %155, %153 : vector<4x1x1xi1>, vector<4x1x1xi32>
    %c65536_i32 = arith.constant 65536 : i32
    %164 = vector.broadcast %c65536_i32 : i32 to vector<4x1x1xi32>
    %165 = arith.addi %163, %164 : vector<4x1x1xi32>
    %166 = vector.broadcast %165 : vector<4x1x1xi32> to vector<4x1x256xi32>
    %167 = arith.cmpi sge, %13, %166 : vector<4x1x256xi32>
    %168 = arith.extui %167 : vector<4x1x256xi1> to vector<4x1x256xi32>
    %cst_37 = arith.constant dense<0> : vector<4x1xi32>
    %169 = vector.multi_reduction <add>, %168, %cst_37 [2] : vector<4x1x256xi32> to vector<4x1xi32>
    %170 = vector.shape_cast %169 : vector<4x1xi32> to vector<4x1x1xi32>
    %c76_i32_38 = arith.constant 76 : i32
    %171 = vector.broadcast %c76_i32_38 : i32 to vector<4x1x1xi32>
    %172 = arith.cmpi sge, %170, %171 : vector<4x1x1xi32>
    %173 = arith.select %172, %165, %163 : vector<4x1x1xi1>, vector<4x1x1xi32>
    %c32768_i32 = arith.constant 32768 : i32
    %174 = vector.broadcast %c32768_i32 : i32 to vector<4x1x1xi32>
    %175 = arith.addi %173, %174 : vector<4x1x1xi32>
    %176 = vector.broadcast %175 : vector<4x1x1xi32> to vector<4x1x256xi32>
    %177 = arith.cmpi sge, %13, %176 : vector<4x1x256xi32>
    %178 = arith.extui %177 : vector<4x1x256xi1> to vector<4x1x256xi32>
    %cst_39 = arith.constant dense<0> : vector<4x1xi32>
    %179 = vector.multi_reduction <add>, %178, %cst_39 [2] : vector<4x1x256xi32> to vector<4x1xi32>
    %180 = vector.shape_cast %179 : vector<4x1xi32> to vector<4x1x1xi32>
    %c76_i32_40 = arith.constant 76 : i32
    %181 = vector.broadcast %c76_i32_40 : i32 to vector<4x1x1xi32>
    %182 = arith.cmpi sge, %180, %181 : vector<4x1x1xi32>
    %183 = arith.select %182, %175, %173 : vector<4x1x1xi1>, vector<4x1x1xi32>
    %c16384_i32 = arith.constant 16384 : i32
    %184 = vector.broadcast %c16384_i32 : i32 to vector<4x1x1xi32>
    %185 = arith.addi %183, %184 : vector<4x1x1xi32>
    %186 = vector.broadcast %185 : vector<4x1x1xi32> to vector<4x1x256xi32>
    %187 = arith.cmpi sge, %13, %186 : vector<4x1x256xi32>
    %188 = arith.extui %187 : vector<4x1x256xi1> to vector<4x1x256xi32>
    %cst_41 = arith.constant dense<0> : vector<4x1xi32>
    %189 = vector.multi_reduction <add>, %188, %cst_41 [2] : vector<4x1x256xi32> to vector<4x1xi32>
    %190 = vector.shape_cast %189 : vector<4x1xi32> to vector<4x1x1xi32>
    %c76_i32_42 = arith.constant 76 : i32
    %191 = vector.broadcast %c76_i32_42 : i32 to vector<4x1x1xi32>
    %192 = arith.cmpi sge, %190, %191 : vector<4x1x1xi32>
    %193 = arith.select %192, %185, %183 : vector<4x1x1xi1>, vector<4x1x1xi32>
    %c8192_i32 = arith.constant 8192 : i32
    %194 = vector.broadcast %c8192_i32 : i32 to vector<4x1x1xi32>
    %195 = arith.addi %193, %194 : vector<4x1x1xi32>
    %196 = vector.broadcast %195 : vector<4x1x1xi32> to vector<4x1x256xi32>
    %197 = arith.cmpi sge, %13, %196 : vector<4x1x256xi32>
    %198 = arith.extui %197 : vector<4x1x256xi1> to vector<4x1x256xi32>
    %cst_43 = arith.constant dense<0> : vector<4x1xi32>
    %199 = vector.multi_reduction <add>, %198, %cst_43 [2] : vector<4x1x256xi32> to vector<4x1xi32>
    %200 = vector.shape_cast %199 : vector<4x1xi32> to vector<4x1x1xi32>
    %c76_i32_44 = arith.constant 76 : i32
    %201 = vector.broadcast %c76_i32_44 : i32 to vector<4x1x1xi32>
    %202 = arith.cmpi sge, %200, %201 : vector<4x1x1xi32>
    %203 = arith.select %202, %195, %193 : vector<4x1x1xi1>, vector<4x1x1xi32>
    %c4096_i32 = arith.constant 4096 : i32
    %204 = vector.broadcast %c4096_i32 : i32 to vector<4x1x1xi32>
    %205 = arith.addi %203, %204 : vector<4x1x1xi32>
    %206 = vector.broadcast %205 : vector<4x1x1xi32> to vector<4x1x256xi32>
    %207 = arith.cmpi sge, %13, %206 : vector<4x1x256xi32>
    %208 = arith.extui %207 : vector<4x1x256xi1> to vector<4x1x256xi32>
    %cst_45 = arith.constant dense<0> : vector<4x1xi32>
    %209 = vector.multi_reduction <add>, %208, %cst_45 [2] : vector<4x1x256xi32> to vector<4x1xi32>
    %210 = vector.shape_cast %209 : vector<4x1xi32> to vector<4x1x1xi32>
    %c76_i32_46 = arith.constant 76 : i32
    %211 = vector.broadcast %c76_i32_46 : i32 to vector<4x1x1xi32>
    %212 = arith.cmpi sge, %210, %211 : vector<4x1x1xi32>
    %213 = arith.select %212, %205, %203 : vector<4x1x1xi1>, vector<4x1x1xi32>
    %c2048_i32 = arith.constant 2048 : i32
    %214 = vector.broadcast %c2048_i32 : i32 to vector<4x1x1xi32>
    %215 = arith.addi %213, %214 : vector<4x1x1xi32>
    %216 = vector.broadcast %215 : vector<4x1x1xi32> to vector<4x1x256xi32>
    %217 = arith.cmpi sge, %13, %216 : vector<4x1x256xi32>
    %218 = arith.extui %217 : vector<4x1x256xi1> to vector<4x1x256xi32>
    %cst_47 = arith.constant dense<0> : vector<4x1xi32>
    %219 = vector.multi_reduction <add>, %218, %cst_47 [2] : vector<4x1x256xi32> to vector<4x1xi32>
    %220 = vector.shape_cast %219 : vector<4x1xi32> to vector<4x1x1xi32>
    %c76_i32_48 = arith.constant 76 : i32
    %221 = vector.broadcast %c76_i32_48 : i32 to vector<4x1x1xi32>
    %222 = arith.cmpi sge, %220, %221 : vector<4x1x1xi32>
    %223 = arith.select %222, %215, %213 : vector<4x1x1xi1>, vector<4x1x1xi32>
    %c1024_i32 = arith.constant 1024 : i32
    %224 = vector.broadcast %c1024_i32 : i32 to vector<4x1x1xi32>
    %225 = arith.addi %223, %224 : vector<4x1x1xi32>
    %226 = vector.broadcast %225 : vector<4x1x1xi32> to vector<4x1x256xi32>
    %227 = arith.cmpi sge, %13, %226 : vector<4x1x256xi32>
    %228 = arith.extui %227 : vector<4x1x256xi1> to vector<4x1x256xi32>
    %cst_49 = arith.constant dense<0> : vector<4x1xi32>
    %229 = vector.multi_reduction <add>, %228, %cst_49 [2] : vector<4x1x256xi32> to vector<4x1xi32>
    %230 = vector.shape_cast %229 : vector<4x1xi32> to vector<4x1x1xi32>
    %c76_i32_50 = arith.constant 76 : i32
    %231 = vector.broadcast %c76_i32_50 : i32 to vector<4x1x1xi32>
    %232 = arith.cmpi sge, %230, %231 : vector<4x1x1xi32>
    %233 = arith.select %232, %225, %223 : vector<4x1x1xi1>, vector<4x1x1xi32>
    %c512_i32 = arith.constant 512 : i32
    %234 = vector.broadcast %c512_i32 : i32 to vector<4x1x1xi32>
    %235 = arith.addi %233, %234 : vector<4x1x1xi32>
    %236 = vector.broadcast %235 : vector<4x1x1xi32> to vector<4x1x256xi32>
    %237 = arith.cmpi sge, %13, %236 : vector<4x1x256xi32>
    %238 = arith.extui %237 : vector<4x1x256xi1> to vector<4x1x256xi32>
    %cst_51 = arith.constant dense<0> : vector<4x1xi32>
    %239 = vector.multi_reduction <add>, %238, %cst_51 [2] : vector<4x1x256xi32> to vector<4x1xi32>
    %240 = vector.shape_cast %239 : vector<4x1xi32> to vector<4x1x1xi32>
    %c76_i32_52 = arith.constant 76 : i32
    %241 = vector.broadcast %c76_i32_52 : i32 to vector<4x1x1xi32>
    %242 = arith.cmpi sge, %240, %241 : vector<4x1x1xi32>
    %243 = arith.select %242, %235, %233 : vector<4x1x1xi1>, vector<4x1x1xi32>
    %c256_i32 = arith.constant 256 : i32
    %244 = vector.broadcast %c256_i32 : i32 to vector<4x1x1xi32>
    %245 = arith.addi %243, %244 : vector<4x1x1xi32>
    %246 = vector.broadcast %245 : vector<4x1x1xi32> to vector<4x1x256xi32>
    %247 = arith.cmpi sge, %13, %246 : vector<4x1x256xi32>
    %248 = arith.extui %247 : vector<4x1x256xi1> to vector<4x1x256xi32>
    %cst_53 = arith.constant dense<0> : vector<4x1xi32>
    %249 = vector.multi_reduction <add>, %248, %cst_53 [2] : vector<4x1x256xi32> to vector<4x1xi32>
    %250 = vector.shape_cast %249 : vector<4x1xi32> to vector<4x1x1xi32>
    %c76_i32_54 = arith.constant 76 : i32
    %251 = vector.broadcast %c76_i32_54 : i32 to vector<4x1x1xi32>
    %252 = arith.cmpi sge, %250, %251 : vector<4x1x1xi32>
    %253 = arith.select %252, %245, %243 : vector<4x1x1xi1>, vector<4x1x1xi32>
    %c128_i32 = arith.constant 128 : i32
    %254 = vector.broadcast %c128_i32 : i32 to vector<4x1x1xi32>
    %255 = arith.addi %253, %254 : vector<4x1x1xi32>
    %256 = vector.broadcast %255 : vector<4x1x1xi32> to vector<4x1x256xi32>
    %257 = arith.cmpi sge, %13, %256 : vector<4x1x256xi32>
    %258 = arith.extui %257 : vector<4x1x256xi1> to vector<4x1x256xi32>
    %cst_55 = arith.constant dense<0> : vector<4x1xi32>
    %259 = vector.multi_reduction <add>, %258, %cst_55 [2] : vector<4x1x256xi32> to vector<4x1xi32>
    %260 = vector.shape_cast %259 : vector<4x1xi32> to vector<4x1x1xi32>
    %c76_i32_56 = arith.constant 76 : i32
    %261 = vector.broadcast %c76_i32_56 : i32 to vector<4x1x1xi32>
    %262 = arith.cmpi sge, %260, %261 : vector<4x1x1xi32>
    %263 = arith.select %262, %255, %253 : vector<4x1x1xi1>, vector<4x1x1xi32>
    %c64_i32 = arith.constant 64 : i32
    %264 = vector.broadcast %c64_i32 : i32 to vector<4x1x1xi32>
    %265 = arith.addi %263, %264 : vector<4x1x1xi32>
    %266 = vector.broadcast %265 : vector<4x1x1xi32> to vector<4x1x256xi32>
    %267 = arith.cmpi sge, %13, %266 : vector<4x1x256xi32>
    %268 = arith.extui %267 : vector<4x1x256xi1> to vector<4x1x256xi32>
    %cst_57 = arith.constant dense<0> : vector<4x1xi32>
    %269 = vector.multi_reduction <add>, %268, %cst_57 [2] : vector<4x1x256xi32> to vector<4x1xi32>
    %270 = vector.shape_cast %269 : vector<4x1xi32> to vector<4x1x1xi32>
    %c76_i32_58 = arith.constant 76 : i32
    %271 = vector.broadcast %c76_i32_58 : i32 to vector<4x1x1xi32>
    %272 = arith.cmpi sge, %270, %271 : vector<4x1x1xi32>
    %273 = arith.select %272, %265, %263 : vector<4x1x1xi1>, vector<4x1x1xi32>
    %c32_i32 = arith.constant 32 : i32
    %274 = vector.broadcast %c32_i32 : i32 to vector<4x1x1xi32>
    %275 = arith.addi %273, %274 : vector<4x1x1xi32>
    %276 = vector.broadcast %275 : vector<4x1x1xi32> to vector<4x1x256xi32>
    %277 = arith.cmpi sge, %13, %276 : vector<4x1x256xi32>
    %278 = arith.extui %277 : vector<4x1x256xi1> to vector<4x1x256xi32>
    %cst_59 = arith.constant dense<0> : vector<4x1xi32>
    %279 = vector.multi_reduction <add>, %278, %cst_59 [2] : vector<4x1x256xi32> to vector<4x1xi32>
    %280 = vector.shape_cast %279 : vector<4x1xi32> to vector<4x1x1xi32>
    %c76_i32_60 = arith.constant 76 : i32
    %281 = vector.broadcast %c76_i32_60 : i32 to vector<4x1x1xi32>
    %282 = arith.cmpi sge, %280, %281 : vector<4x1x1xi32>
    %283 = arith.select %282, %275, %273 : vector<4x1x1xi1>, vector<4x1x1xi32>
    %c16_i32 = arith.constant 16 : i32
    %284 = vector.broadcast %c16_i32 : i32 to vector<4x1x1xi32>
    %285 = arith.addi %283, %284 : vector<4x1x1xi32>
    %286 = vector.broadcast %285 : vector<4x1x1xi32> to vector<4x1x256xi32>
    %287 = arith.cmpi sge, %13, %286 : vector<4x1x256xi32>
    %288 = arith.extui %287 : vector<4x1x256xi1> to vector<4x1x256xi32>
    %cst_61 = arith.constant dense<0> : vector<4x1xi32>
    %289 = vector.multi_reduction <add>, %288, %cst_61 [2] : vector<4x1x256xi32> to vector<4x1xi32>
    %290 = vector.shape_cast %289 : vector<4x1xi32> to vector<4x1x1xi32>
    %c76_i32_62 = arith.constant 76 : i32
    %291 = vector.broadcast %c76_i32_62 : i32 to vector<4x1x1xi32>
    %292 = arith.cmpi sge, %290, %291 : vector<4x1x1xi32>
    %293 = arith.select %292, %285, %283 : vector<4x1x1xi1>, vector<4x1x1xi32>
    %c8_i32 = arith.constant 8 : i32
    %294 = vector.broadcast %c8_i32 : i32 to vector<4x1x1xi32>
    %295 = arith.addi %293, %294 : vector<4x1x1xi32>
    %296 = vector.broadcast %295 : vector<4x1x1xi32> to vector<4x1x256xi32>
    %297 = arith.cmpi sge, %13, %296 : vector<4x1x256xi32>
    %298 = arith.extui %297 : vector<4x1x256xi1> to vector<4x1x256xi32>
    %cst_63 = arith.constant dense<0> : vector<4x1xi32>
    %299 = vector.multi_reduction <add>, %298, %cst_63 [2] : vector<4x1x256xi32> to vector<4x1xi32>
    %300 = vector.shape_cast %299 : vector<4x1xi32> to vector<4x1x1xi32>
    %c76_i32_64 = arith.constant 76 : i32
    %301 = vector.broadcast %c76_i32_64 : i32 to vector<4x1x1xi32>
    %302 = arith.cmpi sge, %300, %301 : vector<4x1x1xi32>
    %303 = arith.select %302, %295, %293 : vector<4x1x1xi1>, vector<4x1x1xi32>
    %c4_i32 = arith.constant 4 : i32
    %304 = vector.broadcast %c4_i32 : i32 to vector<4x1x1xi32>
    %305 = arith.addi %303, %304 : vector<4x1x1xi32>
    %306 = vector.broadcast %305 : vector<4x1x1xi32> to vector<4x1x256xi32>
    %307 = arith.cmpi sge, %13, %306 : vector<4x1x256xi32>
    %308 = arith.extui %307 : vector<4x1x256xi1> to vector<4x1x256xi32>
    %cst_65 = arith.constant dense<0> : vector<4x1xi32>
    %309 = vector.multi_reduction <add>, %308, %cst_65 [2] : vector<4x1x256xi32> to vector<4x1xi32>
    %310 = vector.shape_cast %309 : vector<4x1xi32> to vector<4x1x1xi32>
    %c76_i32_66 = arith.constant 76 : i32
    %311 = vector.broadcast %c76_i32_66 : i32 to vector<4x1x1xi32>
    %312 = arith.cmpi sge, %310, %311 : vector<4x1x1xi32>
    %313 = arith.select %312, %305, %303 : vector<4x1x1xi1>, vector<4x1x1xi32>
    %c2_i32 = arith.constant 2 : i32
    %314 = vector.broadcast %c2_i32 : i32 to vector<4x1x1xi32>
    %315 = arith.addi %313, %314 : vector<4x1x1xi32>
    %316 = vector.broadcast %315 : vector<4x1x1xi32> to vector<4x1x256xi32>
    %317 = arith.cmpi sge, %13, %316 : vector<4x1x256xi32>
    %318 = arith.extui %317 : vector<4x1x256xi1> to vector<4x1x256xi32>
    %cst_67 = arith.constant dense<0> : vector<4x1xi32>
    %319 = vector.multi_reduction <add>, %318, %cst_67 [2] : vector<4x1x256xi32> to vector<4x1xi32>
    %320 = vector.shape_cast %319 : vector<4x1xi32> to vector<4x1x1xi32>
    %c76_i32_68 = arith.constant 76 : i32
    %321 = vector.broadcast %c76_i32_68 : i32 to vector<4x1x1xi32>
    %322 = arith.cmpi sge, %320, %321 : vector<4x1x1xi32>
    %323 = arith.select %322, %315, %313 : vector<4x1x1xi1>, vector<4x1x1xi32>
    %c1_i32 = arith.constant 1 : i32
    %324 = vector.broadcast %c1_i32 : i32 to vector<4x1x1xi32>
    %325 = arith.addi %323, %324 : vector<4x1x1xi32>
    %326 = vector.broadcast %325 : vector<4x1x1xi32> to vector<4x1x256xi32>
    %327 = arith.cmpi sge, %13, %326 : vector<4x1x256xi32>
    %328 = arith.extui %327 : vector<4x1x256xi1> to vector<4x1x256xi32>
    %cst_69 = arith.constant dense<0> : vector<4x1xi32>
    %329 = vector.multi_reduction <add>, %328, %cst_69 [2] : vector<4x1x256xi32> to vector<4x1xi32>
    %330 = vector.shape_cast %329 : vector<4x1xi32> to vector<4x1x1xi32>
    %c76_i32_70 = arith.constant 76 : i32
    %331 = vector.broadcast %c76_i32_70 : i32 to vector<4x1x1xi32>
    %332 = arith.cmpi sge, %330, %331 : vector<4x1x1xi32>
    %333 = arith.select %332, %325, %323 : vector<4x1x1xi1>, vector<4x1x1xi32>
    %334 = vector.broadcast %333 : vector<4x1x1xi32> to vector<4x1x256xi32>
    %335 = arith.cmpi sgt, %13, %334 : vector<4x1x256xi32>
    %cst_71 = arith.constant 0.000000e+00 : f32
    %336 = vector.shape_cast %335 : vector<4x1x256xi1> to vector<4x1x256xi1>
    %337 = vector.broadcast %336 : vector<4x1x256xi1> to vector<4x128x256xi1>
    %338 = vector.broadcast %cst_71 : f32 to vector<4x128x256xf32>
    %339 = arith.select %337, %0, %338 : vector<4x128x256xi1>, vector<4x128x256xf32>
    %cst_72 = arith.constant dense<0.000000e+00> : vector<4x128xf32>
    %340 = vector.multi_reduction <add>, %339, %cst_72 [2] : vector<4x128x256xf32> to vector<4x128xf32>
    %cst_73 = arith.constant 3.906250e-03 : f32
    %341 = vector.broadcast %cst_73 : f32 to vector<4x128xf32>
    %342 = arith.mulf %340, %341 : vector<4x128xf32>
    %c0_74 = arith.constant 0 : index
    %c0_75 = arith.constant 0 : index
    %343 = vector.load %arg4[%c0_74, %c0_75] : memref<128x128xf32, #tpu.memory_space<vmem>>, vector<128x128xf32>
    %cst_76 = arith.constant dense<0.000000e+00> : vector<4x128xf32>
    %344 = tpu.matmul %342, %343, %cst_76 {dimension_numbers = #tpu.dot_dimension_numbers<[1], [0], [0], [1], [0, 0, 1, 1], [], []>} : vector<4x128xf32>, vector<128x128xf32>, vector<4x128xf32> -> vector<4x128xf32>
    %c0_77 = arith.constant 0 : index
    %c0_78 = arith.constant 0 : index
    %345 = vector.load %arg5[%c0_77, %c0_78] : memref<1x128xf32, #tpu.memory_space<vmem>>, vector<1x128xf32>
    %346 = vector.broadcast %345 : vector<1x128xf32> to vector<4x128xf32>
    %347 = arith.addf %344, %346 : vector<4x128xf32>
    %c0_79 = arith.constant 0 : index
    %c0_80 = arith.constant 0 : index
    %c0_81 = arith.constant 0 : index
    %348 = vector.load %arg6[%c0_79, %c0_80, %c0_81] : memref<1x4x128xf32, #tpu.memory_space<vmem>>, vector<1x4x128xf32>
    %349 = vector.shape_cast %348 : vector<1x4x128xf32> to vector<4x128xf32>
    %350 = vector.shape_cast %347 : vector<4x128xf32> to vector<1x4x128xf32>
    tpu.vector_store %arg6[%c0_79, %c0_80, %c0_81], %350 {strides = array<i32>} : memref<1x4x128xf32, #tpu.memory_space<vmem>>, vector<1x4x128xf32>,
    return
  }
  func.func @transform_0(%arg0: i32) -> (i32, i32, i32) {
    %c0_i32 = arith.constant 0 : i32
    %c0_i32_0 = arith.constant 0 : i32
    %c0_i32_1 = arith.constant 0 : i32
    return %arg0, %c0_i32, %c0_i32_0 : i32, i32, i32
  }
  func.func @transform_1(%arg0: i32) -> (i32, i32, i32) {
    %c0_i32 = arith.constant 0 : i32
    %c0_i32_0 = arith.constant 0 : i32
    %c0_i32_1 = arith.constant 0 : i32
    %c0_i32_2 = arith.constant 0 : i32
    return %c0_i32, %c0_i32_0, %c0_i32_1 : i32, i32, i32
  }
  func.func @transform_2(%arg0: i32) -> i32 {
    %c0_i32 = arith.constant 0 : i32
    %c0_i32_0 = arith.constant 0 : i32
    return %c0_i32 : i32
  }
  func.func @transform_3(%arg0: i32) -> (i32, i32) {
    %c0_i32 = arith.constant 0 : i32
    %c0_i32_0 = arith.constant 0 : i32
    %c0_i32_1 = arith.constant 0 : i32
    return %c0_i32, %c0_i32_0 : i32, i32
  }
  func.func @transform_4(%arg0: i32) -> (i32, i32) {
    %c0_i32 = arith.constant 0 : i32
    %c0_i32_0 = arith.constant 0 : i32
    %c0_i32_1 = arith.constant 0 : i32
    return %c0_i32, %c0_i32_0 : i32, i32
  }
  func.func @transform_5(%arg0: i32) -> (i32, i32, i32) {
    %c0_i32 = arith.constant 0 : i32
    %c0_i32_0 = arith.constant 0 : i32
    %c0_i32_1 = arith.constant 0 : i32
    return %arg0, %c0_i32, %c0_i32_0 : i32, i32, i32
  }
}

</mosaic_0001>

<llo_original>
// kernel: tpu_custom_call.1
$region0: #{tpu_custom_call.1}
  #allocation0 [shape = 'u32[]', space=smem, size = 0x4, offset = 0x4, fixed_abs, tag = 'smem constant byte address 0x4 - core index']
  #allocation1 [shape = 'u32[144,128]{1,0:T(1,128)}', space=vmem, size = 0x12000, scoped, tag = 'internal scratch']
  #allocation2 [shape = 'f32[1]{0:T(128)S(6)}', space=smem, size = 0x200, scoped, tag = 'scoped memory for tpu_custom_call.1']
  %s0 = inlined_call_operand.hbm [shape: f32[8,128,256], index: 0, kind: input, shape index: {}]
  %s1 = inlined_call_operand.vmem [shape: f32[1,1,128], index: 1, kind: input, shape index: {}]
  %s2 = inlined_call_operand.<no memory space> [shape: f32[1], index: 2, kind: input, shape index: {}]
  %s3 = inlined_call_operand.hbm [shape: f32[128,128], index: 3, kind: input, shape index: {}]
  %s4 = inlined_call_operand.vmem [shape: f32[1,128], index: 4, kind: input, shape index: {}]
  %s5 = inlined_call_operand.hbm [shape: f32[2,4,128], index: 5, kind: output, shape index: {}]
  %s6 = sld [smem:[#allocation0]]
  $region61: #{tpu_custom_call.1} parent=0
    _
  %s8 = ssub.s32 1, %s6
  %s9 = scalar_select 0, %s8, %s6
  %10 = sst [smem:[#allocation2]] %s2
  $region1: #{tpu_custom_call.1} parent=0
    #allocation3 [shape = 'u8[1048576]{0}', space=vmem, size = 0x100000, scoped, tag = 'input window, operand 0']
    #allocation4 [shape = 's32[2]{0}', space=sflag, size = 0x8, scoped, tag = 'scoped memory for tpu_custom_call.1']
    #allocation5 [shape = 's32[2]{0}', space=sflag, size = 0x8, scoped, tag = 'scoped memory for tpu_custom_call.1']
    #allocation6 [shape = 'u8[65536]{0}', space=vmem, size = 0x10000, scoped, tag = 'input window, operand 3, single buffered']
    #allocation7 [shape = 's32[1]{0}', space=sflag, size = 0x4, scoped, tag = 'scoped memory for tpu_custom_call.1']
    #allocation8 [shape = 'u8[4096]{0}', space=vmem, size = 0x1000, scoped, tag = 'output window, operand 0']
    %11 = vsyncpa [#allocation4], 0
    %s12 = scalar_lea.sflag [#allocation4], 1
    %13 = vsyncpa %s12, 0
    %14 = vsyncpa [#allocation7], 0
    %15 = vsyncpa [#allocation5], 0
    %s16 = scalar_lea.sflag [#allocation5], 1
    %17 = vsyncpa %s16, 0
    loop: start=0, step=1, limit=4
    $region2: #{tpu_custom_call.1} parent=1 // loop_pre_header
      _
    $region3: #{tpu_custom_call.1} parent=1 // loop_header
      %s19 = sphi 0, %s23
      %p20 = scmp.ge.s32.totalorder %s19, 4
      %s29 = sphi 0, %s31
      %s32 = sphi 0, %s29
      %s33 = sphi 0, %s32
      %s49 = sphi 0, %s33
      %s53 = sphi 0, %s53
      %s55 = sphi 0, %s53
      %s56 = sphi 0, %s55
      %s70 = sphi 0, %s56
      %s74 = sphi 0, %s74
      %s76 = sphi 0, %s74
      %s77 = sphi 0, %s76
      %s91 = sphi 0, %s77
      %s95 = sphi 0, %s95
      %s97 = sphi 0, %s95
      %s98 = sphi 0, %s97
      %s112 = sphi 0, %s98
      %s116 = sphi 0, %s116
      %s118 = sphi 0, %s116
      %s119 = sphi 0, %s118
      %s133 = sphi 0, %s119
      %s139 = sphi 0, %s141
      %s142 = sphi 0, %s139
      %s143 = sphi 0, %s142
      %s159 = sphi 0, %s143
    $region4: #{tpu_custom_call.1} parent=1 // loop_header_branch
      %22 = sbr.rel (%p20) target = $region8
    $region5: #{tpu_custom_call.1} parent=1 // loop_body
      %s24 = ssub.s32 %s19, 1
      %s25 = ssub.s32 %s19, 2
      %s26 = sadd.s32 %s19, 1
      %s27 = ssub.s32 %s19, %s26
      %p28 = scmp.eq.s32.totalorder %s27, 0
      %s30 = sadd.s32 %s29, 1
      %s31 = scalar_select %p28, %s29, %s30
      %p34 = pneg %p28
      %p35 = scmp.eq.s32.totalorder %s19, 1
      %p36 = por %p34, %p35
      %p37 = scmp.ne.s32.totalorder %s29, %s32
      %p38 = scmp.eq.s32.totalorder %s19, 0
      %p39 = por %p37, %p38
      %p40 = scmp.ne.s32.totalorder %s29, %s32
      %p41 = scmp.eq.s32.totalorder %s24, 1
      %p42 = por %p40, %p41
      %p43 = scmp.ne.s32.totalorder %s32, %s33
      %p44 = scmp.eq.s32.totalorder %s24, 0
      %p45 = por %p43, %p44
      %p46 = scmp.ne.s32.totalorder %s32, %s33
      %p47 = scmp.eq.s32.totalorder %s25, 1
      %p48 = por %p46, %p47
      %p50 = scmp.ne.s32.totalorder %s33, %s49
      %p51 = scmp.eq.s32.totalorder %s25, 0
      %p52 = por %p50, %p51
      %s54 = sadd.s32 %s53, 1
      %p57 = scmp.eq.s32.totalorder %s19, 1
      %p58 = scmp.ne.s32.totalorder %s53, %s55
      %p59 = scmp.eq.s32.totalorder %s19, 0
      %p60 = por %p58, %p59
      %p61 = scmp.ne.s32.totalorder %s53, %s55
      %p62 = scmp.eq.s32.totalorder %s24, 1
      %p63 = por %p61, %p62
      %p64 = scmp.ne.s32.totalorder %s55, %s56
      %p65 = scmp.eq.s32.totalorder %s24, 0
      %p66 = por %p64, %p65
      %p67 = scmp.ne.s32.totalorder %s55, %s56
      %p68 = scmp.eq.s32.totalorder %s25, 1
      %p69 = por %p67, %p68
      %p71 = scmp.ne.s32.totalorder %s56, %s70
      %p72 = scmp.eq.s32.totalorder %s25, 0
      %p73 = por %p71, %p72
      %s75 = sadd.s32 %s74, 1
      %p78 = scmp.eq.s32.totalorder %s19, 1
      %p79 = scmp.ne.s32.totalorder %s74, %s76
      %p80 = scmp.eq.s32.totalorder %s19, 0
      %p81 = por %p79, %p80
      %p82 = scmp.ne.s32.totalorder %s74, %s76
      %p83 = scmp.eq.s32.totalorder %s24, 1
      %p84 = por %p82, %p83
      %p85 = scmp.ne.s32.totalorder %s76, %s77
      %p86 = scmp.eq.s32.totalorder %s24, 0
      %p87 = por %p85, %p86
      %p88 = scmp.ne.s32.totalorder %s76, %s77
      %p89 = scmp.eq.s32.totalorder %s25, 1
      %p90 = por %p88, %p89
      %p92 = scmp.ne.s32.totalorder %s77, %s91
      %p93 = scmp.eq.s32.totalorder %s25, 0
      %p94 = por %p92, %p93
      %s96 = sadd.s32 %s95, 1
      %p99 = scmp.eq.s32.totalorder %s19, 1
      %p100 = scmp.ne.s32.totalorder %s95, %s97
      %p101 = scmp.eq.s32.totalorder %s19, 0
      %p102 = por %p100, %p101
      %p103 = scmp.ne.s32.totalorder %s95, %s97
      %p104 = scmp.eq.s32.totalorder %s24, 1
      %p105 = por %p103, %p104
      %p106 = scmp.ne.s32.totalorder %s97, %s98
      %p107 = scmp.eq.s32.totalorder %s24, 0
      %p108 = por %p106, %p107
      %p109 = scmp.ne.s32.totalorder %s97, %s98
      %p110 = scmp.eq.s32.totalorder %s25, 1
      %p111 = por %p109, %p110
      %p113 = scmp.ne.s32.totalorder %s98, %s112
      %p114 = scmp.eq.s32.totalorder %s25, 0
      %p115 = por %p113, %p114
      %s117 = sadd.s32 %s116, 1
      %p120 = scmp.eq.s32.totalorder %s19, 1
      %p121 = scmp.ne.s32.totalorder %s116, %s118
      %p122 = scmp.eq.s32.totalorder %s19, 0
      %p123 = por %p121, %p122
      %p124 = scmp.ne.s32.totalorder %s116, %s118
      %p125 = scmp.eq.s32.totalorder %s24, 1
      %p126 = por %p124, %p125
      %p127 = scmp.ne.s32.totalorder %s118, %s119
      %p128 = scmp.eq.s32.totalorder %s24, 0
      %p129 = por %p127, %p128
      %p130 = scmp.ne.s32.totalorder %s118, %s119
      %p131 = scmp.eq.s32.totalorder %s25, 1
      %p132 = por %p130, %p131
      %p134 = scmp.ne.s32.totalorder %s119, %s133
      %p135 = scmp.eq.s32.totalorder %s25, 0
      %p136 = por %p134, %p135
      %s137 = ssub.s32 %s19, %s26
      %p138 = scmp.eq.s32.totalorder %s137, 0
      %s140 = sadd.s32 %s139, 1
      %s141 = scalar_select %p138, %s139, %s140
      %p144 = pneg %p138
      %p145 = scmp.eq.s32.totalorder %s19, 1
      %p146 = por %p144, %p145
      %p147 = scmp.ne.s32.totalorder %s139, %s142
      %p148 = scmp.eq.s32.totalorder %s19, 0
      %p149 = por %p147, %p148
      %p150 = scmp.ne.s32.totalorder %s139, %s142
      %p151 = scmp.eq.s32.totalorder %s24, 1
      %p152 = por %p150, %p151
      %p153 = scmp.ne.s32.totalorder %s142, %s143
      %p154 = scmp.eq.s32.totalorder %s24, 0
      %p155 = por %p153, %p154
      %p156 = scmp.ne.s32.totalorder %s142, %s143
      %p157 = scmp.eq.s32.totalorder %s25, 1
      %p158 = por %p156, %p157
      %p160 = scmp.ne.s32.totalorder %s143, %s159
      %p161 = scmp.eq.s32.totalorder %s25, 0
      %p162 = por %p160, %p161
      %p163 = scmp.le.s32.totalorder 1, %s19
      %p164 = scmp.lt.s32.totalorder %s19, 3
      %p165 = pnand %p163, %p164
      %p166 = pneg %p165
      // Predicated region
      $region9: #{tpu_custom_call.1} parent=5 // pred_check
        _
      $region10: #{tpu_custom_call.1} parent=5 // pred_check_branch
        %168 = sbr.rel (%p165) target = $region12
      $region11: #{tpu_custom_call.1} parent=5 // pred_region
        %s169 = ssub.s32 %s19, 1
        // Predicated region
        $region13: #{tpu_custom_call.1} parent=11 // pred_check
          %p170 = pneg %p66
        $region14: #{tpu_custom_call.1} parent=11 // pred_check_branch
          %172 = sbr.rel (%p170) target = $region16
        $region15: #{tpu_custom_call.1} parent=11 // pred_region
          _
        $region16: #{tpu_custom_call.1} parent=11 // pred_fallthru
          _
        // Predicated region
        $region17: #{tpu_custom_call.1} parent=11 // pred_check
          %p173 = pneg %p87
        $region18: #{tpu_custom_call.1} parent=11 // pred_check_branch
          %175 = sbr.rel (%p173) target = $region20
        $region19: #{tpu_custom_call.1} parent=11 // pred_region
          _
        $region20: #{tpu_custom_call.1} parent=11 // pred_fallthru
          _
        // Predicated region
        $region21: #{tpu_custom_call.1} parent=11 // pred_check
          %p176 = pneg %p108
        $region22: #{tpu_custom_call.1} parent=11 // pred_check_branch
          %178 = sbr.rel (%p176) target = $region24
        $region23: #{tpu_custom_call.1} parent=11 // pred_region
          %s180 = ssub.s32 2048, 2048
          %181 = vsyncadd [#allocation7], %s180
          %s182 = sshll.u32 [#allocation6], 4
          %s183 = int_to_ptr.vmem [resolvable:$true] %s182
          %188 = dma.hbm_to_vmem [thread:$0]  %s3, 2048, %s183, [#allocation7], 128, 128, 8
        $region24: #{tpu_custom_call.1} parent=11 // pred_fallthru
          _
        // Predicated region
        $region25: #{tpu_custom_call.1} parent=11 // pred_check
          %p189 = pneg %p129
        $region26: #{tpu_custom_call.1} parent=11 // pred_check_branch
          %191 = sbr.rel (%p189) target = $region28
        $region27: #{tpu_custom_call.1} parent=11 // pred_region
          _
        $region28: #{tpu_custom_call.1} parent=11 // pred_fallthru
          _
      $region12: #{tpu_custom_call.1} parent=5 // pred_fallthru
        _
      %p192 = scmp.lt.s32.totalorder %s19, 2
      // Predicated region
      $region29: #{tpu_custom_call.1} parent=5 // pred_check
        %p193 = pneg %p192
      $region30: #{tpu_custom_call.1} parent=5 // pred_check_branch
        %195 = sbr.rel (%p193) target = $region32
      $region31: #{tpu_custom_call.1} parent=5 // pred_region
        // Predicated region
        $region33: #{tpu_custom_call.1} parent=31 // pred_check
          %p196 = pneg %p39
        $region34: #{tpu_custom_call.1} parent=31 // pred_check_branch
          %198 = sbr.rel (%p196) target = $region36
        $region35: #{tpu_custom_call.1} parent=31 // pred_region
          %s199 = sand.u32 %s29, 1
          %s200 = scalar_lea.sflag [#allocation4], %s199
          %s201 = sand.u32 %s29, 1
          %s202 = smul.addr %s201, 1024
          %s203 = scalar_lea.vmem [#allocation3], %s202
          %s204 = smul.u32 4, %s19
          %s206 = ssub.s32 16384, 16384
          %207 = vsyncadd %s200, %s206
          %s208 = smul.addr %s204, 32
          %s209 = smul.addr %s208, 128
          %s210 = scalar_lea.hbm %s0, %s209
          %s211 = sshll.u32 %s203, 4
          %s212 = int_to_ptr.vmem [resolvable:$true] %s211
          %217 = dma.hbm_to_vmem [thread:$0]  %s210, 16384, %s212, %s200, 256, 256, 16
        $region36: #{tpu_custom_call.1} parent=31 // pred_fallthru
          _
      $region32: #{tpu_custom_call.1} parent=5 // pred_fallthru
        _
      %p218 = scmp.le.s32.totalorder 1, %s19
      %p219 = scmp.lt.s32.totalorder %s19, 3
      %p220 = pnand %p218, %p219
      %p221 = pneg %p220
      // Predicated region
      $region37: #{tpu_custom_call.1} parent=5 // pred_check
        _
      $region38: #{tpu_custom_call.1} parent=5 // pred_check_branch
        %223 = sbr.rel (%p220) target = $region40
      $region39: #{tpu_custom_call.1} parent=5 // pred_region
        %s224 = ssub.s32 %s19, 1
        %s225 = sand.u32 %s32, 1
        %s226 = scalar_lea.sflag [#allocation4], %s225
        %s227 = sand.u32 %s32, 1
        %s228 = smul.addr %s227, 1024
        %s229 = scalar_lea.vmem [#allocation3], %s228
        // Predicated region
        $region41: #{tpu_custom_call.1} parent=39 // pred_check
          %p230 = pneg %p45
        $region42: #{tpu_custom_call.1} parent=39 // pred_check_branch
          %232 = sbr.rel (%p230) target = $region44
        $region43: #{tpu_custom_call.1} parent=39 // pred_region
          %233 = dma.done %s226, 16384
        $region44: #{tpu_custom_call.1} parent=39 // pred_fallthru
          _
        // Predicated region
        $region45: #{tpu_custom_call.1} parent=39 // pred_check
          %p234 = pneg %p108
        $region46: #{tpu_custom_call.1} parent=39 // pred_check_branch
          %236 = sbr.rel (%p234) target = $region48
        $region47: #{tpu_custom_call.1} parent=39 // pred_region
          %237 = dma.done [#allocation7], 2048
        $region48: #{tpu_custom_call.1} parent=39 // pred_fallthru
          _
        %s238 = sand.u32 %s32, 1
        %s239 = scalar_lea.sflag [#allocation4], %s238
        %s240 = sand.u32 %s32, 1
        %s241 = smul.addr %s240, 1024
        %s242 = scalar_lea.vmem [#allocation3], %s241
        %p243 = pneg %p45
        %p244 = pneg %p42
        %p245 = pneg %p66
        %p246 = pneg %p63
        %p247 = pneg %p87
        %p248 = pneg %p84
        %p249 = pneg %p108
        %p250 = pneg %p105
        %p251 = pneg %p129
        %p252 = pneg %p126
        %p253 = pneg %p155
        %p254 = pneg %p152
        %s255 = sand.u32 %s142, 1
        %s256 = scalar_lea.sflag [#allocation5], %s255
        %s257 = sand.u32 %s142, 1
        %s258 = smul.addr %s257, 4
        %s259 = scalar_lea.vmem [#allocation8], %s258
        %s260 = smul.u32 4, %s24
        %v261 = vld [vmem:[%s229] sm:$0xff]
        %v262 = vld [vmem:[%s229 + $0x8] sm:$0xff]
        %v263 = vld [vmem:[%s229 + $0x10] sm:$0xff]
        %v264 = vld [vmem:[%s229 + $0x18] sm:$0xff]
        %v265 = vld [vmem:[%s229 + $0x20] sm:$0xff]
        %v266 = vld [vmem:[%s229 + $0x28] sm:$0xff]
        %v267 = vld [vmem:[%s229 + $0x30] sm:$0xff]
        %v268 = vld [vmem:[%s229 + $0x38] sm:$0xff]
        %v269 = vld [vmem:[%s229 + $0x40] sm:$0xff]
        %v270 = vld [vmem:[%s229 + $0x48] sm:$0xff]
        %v271 = vld [vmem:[%s229 + $0x50] sm:$0xff]
        %v272 = vld [vmem:[%s229 + $0x58] sm:$0xff]
        %v273 = vld [vmem:[%s229 + $0x60] sm:$0xff]
        %v274 = vld [vmem:[%s229 + $0x68] sm:$0xff]
        %v275 = vld [vmem:[%s229 + $0x70] sm:$0xff]
        %v276 = vld [vmem:[%s229 + $0x78] sm:$0xff]
        %v277 = vld [vmem:[%s229 + $0x80] sm:$0xff]
        %v278 = vld [vmem:[%s229 + $0x88] sm:$0xff]
        %v279 = vld [vmem:[%s229 + $0x90] sm:$0xff]
        %v280 = vld [vmem:[%s229 + $0x98] sm:$0xff]
        %v281 = vld [vmem:[%s229 + $0xa0] sm:$0xff]
        %v282 = vld [vmem:[%s229 + $0xa8] sm:$0xff]
        %v283 = vld [vmem:[%s229 + $0xb0] sm:$0xff]
        %v284 = vld [vmem:[%s229 + $0xb8] sm:$0xff]
        %v285 = vld [vmem:[%s229 + $0xc0] sm:$0xff]
        %v286 = vld [vmem:[%s229 + $0xc8] sm:$0xff]
        %v287 = vld [vmem:[%s229 + $0xd0] sm:$0xff]
        %v288 = vld [vmem:[%s229 + $0xd8] sm:$0xff]
        %v289 = vld [vmem:[%s229 + $0xe0] sm:$0xff]
        %v290 = vld [vmem:[%s229 + $0xe8] sm:$0xff]
        %v291 = vld [vmem:[%s229 + $0xf0] sm:$0xff]
        %v292 = vld [vmem:[%s229 + $0xf8] sm:$0xff]
        %v293 = vld [vmem:[%s229 + $0x100] sm:$0xff]
        %v294 = vld [vmem:[%s229 + $0x108] sm:$0xff]
        %v295 = vld [vmem:[%s229 + $0x110] sm:$0xff]
        %v296 = vld [vmem:[%s229 + $0x118] sm:$0xff]
        %v297 = vld [vmem:[%s229 + $0x120] sm:$0xff]
        %v298 = vld [vmem:[%s229 + $0x128] sm:$0xff]
        %v299 = vld [vmem:[%s229 + $0x130] sm:$0xff]
        %v300 = vld [vmem:[%s229 + $0x138] sm:$0xff]
        %v301 = vld [vmem:[%s229 + $0x140] sm:$0xff]
        %v302 = vld [vmem:[%s229 + $0x148] sm:$0xff]
        %v303 = vld [vmem:[%s229 + $0x150] sm:$0xff]
        %v304 = vld [vmem:[%s229 + $0x158] sm:$0xff]
        %v305 = vld [vmem:[%s229 + $0x160] sm:$0xff]
        %v306 = vld [vmem:[%s229 + $0x168] sm:$0xff]
        %v307 = vld [vmem:[%s229 + $0x170] sm:$0xff]
        %v308 = vld [vmem:[%s229 + $0x178] sm:$0xff]
        %v309 = vld [vmem:[%s229 + $0x180] sm:$0xff]
        %v310 = vld [vmem:[%s229 + $0x188] sm:$0xff]
        %v311 = vld [vmem:[%s229 + $0x190] sm:$0xff]
        %v312 = vld [vmem:[%s229 + $0x198] sm:$0xff]
        %v313 = vld [vmem:[%s229 + $0x1a0] sm:$0xff]
        %v314 = vld [vmem:[%s229 + $0x1a8] sm:$0xff]
        %v315 = vld [vmem:[%s229 + $0x1b0] sm:$0xff]
        %v316 = vld [vmem:[%s229 + $0x1b8] sm:$0xff]
        %v317 = vld [vmem:[%s229 + $0x1c0] sm:$0xff]
        %v318 = vld [vmem:[%s229 + $0x1c8] sm:$0xff]
        %v319 = vld [vmem:[%s229 + $0x1d0] sm:$0xff]
        %v320 = vld [vmem:[%s229 + $0x1d8] sm:$0xff]
        %v321 = vld [vmem:[%s229 + $0x1e0] sm:$0xff]
        %v322 = vld [vmem:[%s229 + $0x1e8] sm:$0xff]
        %v323 = vld [vmem:[%s229 + $0x1f0] sm:$0xff]
        %v324 = vld [vmem:[%s229 + $0x1f8] sm:$0xff]
        %v325 = vld [vmem:[%s229 + $0x200] sm:$0xff]
        %v326 = vld [vmem:[%s229 + $0x208] sm:$0xff]
        %v327 = vld [vmem:[%s229 + $0x210] sm:$0xff]
        %v328 = vld [vmem:[%s229 + $0x218] sm:$0xff]
        %v329 = vld [vmem:[%s229 + $0x220] sm:$0xff]
        %v330 = vld [vmem:[%s229 + $0x228] sm:$0xff]
        %v331 = vld [vmem:[%s229 + $0x230] sm:$0xff]
        %v332 = vld [vmem:[%s229 + $0x238] sm:$0xff]
        %v333 = vld [vmem:[%s229 + $0x240] sm:$0xff]
        %v334 = vld [vmem:[%s229 + $0x248] sm:$0xff]
        %v335 = vld [vmem:[%s229 + $0x250] sm:$0xff]
        %v336 = vld [vmem:[%s229 + $0x258] sm:$0xff]
        %v337 = vld [vmem:[%s229 + $0x260] sm:$0xff]
        %v338 = vld [vmem:[%s229 + $0x268] sm:$0xff]
        %v339 = vld [vmem:[%s229 + $0x270] sm:$0xff]
        %v340 = vld [vmem:[%s229 + $0x278] sm:$0xff]
        %v341 = vld [vmem:[%s229 + $0x280] sm:$0xff]
        %v342 = vld [vmem:[%s229 + $0x288] sm:$0xff]
        %v343 = vld [vmem:[%s229 + $0x290] sm:$0xff]
        %v344 = vld [vmem:[%s229 + $0x298] sm:$0xff]
        %v345 = vld [vmem:[%s229 + $0x2a0] sm:$0xff]
        %v346 = vld [vmem:[%s229 + $0x2a8] sm:$0xff]
        %v347 = vld [vmem:[%s229 + $0x2b0] sm:$0xff]
        %v348 = vld [vmem:[%s229 + $0x2b8] sm:$0xff]
        %v349 = vld [vmem:[%s229 + $0x2c0] sm:$0xff]
        %v350 = vld [vmem:[%s229 + $0x2c8] sm:$0xff]
        %v351 = vld [vmem:[%s229 + $0x2d0] sm:$0xff]
        %v352 = vld [vmem:[%s229 + $0x2d8] sm:$0xff]
        %v353 = vld [vmem:[%s229 + $0x2e0] sm:$0xff]
        %v354 = vld [vmem:[%s229 + $0x2e8] sm:$0xff]
        %v355 = vld [vmem:[%s229 + $0x2f0] sm:$0xff]
        %v356 = vld [vmem:[%s229 + $0x2f8] sm:$0xff]
        %v357 = vld [vmem:[%s229 + $0x300] sm:$0xff]
        %v358 = vld [vmem:[%s229 + $0x308] sm:$0xff]
        %v359 = vld [vmem:[%s229 + $0x310] sm:$0xff]
        %v360 = vld [vmem:[%s229 + $0x318] sm:$0xff]
        %v361 = vld [vmem:[%s229 + $0x320] sm:$0xff]
        %v362 = vld [vmem:[%s229 + $0x328] sm:$0xff]
        %v363 = vld [vmem:[%s229 + $0x330] sm:$0xff]
        %v364 = vld [vmem:[%s229 + $0x338] sm:$0xff]
        %v365 = vld [vmem:[%s229 + $0x340] sm:$0xff]
        %v366 = vld [vmem:[%s229 + $0x348] sm:$0xff]
        %v367 = vld [vmem:[%s229 + $0x350] sm:$0xff]
        %v368 = vld [vmem:[%s229 + $0x358] sm:$0xff]
        %v369 = vld [vmem:[%s229 + $0x360] sm:$0xff]
        %v370 = vld [vmem:[%s229 + $0x368] sm:$0xff]
        %v371 = vld [vmem:[%s229 + $0x370] sm:$0xff]
        %v372 = vld [vmem:[%s229 + $0x378] sm:$0xff]
        %v373 = vld [vmem:[%s229 + $0x380] sm:$0xff]
        %v374 = vld [vmem:[%s229 + $0x388] sm:$0xff]
        %v375 = vld [vmem:[%s229 + $0x390] sm:$0xff]
        %v376 = vld [vmem:[%s229 + $0x398] sm:$0xff]
        %v377 = vld [vmem:[%s229 + $0x3a0] sm:$0xff]
        %v378 = vld [vmem:[%s229 + $0x3a8] sm:$0xff]
        %v379 = vld [vmem:[%s229 + $0x3b0] sm:$0xff]
        %v380 = vld [vmem:[%s229 + $0x3b8] sm:$0xff]
        %v381 = vld [vmem:[%s229 + $0x3c0] sm:$0xff]
        %v382 = vld [vmem:[%s229 + $0x3c8] sm:$0xff]
        %v383 = vld [vmem:[%s229 + $0x3d0] sm:$0xff]
        %v384 = vld [vmem:[%s229 + $0x3d8] sm:$0xff]
        %v385 = vld [vmem:[%s229 + $0x3e0] sm:$0xff]
        %v386 = vld [vmem:[%s229 + $0x3e8] sm:$0xff]
        %v387 = vld [vmem:[%s229 + $0x3f0] sm:$0xff]
        %v388 = vld [vmem:[%s229 + $0x3f8] sm:$0xff]
        %v389 = vld [vmem:[%s1] sm:$0x1]
        %s390 = sld [smem:[#allocation2]]
        %v391 = vstv %s390
        %392 = vmatprep.subr.mxu0 %v262
        %393 = vmatpush1.msra.mxu0 %v261
        %394 = vmatprep.subr.mxu0 %v264
        %395 = vmatpush1.msra.mxu0 %v263
        %396 = vmatprep.subr.mxu0 %v266
        %397 = vmatpush1.msra.mxu0 %v265
        %398 = vmatprep.subr.mxu0 %v268
        %399 = vmatpush1.msra.mxu0 %v267
        %400 = vmatprep.subr.mxu0 %v270
        %401 = vmatpush1.msra.mxu0 %v269
        %402 = vmatprep.subr.mxu0 %v272
        %403 = vmatpush1.msra.mxu0 %v271
        %404 = vmatprep.subr.mxu0 %v274
        %405 = vmatpush1.msra.mxu0 %v273
        %406 = vmatprep.subr.mxu0 %v276
        %407 = vmatpush1.msra.mxu0 %v275
        %408 = vmatprep.subr.mxu0 %v278
        %409 = vmatpush1.msra.mxu0 %v277
        %410 = vmatprep.subr.mxu0 %v280
        %411 = vmatpush1.msra.mxu0 %v279
        %412 = vmatprep.subr.mxu0 %v282
        %413 = vmatpush1.msra.mxu0 %v281
        %414 = vmatprep.subr.mxu0 %v284
        %415 = vmatpush1.msra.mxu0 %v283
        %416 = vmatprep.subr.mxu0 %v286
        %417 = vmatpush1.msra.mxu0 %v285
        %418 = vmatprep.subr.mxu0 %v288
        %419 = vmatpush1.msra.mxu0 %v287
        %420 = vmatprep.subr.mxu0 %v290
        %421 = vmatpush1.msra.mxu0 %v289
        %422 = vmatprep.subr.mxu0 %v292
        %423 = vmatpush1.msra.mxu0 %v291
        %424 = vmatprep.subr.mxu0 0.0
        %425 = vmatpush1.msra.mxu0 0.0
        %426 = vmatprep.subr.mxu0 0.0
        %427 = vmatpush1.msra.mxu0 0.0
        %428 = vmatprep.subr.mxu0 0.0
        %429 = vmatpush1.msra.mxu0 0.0
        %430 = vmatprep.subr.mxu0 0.0
        %431 = vmatpush1.msra.mxu0 0.0
        %432 = vmatprep.subr.mxu0 0.0
        %433 = vmatpush1.msra.mxu0 0.0
        %434 = vmatprep.subr.mxu0 0.0
        %435 = vmatpush1.msra.mxu0 0.0
        %436 = vmatprep.subr.mxu0 0.0
        %437 = vmatpush1.msra.mxu0 0.0
        %438 = vmatprep.subr.mxu0 0.0
        %439 = vmatpush1.msra.mxu0 0.0
        %440 = vmatprep.subr.mxu0 0.0
        %441 = vmatpush1.msra.mxu0 0.0
        %442 = vmatprep.subr.mxu0 0.0
        %443 = vmatpush1.msra.mxu0 0.0
        %444 = vmatprep.subr.mxu0 0.0
        %445 = vmatpush1.msra.mxu0 0.0
        %446 = vmatprep.subr.mxu0 0.0
        %447 = vmatpush1.msra.mxu0 0.0
        %448 = vmatprep.subr.mxu0 0.0
        %449 = vmatpush1.msra.mxu0 0.0
        %450 = vmatprep.subr.mxu0 0.0
        %451 = vmatpush1.msra.mxu0 0.0
        %452 = vmatprep.subr.mxu0 0.0
        %453 = vmatpush1.msra.mxu0 0.0
        %454 = vmatprep.subr.mxu0 0.0
        %455 = vmatpush1.msra.mxu0 0.0
        %456 = vmatprep.mubr.f32.mxu0 0.0
        %457 = vmatmul.mubr.f32.gmra.mrb[0].mxu0 %v389
        %v458 = vpop.f32.mrb[0].mxu0
        %v459 = vadd.f32 %v391, %v458
        %v460 = vpop.f32.mrb[0].mxu0
        %v461 = vadd.f32 %v391, %v460
        %462 = vdwg.mxu0
        %463 = vmatprep.subr.mxu0 %v294
        %464 = vmatpush1.msra.mxu0 %v293
        %465 = vmatprep.subr.mxu0 %v296
        %466 = vmatpush1.msra.mxu0 %v295
        %467 = vmatprep.subr.mxu0 %v298
        %468 = vmatpush1.msra.mxu0 %v297
        %469 = vmatprep.subr.mxu0 %v300
        %470 = vmatpush1.msra.mxu0 %v299
        %471 = vmatprep.subr.mxu0 %v302
        %472 = vmatpush1.msra.mxu0 %v301
        %473 = vmatprep.subr.mxu0 %v304
        %474 = vmatpush1.msra.mxu0 %v303
        %475 = vmatprep.subr.mxu0 %v306
        %476 = vmatpush1.msra.mxu0 %v305
        %477 = vmatprep.subr.mxu0 %v308
        %478 = vmatpush1.msra.mxu0 %v307
        %479 = vmatprep.subr.mxu0 %v310
        %480 = vmatpush1.msra.mxu0 %v309
        %481 = vmatprep.subr.mxu0 %v312
        %482 = vmatpush1.msra.mxu0 %v311
        %483 = vmatprep.subr.mxu0 %v314
        %484 = vmatpush1.msra.mxu0 %v313
        %485 = vmatprep.subr.mxu0 %v316
        %486 = vmatpush1.msra.mxu0 %v315
        %487 = vmatprep.subr.mxu0 %v318
        %488 = vmatpush1.msra.mxu0 %v317
        %489 = vmatprep.subr.mxu0 %v320
        %490 = vmatpush1.msra.mxu0 %v319
        %491 = vmatprep.subr.mxu0 %v322
        %492 = vmatpush1.msra.mxu0 %v321
        %493 = vmatprep.subr.mxu0 %v324
        %494 = vmatpush1.msra.mxu0 %v323
        %495 = vmatprep.subr.mxu0 0.0
        %496 = vmatpush1.msra.mxu0 0.0
        %497 = vmatprep.subr.mxu0 0.0
        %498 = vmatpush1.msra.mxu0 0.0
        %499 = vmatprep.subr.mxu0 0.0
        %500 = vmatpush1.msra.mxu0 0.0
        %501 = vmatprep.subr.mxu0 0.0
        %502 = vmatpush1.msra.mxu0 0.0
        %503 = vmatprep.subr.mxu0 0.0
        %504 = vmatpush1.msra.mxu0 0.0
        %505 = vmatprep.subr.mxu0 0.0
        %506 = vmatpush1.msra.mxu0 0.0
        %507 = vmatprep.subr.mxu0 0.0
        %508 = vmatpush1.msra.mxu0 0.0
        %509 = vmatprep.subr.mxu0 0.0
        %510 = vmatpush1.msra.mxu0 0.0
        %511 = vmatprep.subr.mxu0 0.0
        %512 = vmatpush1.msra.mxu0 0.0
        %513 = vmatprep.subr.mxu0 0.0
        %514 = vmatpush1.msra.mxu0 0.0
        %515 = vmatprep.subr.mxu0 0.0
        %516 = vmatpush1.msra.mxu0 0.0
        %517 = vmatprep.subr.mxu0 0.0
        %518 = vmatpush1.msra.mxu0 0.0
        %519 = vmatprep.subr.mxu0 0.0
        %520 = vmatpush1.msra.mxu0 0.0
        %521 = vmatprep.subr.mxu0 0.0
        %522 = vmatpush1.msra.mxu0 0.0
        %523 = vmatprep.subr.mxu0 0.0
        %524 = vmatpush1.msra.mxu0 0.0
        %525 = vmatprep.subr.mxu0 0.0
        %526 = vmatpush1.msra.mxu0 0.0
        %527 = vmatprep.mubr.f32.mxu0 0.0
        %528 = vmatmul.mubr.f32.gmra.mrb[0].mxu0 %v389
        %v529 = vpop.f32.mrb[0].mxu0
        %v530 = vadd.f32 %v391, %v529
        %v531 = vpop.f32.mrb[0].mxu0
        %v532 = vadd.f32 %v391, %v531
        %533 = vdwg.mxu0
        %534 = vmatprep.subr.mxu0 %v326
        %535 = vmatpush1.msra.mxu0 %v325
        %536 = vmatprep.subr.mxu0 %v328
        %537 = vmatpush1.msra.mxu0 %v327
        %538 = vmatprep.subr.mxu0 %v330
        %539 = vmatpush1.msra.mxu0 %v329
        %540 = vmatprep.subr.mxu0 %v332
        %541 = vmatpush1.msra.mxu0 %v331
        %542 = vmatprep.subr.mxu0 %v334
        %543 = vmatpush1.msra.mxu0 %v333
        %544 = vmatprep.subr.mxu0 %v336
        %545 = vmatpush1.msra.mxu0 %v335
        %546 = vmatprep.subr.mxu0 %v338
        %547 = vmatpush1.msra.mxu0 %v337
        %548 = vmatprep.subr.mxu0 %v340
        %549 = vmatpush1.msra.mxu0 %v339
        %550 = vmatprep.subr.mxu0 %v342
        %551 = vmatpush1.msra.mxu0 %v341
        %552 = vmatprep.subr.mxu0 %v344
        %553 = vmatpush1.msra.mxu0 %v343
        %554 = vmatprep.subr.mxu0 %v346
        %555 = vmatpush1.msra.mxu0 %v345
        %556 = vmatprep.subr.mxu0 %v348
        %557 = vmatpush1.msra.mxu0 %v347
        %558 = vmatprep.subr.mxu0 %v350
        %559 = vmatpush1.msra.mxu0 %v349
        %560 = vmatprep.subr.mxu0 %v352
        %561 = vmatpush1.msra.mxu0 %v351
        %562 = vmatprep.subr.mxu0 %v354
        %563 = vmatpush1.msra.mxu0 %v353
        %564 = vmatprep.subr.mxu0 %v356
        %565 = vmatpush1.msra.mxu0 %v355
        %566 = vmatprep.subr.mxu0 0.0
        %567 = vmatpush1.msra.mxu0 0.0
        %568 = vmatprep.subr.mxu0 0.0
        %569 = vmatpush1.msra.mxu0 0.0
        %570 = vmatprep.subr.mxu0 0.0
        %571 = vmatpush1.msra.mxu0 0.0
        %572 = vmatprep.subr.mxu0 0.0
        %573 = vmatpush1.msra.mxu0 0.0
        %574 = vmatprep.subr.mxu0 0.0
        %575 = vmatpush1.msra.mxu0 0.0
        %576 = vmatprep.subr.mxu0 0.0
        %577 = vmatpush1.msra.mxu0 0.0
        %578 = vmatprep.subr.mxu0 0.0
        %579 = vmatpush1.msra.mxu0 0.0
        %580 = vmatprep.subr.mxu0 0.0
        %581 = vmatpush1.msra.mxu0 0.0
        %582 = vmatprep.subr.mxu0 0.0
        %583 = vmatpush1.msra.mxu0 0.0
        %584 = vmatprep.subr.mxu0 0.0
        %585 = vmatpush1.msra.mxu0 0.0
        %586 = vmatprep.subr.mxu0 0.0
        %587 = vmatpush1.msra.mxu0 0.0
        %588 = vmatprep.subr.mxu0 0.0
        %589 = vmatpush1.msra.mxu0 0.0
        %590 = vmatprep.subr.mxu0 0.0
        %591 = vmatpush1.msra.mxu0 0.0
        %592 = vmatprep.subr.mxu0 0.0
        %593 = vmatpush1.msra.mxu0 0.0
        %594 = vmatprep.subr.mxu0 0.0
        %595 = vmatpush1.msra.mxu0 0.0
        %596 = vmatprep.subr.mxu0 0.0
        %597 = vmatpush1.msra.mxu0 0.0
        %598 = vmatprep.mubr.f32.mxu0 0.0
        %599 = vmatmul.mubr.f32.gmra.mrb[0].mxu0 %v389
        %v600 = vpop.f32.mrb[0].mxu0
        %v601 = vadd.f32 %v391, %v600
        %v602 = vpop.f32.mrb[0].mxu0
        %v603 = vadd.f32 %v391, %v602
        %604 = vdwg.mxu0
        %605 = vmatprep.subr.mxu0 %v358
        %606 = vmatpush1.msra.mxu0 %v357
        %607 = vmatprep.subr.mxu0 %v360
        %608 = vmatpush1.msra.mxu0 %v359
        %609 = vmatprep.subr.mxu0 %v362
        %610 = vmatpush1.msra.mxu0 %v361
        %611 = vmatprep.subr.mxu0 %v364
        %612 = vmatpush1.msra.mxu0 %v363
        %613 = vmatprep.subr.mxu0 %v366
        %614 = vmatpush1.msra.mxu0 %v365
        %615 = vmatprep.subr.mxu0 %v368
        %616 = vmatpush1.msra.mxu0 %v367
        %617 = vmatprep.subr.mxu0 %v370
        %618 = vmatpush1.msra.mxu0 %v369
        %619 = vmatprep.subr.mxu0 %v372
        %620 = vmatpush1.msra.mxu0 %v371
        %621 = vmatprep.subr.mxu0 %v374
        %622 = vmatpush1.msra.mxu0 %v373
        %623 = vmatprep.subr.mxu0 %v376
        %624 = vmatpush1.msra.mxu0 %v375
        %625 = vmatprep.subr.mxu0 %v378
        %626 = vmatpush1.msra.mxu0 %v377
        %627 = vmatprep.subr.mxu0 %v380
        %628 = vmatpush1.msra.mxu0 %v379
        %629 = vmatprep.subr.mxu0 %v382
        %630 = vmatpush1.msra.mxu0 %v381
        %631 = vmatprep.subr.mxu0 %v384
        %632 = vmatpush1.msra.mxu0 %v383
        %633 = vmatprep.subr.mxu0 %v386
        %634 = vmatpush1.msra.mxu0 %v385
        %635 = vmatprep.subr.mxu0 %v388
        %636 = vmatpush1.msra.mxu0 %v387
        %637 = vmatprep.subr.mxu0 0.0
        %638 = vmatpush1.msra.mxu0 0.0
        %639 = vmatprep.subr.mxu0 0.0
        %640 = vmatpush1.msra.mxu0 0.0
        %641 = vmatprep.subr.mxu0 0.0
        %642 = vmatpush1.msra.mxu0 0.0
        %643 = vmatprep.subr.mxu0 0.0
        %644 = vmatpush1.msra.mxu0 0.0
        %645 = vmatprep.subr.mxu0 0.0
        %646 = vmatpush1.msra.mxu0 0.0
        %647 = vmatprep.subr.mxu0 0.0
        %648 = vmatpush1.msra.mxu0 0.0
        %649 = vmatprep.subr.mxu0 0.0
        %650 = vmatpush1.msra.mxu0 0.0
        %651 = vmatprep.subr.mxu0 0.0
        %652 = vmatpush1.msra.mxu0 0.0
        %653 = vmatprep.subr.mxu0 0.0
        %654 = vmatpush1.msra.mxu0 0.0
        %655 = vmatprep.subr.mxu0 0.0
        %656 = vmatpush1.msra.mxu0 0.0
        %657 = vmatprep.subr.mxu0 0.0
        %658 = vmatpush1.msra.mxu0 0.0
        %659 = vmatprep.subr.mxu0 0.0
        %660 = vmatpush1.msra.mxu0 0.0
        %661 = vmatprep.subr.mxu0 0.0
        %662 = vmatpush1.msra.mxu0 0.0
        %663 = vmatprep.subr.mxu0 0.0
        %664 = vmatpush1.msra.mxu0 0.0
        %665 = vmatprep.subr.mxu0 0.0
        %666 = vmatpush1.msra.mxu0 0.0
        %667 = vmatprep.subr.mxu0 0.0
        %668 = vmatpush1.msra.mxu0 0.0
        %669 = vmatprep.mubr.f32.mxu0 0.0
        %670 = vmatmul.mubr.f32.gmra.mrb[0].mxu0 %v389
        %v671 = vpop.f32.mrb[0].mxu0
        %v672 = vadd.f32 %v391, %v671
        %v673 = vpop.f32.mrb[0].mxu0
        %v674 = vadd.f32 %v391, %v673
        %675 = vdwg.mxu0
        %vm684 = vcmp.ge.s32.totalorder %v459, 0
        %vm685 = vcmp.ge.s32.totalorder %v461, 0
        %vm686 = vcmp.ge.s32.totalorder %v530, 0
        %vm687 = vcmp.ge.s32.totalorder %v532, 0
        %vm688 = vcmp.ge.s32.totalorder %v601, 0
        %vm689 = vcmp.ge.s32.totalorder %v603, 0
        %vm690 = vcmp.ge.s32.totalorder %v672, 0
        %vm691 = vcmp.ge.s32.totalorder %v674, 0
        %v692 = vxor.u32 %v459, 2147483647
        %v693 = vxor.u32 %v461, 2147483647
        %v694 = vxor.u32 %v530, 2147483647
        %v695 = vxor.u32 %v532, 2147483647
        %v696 = vxor.u32 %v601, 2147483647
        %v697 = vxor.u32 %v603, 2147483647
        %v698 = vxor.u32 %v672, 2147483647
        %v699 = vxor.u32 %v674, 2147483647
        %v700 = vsel %vm684, %v459, %v692
        %v701 = vsel %vm685, %v461, %v693
        %v702 = vsel %vm686, %v530, %v694
        %v703 = vsel %vm687, %v532, %v695
        %v704 = vsel %vm688, %v601, %v696
        %v705 = vsel %vm689, %v603, %v697
        %v706 = vsel %vm690, %v672, %v698
        %v707 = vsel %vm691, %v674, %v699
        %vm708 = vcmp.ge.s32.totalorder %v700, 0
        %vm709 = vcmp.ge.s32.totalorder %v701, 0
        %vm710 = vcmp.ge.s32.totalorder %v702, 0
        %vm711 = vcmp.ge.s32.totalorder %v703, 0
        %vm712 = vcmp.ge.s32.totalorder %v704, 0
        %vm713 = vcmp.ge.s32.totalorder %v705, 0
        %vm714 = vcmp.ge.s32.totalorder %v706, 0
        %vm715 = vcmp.ge.s32.totalorder %v707, 0
        %v716 = vsel %vm708, 1, 0
        %v717 = vsel %vm709, 1, 0
        %v718 = vsel %vm710, 1, 0
        %v719 = vsel %vm711, 1, 0
        %v720 = vsel %vm712, 1, 0
        %v721 = vsel %vm713, 1, 0
        %v722 = vsel %vm714, 1, 0
        %v723 = vsel %vm715, 1, 0
        %vm724 = vcmask 1040384
        %v725 = vsel %vm724, %v716, 0
        %v726 = vsel %vm724, %v717, 0
        %v727 = vadd.s32 %v725, %v726
        %v728 = vand.u32 %v727, 65535
        %v729 = vshrl.u32 %v727, 16
        %v730 = vcvt.s32.f32 %v728
        %v731 = vcvt.s32.f32 %v729
        %732 = vadd.xlane.f32.xlu0 %v730
        %v733 = vpop.xlane.xlu0 %732
        %734 = vadd.xlane.f32.xlu0 %v731
        %v735 = vpop.xlane.xlu0 %734
        %v736 = vcvt.f32.s32 %v733
        %v737 = vcvt.f32.s32 %v735
        %v738 = vshll.u32 %v737, 16
        %v739 = vadd.s32 %v738, %v736
        %v740 = vsel %vm724, %v718, 0
        %v741 = vsel %vm724, %v719, 0
        %v742 = vadd.s32 %v740, %v741
        %v743 = vand.u32 %v742, 65535
        %v744 = vshrl.u32 %v742, 16
        %v745 = vcvt.s32.f32 %v743
        %v746 = vcvt.s32.f32 %v744
        %747 = vadd.xlane.f32.xlu0 %v745
        %v748 = vpop.xlane.xlu0 %747
        %749 = vadd.xlane.f32.xlu0 %v746
        %v750 = vpop.xlane.xlu0 %749
        %v751 = vcvt.f32.s32 %v748
        %v752 = vcvt.f32.s32 %v750
        %v753 = vshll.u32 %v752, 16
        %v754 = vadd.s32 %v753, %v751
        %v755 = vsel %vm724, %v720, 0
        %v756 = vsel %vm724, %v721, 0
        %v757 = vadd.s32 %v755, %v756
        %v758 = vand.u32 %v757, 65535
        %v759 = vshrl.u32 %v757, 16
        %v760 = vcvt.s32.f32 %v758
        %v761 = vcvt.s32.f32 %v759
        %762 = vadd.xlane.f32.xlu0 %v760
        %v763 = vpop.xlane.xlu0 %762
        %764 = vadd.xlane.f32.xlu0 %v761
        %v765 = vpop.xlane.xlu0 %764
        %v766 = vcvt.f32.s32 %v763
        %v767 = vcvt.f32.s32 %v765
        %v768 = vshll.u32 %v767, 16
        %v769 = vadd.s32 %v768, %v766
        %v770 = vsel %vm724, %v722, 0
        %v771 = vsel %vm724, %v723, 0
        %v772 = vadd.s32 %v770, %v771
        %v773 = vand.u32 %v772, 65535
        %v774 = vshrl.u32 %v772, 16
        %v775 = vcvt.s32.f32 %v773
        %v776 = vcvt.s32.f32 %v774
        %777 = vadd.xlane.f32.xlu0 %v775
        %v778 = vpop.xlane.xlu0 %777
        %779 = vadd.xlane.f32.xlu0 %v776
        %v780 = vpop.xlane.xlu0 %779
        %v781 = vcvt.f32.s32 %v778
        %v782 = vcvt.f32.s32 %v780
        %v783 = vshll.u32 %v782, 16
        %v784 = vadd.s32 %v783, %v781
        %vm785 = vcmp.ge.s32.totalorder %v739, 76
        %vm786 = vcmp.ge.s32.totalorder %v754, 76
        %vm787 = vcmp.ge.s32.totalorder %v769, 76
        %vm788 = vcmp.ge.s32.totalorder %v784, 76
        %v789 = vsel %vm785, 0, 2147483648
        %v790 = vsel %vm786, 0, 2147483648
        %v791 = vsel %vm787, 0, 2147483648
        %v792 = vsel %vm788, 0, 2147483648
        %v793 = vadd.s32 %v789, 1073741824
        %v794 = vadd.s32 %v790, 1073741824
        %v795 = vadd.s32 %v791, 1073741824
        %v796 = vadd.s32 %v792, 1073741824
        %vm797 = vcmp.ge.s32.totalorder %v700, %v793
        %vm798 = vcmp.ge.s32.totalorder %v701, %v793
        %vm799 = vcmp.ge.s32.totalorder %v702, %v794
        %vm800 = vcmp.ge.s32.totalorder %v703, %v794
        %vm801 = vcmp.ge.s32.totalorder %v704, %v795
        %vm802 = vcmp.ge.s32.totalorder %v705, %v795
        %vm803 = vcmp.ge.s32.totalorder %v706, %v796
        %vm804 = vcmp.ge.s32.totalorder %v707, %v796
        %v805 = vsel %vm797, 1, 0
        %v806 = vsel %vm798, 1, 0
        %v807 = vsel %vm799, 1, 0
        %v808 = vsel %vm800, 1, 0
        %v809 = vsel %vm801, 1, 0
        %v810 = vsel %vm802, 1, 0
        %v811 = vsel %vm803, 1, 0
        %v812 = vsel %vm804, 1, 0
        %v813 = vsel %vm724, %v805, 0
        %v814 = vsel %vm724, %v806, 0
        %v815 = vadd.s32 %v813, %v814
        %v816 = vand.u32 %v815, 65535
        %v817 = vshrl.u32 %v815, 16
        %v818 = vcvt.s32.f32 %v816
        %v819 = vcvt.s32.f32 %v817
        %820 = vadd.xlane.f32.xlu0 %v818
        %v821 = vpop.xlane.xlu0 %820
        %822 = vadd.xlane.f32.xlu0 %v819
        %v823 = vpop.xlane.xlu0 %822
        %v824 = vcvt.f32.s32 %v821
        %v825 = vcvt.f32.s32 %v823
        %v826 = vshll.u32 %v825, 16
        %v827 = vadd.s32 %v826, %v824
        %v828 = vsel %vm724, %v807, 0
        %v829 = vsel %vm724, %v808, 0
        %v830 = vadd.s32 %v828, %v829
        %v831 = vand.u32 %v830, 65535
        %v832 = vshrl.u32 %v830, 16
        %v833 = vcvt.s32.f32 %v831
        %v834 = vcvt.s32.f32 %v832
        %835 = vadd.xlane.f32.xlu0 %v833
        %v836 = vpop.xlane.xlu0 %835
        %837 = vadd.xlane.f32.xlu0 %v834
        %v838 = vpop.xlane.xlu0 %837
        %v839 = vcvt.f32.s32 %v836
        %v840 = vcvt.f32.s32 %v838
        %v841 = vshll.u32 %v840, 16
        %v842 = vadd.s32 %v841, %v839
        %v843 = vsel %vm724, %v809, 0
        %v844 = vsel %vm724, %v810, 0
        %v845 = vadd.s32 %v843, %v844
        %v846 = vand.u32 %v845, 65535
        %v847 = vshrl.u32 %v845, 16
        %v848 = vcvt.s32.f32 %v846
        %v849 = vcvt.s32.f32 %v847
        %850 = vadd.xlane.f32.xlu0 %v848
        %v851 = vpop.xlane.xlu0 %850
        %852 = vadd.xlane.f32.xlu0 %v849
        %v853 = vpop.xlane.xlu0 %852
        %v854 = vcvt.f32.s32 %v851
        %v855 = vcvt.f32.s32 %v853
        %v856 = vshll.u32 %v855, 16
        %v857 = vadd.s32 %v856, %v854
        %v858 = vsel %vm724, %v811, 0
        %v859 = vsel %vm724, %v812, 0
        %v860 = vadd.s32 %v858, %v859
        %v861 = vand.u32 %v860, 65535
        %v862 = vshrl.u32 %v860, 16
        %v863 = vcvt.s32.f32 %v861
        %v864 = vcvt.s32.f32 %v862
        %865 = vadd.xlane.f32.xlu0 %v863
        %v866 = vpop.xlane.xlu0 %865
        %867 = vadd.xlane.f32.xlu0 %v864
        %v868 = vpop.xlane.xlu0 %867
        %v869 = vcvt.f32.s32 %v866
        %v870 = vcvt.f32.s32 %v868
        %v871 = vshll.u32 %v870, 16
        %v872 = vadd.s32 %v871, %v869
        %vm873 = vcmp.ge.s32.totalorder %v827, 76
        %vm874 = vcmp.ge.s32.totalorder %v842, 76
        %vm875 = vcmp.ge.s32.totalorder %v857, 76
        %vm876 = vcmp.ge.s32.totalorder %v872, 76
        %v877 = vsel %vm873, %v793, %v789
        %v878 = vsel %vm874, %v794, %v790
        %v879 = vsel %vm875, %v795, %v791
        %v880 = vsel %vm876, %v796, %v792
        %v881 = vadd.s32 %v877, 536870912
        %v882 = vadd.s32 %v878, 536870912
        %v883 = vadd.s32 %v879, 536870912
        %v884 = vadd.s32 %v880, 536870912
        %vm885 = vcmp.ge.s32.totalorder %v700, %v881
        %vm886 = vcmp.ge.s32.totalorder %v701, %v881
        %vm887 = vcmp.ge.s32.totalorder %v702, %v882
        %vm888 = vcmp.ge.s32.totalorder %v703, %v882
        %vm889 = vcmp.ge.s32.totalorder %v704, %v883
        %vm890 = vcmp.ge.s32.totalorder %v705, %v883
        %vm891 = vcmp.ge.s32.totalorder %v706, %v884
        %vm892 = vcmp.ge.s32.totalorder %v707, %v884
        %v893 = vsel %vm885, 1, 0
        %v894 = vsel %vm886, 1, 0
        %v895 = vsel %vm887, 1, 0
        %v896 = vsel %vm888, 1, 0
        %v897 = vsel %vm889, 1, 0
        %v898 = vsel %vm890, 1, 0
        %v899 = vsel %vm891, 1, 0
        %v900 = vsel %vm892, 1, 0
        %v901 = vsel %vm724, %v893, 0
        %v902 = vsel %vm724, %v894, 0
        %v903 = vadd.s32 %v901, %v902
        %v904 = vand.u32 %v903, 65535
        %v905 = vshrl.u32 %v903, 16
        %v906 = vcvt.s32.f32 %v904
        %v907 = vcvt.s32.f32 %v905
        %908 = vadd.xlane.f32.xlu0 %v906
        %v909 = vpop.xlane.xlu0 %908
        %910 = vadd.xlane.f32.xlu0 %v907
        %v911 = vpop.xlane.xlu0 %910
        %v912 = vcvt.f32.s32 %v909
        %v913 = vcvt.f32.s32 %v911
        %v914 = vshll.u32 %v913, 16
        %v915 = vadd.s32 %v914, %v912
        %v916 = vsel %vm724, %v895, 0
        %v917 = vsel %vm724, %v896, 0
        %v918 = vadd.s32 %v916, %v917
        %v919 = vand.u32 %v918, 65535
        %v920 = vshrl.u32 %v918, 16
        %v921 = vcvt.s32.f32 %v919
        %v922 = vcvt.s32.f32 %v920
        %923 = vadd.xlane.f32.xlu0 %v921
        %v924 = vpop.xlane.xlu0 %923
        %925 = vadd.xlane.f32.xlu0 %v922
        %v926 = vpop.xlane.xlu0 %925
        %v927 = vcvt.f32.s32 %v924
        %v928 = vcvt.f32.s32 %v926
        %v929 = vshll.u32 %v928, 16
        %v930 = vadd.s32 %v929, %v927
        %v931 = vsel %vm724, %v897, 0
        %v932 = vsel %vm724, %v898, 0
        %v933 = vadd.s32 %v931, %v932
        %v934 = vand.u32 %v933, 65535
        %v935 = vshrl.u32 %v933, 16
        %v936 = vcvt.s32.f32 %v934
        %v937 = vcvt.s32.f32 %v935
        %938 = vadd.xlane.f32.xlu0 %v936
        %v939 = vpop.xlane.xlu0 %938
        %940 = vadd.xlane.f32.xlu0 %v937
        %v941 = vpop.xlane.xlu0 %940
        %v942 = vcvt.f32.s32 %v939
        %v943 = vcvt.f32.s32 %v941
        %v944 = vshll.u32 %v943, 16
        %v945 = vadd.s32 %v944, %v942
        %v946 = vsel %vm724, %v899, 0
        %v947 = vsel %vm724, %v900, 0
        %v948 = vadd.s32 %v946, %v947
        %v949 = vand.u32 %v948, 65535
        %v950 = vshrl.u32 %v948, 16
        %v951 = vcvt.s32.f32 %v949
        %v952 = vcvt.s32.f32 %v950
        %953 = vadd.xlane.f32.xlu0 %v951
        %v954 = vpop.xlane.xlu0 %953
        %955 = vadd.xlane.f32.xlu0 %v952
        %v956 = vpop.xlane.xlu0 %955
        %v957 = vcvt.f32.s32 %v954
        %v958 = vcvt.f32.s32 %v956
        %v959 = vshll.u32 %v958, 16
        %v960 = vadd.s32 %v959, %v957
        %vm961 = vcmp.ge.s32.totalorder %v915, 76
        %vm962 = vcmp.ge.s32.totalorder %v930, 76
        %vm963 = vcmp.ge.s32.totalorder %v945, 76
        %vm964 = vcmp.ge.s32.totalorder %v960, 76
        %v965 = vsel %vm961, %v881, %v877
        %v966 = vsel %vm962, %v882, %v878
        %v967 = vsel %vm963, %v883, %v879
        %v968 = vsel %vm964, %v884, %v880
        %v969 = vadd.s32 %v965, 268435456
        %v970 = vadd.s32 %v966, 268435456
        %v971 = vadd.s32 %v967, 268435456
        %v972 = vadd.s32 %v968, 268435456
        %vm973 = vcmp.ge.s32.totalorder %v700, %v969
        %vm974 = vcmp.ge.s32.totalorder %v701, %v969
        %vm975 = vcmp.ge.s32.totalorder %v702, %v970
        %vm976 = vcmp.ge.s32.totalorder %v703, %v970
        %vm977 = vcmp.ge.s32.totalorder %v704, %v971
        %vm978 = vcmp.ge.s32.totalorder %v705, %v971
        %vm979 = vcmp.ge.s32.totalorder %v706, %v972
        %vm980 = vcmp.ge.s32.totalorder %v707, %v972
        %v981 = vsel %vm973, 1, 0
        %v982 = vsel %vm974, 1, 0
        %v983 = vsel %vm975, 1, 0
        %v984 = vsel %vm976, 1, 0
        %v985 = vsel %vm977, 1, 0
        %v986 = vsel %vm978, 1, 0
        %v987 = vsel %vm979, 1, 0
        %v988 = vsel %vm980, 1, 0
        %v989 = vsel %vm724, %v981, 0
        %v990 = vsel %vm724, %v982, 0
        %v991 = vadd.s32 %v989, %v990
        %v992 = vand.u32 %v991, 65535
        %v993 = vshrl.u32 %v991, 16
        %v994 = vcvt.s32.f32 %v992
        %v995 = vcvt.s32.f32 %v993
        %996 = vadd.xlane.f32.xlu0 %v994
        %v997 = vpop.xlane.xlu0 %996
        %998 = vadd.xlane.f32.xlu0 %v995
        %v999 = vpop.xlane.xlu0 %998
        %v1000 = vcvt.f32.s32 %v997
        %v1001 = vcvt.f32.s32 %v999
        %v1002 = vshll.u32 %v1001, 16
        %v1003 = vadd.s32 %v1002, %v1000
        %v1004 = vsel %vm724, %v983, 0
        %v1005 = vsel %vm724, %v984, 0
        %v1006 = vadd.s32 %v1004, %v1005
        %v1007 = vand.u32 %v1006, 65535
        %v1008 = vshrl.u32 %v1006, 16
        %v1009 = vcvt.s32.f32 %v1007
        %v1010 = vcvt.s32.f32 %v1008
        %1011 = vadd.xlane.f32.xlu0 %v1009
        %v1012 = vpop.xlane.xlu0 %1011
        %1013 = vadd.xlane.f32.xlu0 %v1010
        %v1014 = vpop.xlane.xlu0 %1013
        %v1015 = vcvt.f32.s32 %v1012
        %v1016 = vcvt.f32.s32 %v1014
        %v1017 = vshll.u32 %v1016, 16
        %v1018 = vadd.s32 %v1017, %v1015
        %v1019 = vsel %vm724, %v985, 0
        %v1020 = vsel %vm724, %v986, 0
        %v1021 = vadd.s32 %v1019, %v1020
        %v1022 = vand.u32 %v1021, 65535
        %v1023 = vshrl.u32 %v1021, 16
        %v1024 = vcvt.s32.f32 %v1022
        %v1025 = vcvt.s32.f32 %v1023
        %1026 = vadd.xlane.f32.xlu0 %v1024
        %v1027 = vpop.xlane.xlu0 %1026
        %1028 = vadd.xlane.f32.xlu0 %v1025
        %v1029 = vpop.xlane.xlu0 %1028
        %v1030 = vcvt.f32.s32 %v1027
        %v1031 = vcvt.f32.s32 %v1029
        %v1032 = vshll.u32 %v1031, 16
        %v1033 = vadd.s32 %v1032, %v1030
        %v1034 = vsel %vm724, %v987, 0
        %v1035 = vsel %vm724, %v988, 0
        %v1036 = vadd.s32 %v1034, %v1035
        %v1037 = vand.u32 %v1036, 65535
        %v1038 = vshrl.u32 %v1036, 16
        %v1039 = vcvt.s32.f32 %v1037
        %v1040 = vcvt.s32.f32 %v1038
        %1041 = vadd.xlane.f32.xlu0 %v1039
        %v1042 = vpop.xlane.xlu0 %1041
        %1043 = vadd.xlane.f32.xlu0 %v1040
        %v1044 = vpop.xlane.xlu0 %1043
        %v1045 = vcvt.f32.s32 %v1042
        %v1046 = vcvt.f32.s32 %v1044
        %v1047 = vshll.u32 %v1046, 16
        %v1048 = vadd.s32 %v1047, %v1045
        %vm1049 = vcmp.ge.s32.totalorder %v1003, 76
        %vm1050 = vcmp.ge.s32.totalorder %v1018, 76
        %vm1051 = vcmp.ge.s32.totalorder %v1033, 76
        %vm1052 = vcmp.ge.s32.totalorder %v1048, 76
        %v1053 = vsel %vm1049, %v969, %v965
        %v1054 = vsel %vm1050, %v970, %v966
        %v1055 = vsel %vm1051, %v971, %v967
        %v1056 = vsel %vm1052, %v972, %v968
        %v1057 = vadd.s32 %v1053, 134217728
        %v1058 = vadd.s32 %v1054, 134217728
        %v1059 = vadd.s32 %v1055, 134217728
        %v1060 = vadd.s32 %v1056, 134217728
        %vm1061 = vcmp.ge.s32.totalorder %v700, %v1057
        %vm1062 = vcmp.ge.s32.totalorder %v701, %v1057
        %vm1063 = vcmp.ge.s32.totalorder %v702, %v1058
        %vm1064 = vcmp.ge.s32.totalorder %v703, %v1058
        %vm1065 = vcmp.ge.s32.totalorder %v704, %v1059
        %vm1066 = vcmp.ge.s32.totalorder %v705, %v1059
        %vm1067 = vcmp.ge.s32.totalorder %v706, %v1060
        %vm1068 = vcmp.ge.s32.totalorder %v707, %v1060
        %v1069 = vsel %vm1061, 1, 0
        %v1070 = vsel %vm1062, 1, 0
        %v1071 = vsel %vm1063, 1, 0
        %v1072 = vsel %vm1064, 1, 0
        %v1073 = vsel %vm1065, 1, 0
        %v1074 = vsel %vm1066, 1, 0
        %v1075 = vsel %vm1067, 1, 0
        %v1076 = vsel %vm1068, 1, 0
        %v1077 = vsel %vm724, %v1069, 0
        %v1078 = vsel %vm724, %v1070, 0
        %v1079 = vadd.s32 %v1077, %v1078
        %v1080 = vand.u32 %v1079, 65535
        %v1081 = vshrl.u32 %v1079, 16
        %v1082 = vcvt.s32.f32 %v1080
        %v1083 = vcvt.s32.f32 %v1081
        %1084 = vadd.xlane.f32.xlu0 %v1082
        %v1085 = vpop.xlane.xlu0 %1084
        %1086 = vadd.xlane.f32.xlu0 %v1083
        %v1087 = vpop.xlane.xlu0 %1086
        %v1088 = vcvt.f32.s32 %v1085
        %v1089 = vcvt.f32.s32 %v1087
        %v1090 = vshll.u32 %v1089, 16
        %v1091 = vadd.s32 %v1090, %v1088
        %v1092 = vsel %vm724, %v1071, 0
        %v1093 = vsel %vm724, %v1072, 0
        %v1094 = vadd.s32 %v1092, %v1093
        %v1095 = vand.u32 %v1094, 65535
        %v1096 = vshrl.u32 %v1094, 16
        %v1097 = vcvt.s32.f32 %v1095
        %v1098 = vcvt.s32.f32 %v1096
        %1099 = vadd.xlane.f32.xlu0 %v1097
        %v1100 = vpop.xlane.xlu0 %1099
        %1101 = vadd.xlane.f32.xlu0 %v1098
        %v1102 = vpop.xlane.xlu0 %1101
        %v1103 = vcvt.f32.s32 %v1100
        %v1104 = vcvt.f32.s32 %v1102
        %v1105 = vshll.u32 %v1104, 16
        %v1106 = vadd.s32 %v1105, %v1103
        %v1107 = vsel %vm724, %v1073, 0
        %v1108 = vsel %vm724, %v1074, 0
        %v1109 = vadd.s32 %v1107, %v1108
        %v1110 = vand.u32 %v1109, 65535
        %v1111 = vshrl.u32 %v1109, 16
        %v1112 = vcvt.s32.f32 %v1110
        %v1113 = vcvt.s32.f32 %v1111
        %1114 = vadd.xlane.f32.xlu0 %v1112
        %v1115 = vpop.xlane.xlu0 %1114
        %1116 = vadd.xlane.f32.xlu0 %v1113
        %v1117 = vpop.xlane.xlu0 %1116
        %v1118 = vcvt.f32.s32 %v1115
        %v1119 = vcvt.f32.s32 %v1117
        %v1120 = vshll.u32 %v1119, 16
        %v1121 = vadd.s32 %v1120, %v1118
        %v1122 = vsel %vm724, %v1075, 0
        %v1123 = vsel %vm724, %v1076, 0
        %v1124 = vadd.s32 %v1122, %v1123
        %v1125 = vand.u32 %v1124, 65535
        %v1126 = vshrl.u32 %v1124, 16
        %v1127 = vcvt.s32.f32 %v1125
        %v1128 = vcvt.s32.f32 %v1126
        %1129 = vadd.xlane.f32.xlu0 %v1127
        %v1130 = vpop.xlane.xlu0 %1129
        %1131 = vadd.xlane.f32.xlu0 %v1128
        %v1132 = vpop.xlane.xlu0 %1131
        %v1133 = vcvt.f32.s32 %v1130
        %v1134 = vcvt.f32.s32 %v1132
        %v1135 = vshll.u32 %v1134, 16
        %v1136 = vadd.s32 %v1135, %v1133
        %vm1137 = vcmp.ge.s32.totalorder %v1091, 76
        %vm1138 = vcmp.ge.s32.totalorder %v1106, 76
        %vm1139 = vcmp.ge.s32.totalorder %v1121, 76
        %vm1140 = vcmp.ge.s32.totalorder %v1136, 76
        %v1141 = vsel %vm1137, %v1057, %v1053
        %v1142 = vsel %vm1138, %v1058, %v1054
        %v1143 = vsel %vm1139, %v1059, %v1055
        %v1144 = vsel %vm1140, %v1060, %v1056
        %v1145 = vadd.s32 %v1141, 67108864
        %v1146 = vadd.s32 %v1142, 67108864
        %v1147 = vadd.s32 %v1143, 67108864
        %v1148 = vadd.s32 %v1144, 67108864
        %vm1149 = vcmp.ge.s32.totalorder %v700, %v1145
        %vm1150 = vcmp.ge.s32.totalorder %v701, %v1145
        %vm1151 = vcmp.ge.s32.totalorder %v702, %v1146
        %vm1152 = vcmp.ge.s32.totalorder %v703, %v1146
        %vm1153 = vcmp.ge.s32.totalorder %v704, %v1147
        %vm1154 = vcmp.ge.s32.totalorder %v705, %v1147
        %vm1155 = vcmp.ge.s32.totalorder %v706, %v1148
        %vm1156 = vcmp.ge.s32.totalorder %v707, %v1148
        %v1157 = vsel %vm1149, 1, 0
        %v1158 = vsel %vm1150, 1, 0
        %v1159 = vsel %vm1151, 1, 0
        %v1160 = vsel %vm1152, 1, 0
        %v1161 = vsel %vm1153, 1, 0
        %v1162 = vsel %vm1154, 1, 0
        %v1163 = vsel %vm1155, 1, 0
        %v1164 = vsel %vm1156, 1, 0
        %v1165 = vsel %vm724, %v1157, 0
        %v1166 = vsel %vm724, %v1158, 0
        %v1167 = vadd.s32 %v1165, %v1166
        %v1168 = vand.u32 %v1167, 65535
        %v1169 = vshrl.u32 %v1167, 16
        %v1170 = vcvt.s32.f32 %v1168
        %v1171 = vcvt.s32.f32 %v1169
        %1172 = vadd.xlane.f32.xlu0 %v1170
        %v1173 = vpop.xlane.xlu0 %1172
        %1174 = vadd.xlane.f32.xlu0 %v1171
        %v1175 = vpop.xlane.xlu0 %1174
        %v1176 = vcvt.f32.s32 %v1173
        %v1177 = vcvt.f32.s32 %v1175
        %v1178 = vshll.u32 %v1177, 16
        %v1179 = vadd.s32 %v1178, %v1176
        %v1180 = vsel %vm724, %v1159, 0
        %v1181 = vsel %vm724, %v1160, 0
        %v1182 = vadd.s32 %v1180, %v1181
        %v1183 = vand.u32 %v1182, 65535
        %v1184 = vshrl.u32 %v1182, 16
        %v1185 = vcvt.s32.f32 %v1183
        %v1186 = vcvt.s32.f32 %v1184
        %1187 = vadd.xlane.f32.xlu0 %v1185
        %v1188 = vpop.xlane.xlu0 %1187
        %1189 = vadd.xlane.f32.xlu0 %v1186
        %v1190 = vpop.xlane.xlu0 %1189
        %v1191 = vcvt.f32.s32 %v1188
        %v1192 = vcvt.f32.s32 %v1190
        %v1193 = vshll.u32 %v1192, 16
        %v1194 = vadd.s32 %v1193, %v1191
        %v1195 = vsel %vm724, %v1161, 0
        %v1196 = vsel %vm724, %v1162, 0
        %v1197 = vadd.s32 %v1195, %v1196
        %v1198 = vand.u32 %v1197, 65535
        %v1199 = vshrl.u32 %v1197, 16
        %v1200 = vcvt.s32.f32 %v1198
        %v1201 = vcvt.s32.f32 %v1199
        %1202 = vadd.xlane.f32.xlu0 %v1200
        %v1203 = vpop.xlane.xlu0 %1202
        %1204 = vadd.xlane.f32.xlu0 %v1201
        %v1205 = vpop.xlane.xlu0 %1204
        %v1206 = vcvt.f32.s32 %v1203
        %v1207 = vcvt.f32.s32 %v1205
        %v1208 = vshll.u32 %v1207, 16
        %v1209 = vadd.s32 %v1208, %v1206
        %v1210 = vsel %vm724, %v1163, 0
        %v1211 = vsel %vm724, %v1164, 0
        %v1212 = vadd.s32 %v1210, %v1211
        %v1213 = vand.u32 %v1212, 65535
        %v1214 = vshrl.u32 %v1212, 16
        %v1215 = vcvt.s32.f32 %v1213
        %v1216 = vcvt.s32.f32 %v1214
        %1217 = vadd.xlane.f32.xlu0 %v1215
        %v1218 = vpop.xlane.xlu0 %1217
        %1219 = vadd.xlane.f32.xlu0 %v1216
        %v1220 = vpop.xlane.xlu0 %1219
        %v1221 = vcvt.f32.s32 %v1218
        %v1222 = vcvt.f32.s32 %v1220
        %v1223 = vshll.u32 %v1222, 16
        %v1224 = vadd.s32 %v1223, %v1221
        %vm1225 = vcmp.ge.s32.totalorder %v1179, 76
        %vm1226 = vcmp.ge.s32.totalorder %v1194, 76
        %vm1227 = vcmp.ge.s32.totalorder %v1209, 76
        %vm1228 = vcmp.ge.s32.totalorder %v1224, 76
        %v1229 = vsel %vm1225, %v1145, %v1141
        %v1230 = vsel %vm1226, %v1146, %v1142
        %v1231 = vsel %vm1227, %v1147, %v1143
        %v1232 = vsel %vm1228, %v1148, %v1144
        %v1233 = vadd.s32 %v1229, 33554432
        %v1234 = vadd.s32 %v1230, 33554432
        %v1235 = vadd.s32 %v1231, 33554432
        %v1236 = vadd.s32 %v1232, 33554432
        %vm1237 = vcmp.ge.s32.totalorder %v700, %v1233
        %vm1238 = vcmp.ge.s32.totalorder %v701, %v1233
        %vm1239 = vcmp.ge.s32.totalorder %v702, %v1234
        %vm1240 = vcmp.ge.s32.totalorder %v703, %v1234
        %vm1241 = vcmp.ge.s32.totalorder %v704, %v1235
        %vm1242 = vcmp.ge.s32.totalorder %v705, %v1235
        %vm1243 = vcmp.ge.s32.totalorder %v706, %v1236
        %vm1244 = vcmp.ge.s32.totalorder %v707, %v1236
        %v1245 = vsel %vm1237, 1, 0
        %v1246 = vsel %vm1238, 1, 0
        %v1247 = vsel %vm1239, 1, 0
        %v1248 = vsel %vm1240, 1, 0
        %v1249 = vsel %vm1241, 1, 0
        %v1250 = vsel %vm1242, 1, 0
        %v1251 = vsel %vm1243, 1, 0
        %v1252 = vsel %vm1244, 1, 0
        %v1253 = vsel %vm724, %v1245, 0
        %v1254 = vsel %vm724, %v1246, 0
        %v1255 = vadd.s32 %v1253, %v1254
        %v1256 = vand.u32 %v1255, 65535
        %v1257 = vshrl.u32 %v1255, 16
        %v1258 = vcvt.s32.f32 %v1256
        %v1259 = vcvt.s32.f32 %v1257
        %1260 = vadd.xlane.f32.xlu0 %v1258
        %v1261 = vpop.xlane.xlu0 %1260
        %1262 = vadd.xlane.f32.xlu0 %v1259
        %v1263 = vpop.xlane.xlu0 %1262
        %v1264 = vcvt.f32.s32 %v1261
        %v1265 = vcvt.f32.s32 %v1263
        %v1266 = vshll.u32 %v1265, 16
        %v1267 = vadd.s32 %v1266, %v1264
        %v1268 = vsel %vm724, %v1247, 0
        %v1269 = vsel %vm724, %v1248, 0
        %v1270 = vadd.s32 %v1268, %v1269
        %v1271 = vand.u32 %v1270, 65535
        %v1272 = vshrl.u32 %v1270, 16
        %v1273 = vcvt.s32.f32 %v1271
        %v1274 = vcvt.s32.f32 %v1272
        %1275 = vadd.xlane.f32.xlu0 %v1273
        %v1276 = vpop.xlane.xlu0 %1275
        %1277 = vadd.xlane.f32.xlu0 %v1274
        %v1278 = vpop.xlane.xlu0 %1277
        %v1279 = vcvt.f32.s32 %v1276
        %v1280 = vcvt.f32.s32 %v1278
        %v1281 = vshll.u32 %v1280, 16
        %v1282 = vadd.s32 %v1281, %v1279
        %v1283 = vsel %vm724, %v1249, 0
        %v1284 = vsel %vm724, %v1250, 0
        %v1285 = vadd.s32 %v1283, %v1284
        %v1286 = vand.u32 %v1285, 65535
        %v1287 = vshrl.u32 %v1285, 16
        %v1288 = vcvt.s32.f32 %v1286
        %v1289 = vcvt.s32.f32 %v1287
        %1290 = vadd.xlane.f32.xlu0 %v1288
        %v1291 = vpop.xlane.xlu0 %1290
        %1292 = vadd.xlane.f32.xlu0 %v1289
        %v1293 = vpop.xlane.xlu0 %1292
        %v1294 = vcvt.f32.s32 %v1291
        %v1295 = vcvt.f32.s32 %v1293
        %v1296 = vshll.u32 %v1295, 16
        %v1297 = vadd.s32 %v1296, %v1294
        %v1298 = vsel %vm724, %v1251, 0
        %v1299 = vsel %vm724, %v1252, 0
        %v1300 = vadd.s32 %v1298, %v1299
        %v1301 = vand.u32 %v1300, 65535
        %v1302 = vshrl.u32 %v1300, 16
        %v1303 = vcvt.s32.f32 %v1301
        %v1304 = vcvt.s32.f32 %v1302
        %1305 = vadd.xlane.f32.xlu0 %v1303
        %v1306 = vpop.xlane.xlu0 %1305
        %1307 = vadd.xlane.f32.xlu0 %v1304
        %v1308 = vpop.xlane.xlu0 %1307
        %v1309 = vcvt.f32.s32 %v1306
        %v1310 = vcvt.f32.s32 %v1308
        %v1311 = vshll.u32 %v1310, 16
        %v1312 = vadd.s32 %v1311, %v1309
        %vm1313 = vcmp.ge.s32.totalorder %v1267, 76
        %vm1314 = vcmp.ge.s32.totalorder %v1282, 76
        %vm1315 = vcmp.ge.s32.totalorder %v1297, 76
        %vm1316 = vcmp.ge.s32.totalorder %v1312, 76
        %v1317 = vsel %vm1313, %v1233, %v1229
        %v1318 = vsel %vm1314, %v1234, %v1230
        %v1319 = vsel %vm1315, %v1235, %v1231
        %v1320 = vsel %vm1316, %v1236, %v1232
        %v1321 = vadd.s32 %v1317, 16777216
        %v1322 = vadd.s32 %v1318, 16777216
        %v1323 = vadd.s32 %v1319, 16777216
        %v1324 = vadd.s32 %v1320, 16777216
        %vm1325 = vcmp.ge.s32.totalorder %v700, %v1321
        %vm1326 = vcmp.ge.s32.totalorder %v701, %v1321
        %vm1327 = vcmp.ge.s32.totalorder %v702, %v1322
        %vm1328 = vcmp.ge.s32.totalorder %v703, %v1322
        %vm1329 = vcmp.ge.s32.totalorder %v704, %v1323
        %vm1330 = vcmp.ge.s32.totalorder %v705, %v1323
        %vm1331 = vcmp.ge.s32.totalorder %v706, %v1324
        %vm1332 = vcmp.ge.s32.totalorder %v707, %v1324
        %v1333 = vsel %vm1325, 1, 0
        %v1334 = vsel %vm1326, 1, 0
        %v1335 = vsel %vm1327, 1, 0
        %v1336 = vsel %vm1328, 1, 0
        %v1337 = vsel %vm1329, 1, 0
        %v1338 = vsel %vm1330, 1, 0
        %v1339 = vsel %vm1331, 1, 0
        %v1340 = vsel %vm1332, 1, 0
        %v1341 = vsel %vm724, %v1333, 0
        %v1342 = vsel %vm724, %v1334, 0
        %v1343 = vadd.s32 %v1341, %v1342
        %v1344 = vand.u32 %v1343, 65535
        %v1345 = vshrl.u32 %v1343, 16
        %v1346 = vcvt.s32.f32 %v1344
        %v1347 = vcvt.s32.f32 %v1345
        %1348 = vadd.xlane.f32.xlu0 %v1346
        %v1349 = vpop.xlane.xlu0 %1348
        %1350 = vadd.xlane.f32.xlu0 %v1347
        %v1351 = vpop.xlane.xlu0 %1350
        %v1352 = vcvt.f32.s32 %v1349
        %v1353 = vcvt.f32.s32 %v1351
        %v1354 = vshll.u32 %v1353, 16
        %v1355 = vadd.s32 %v1354, %v1352
        %v1356 = vsel %vm724, %v1335, 0
        %v1357 = vsel %vm724, %v1336, 0
        %v1358 = vadd.s32 %v1356, %v1357
        %v1359 = vand.u32 %v1358, 65535
        %v1360 = vshrl.u32 %v1358, 16
        %v1361 = vcvt.s32.f32 %v1359
        %v1362 = vcvt.s32.f32 %v1360
        %1363 = vadd.xlane.f32.xlu0 %v1361
        %v1364 = vpop.xlane.xlu0 %1363
        %1365 = vadd.xlane.f32.xlu0 %v1362
        %v1366 = vpop.xlane.xlu0 %1365
        %v1367 = vcvt.f32.s32 %v1364
        %v1368 = vcvt.f32.s32 %v1366
        %v1369 = vshll.u32 %v1368, 16
        %v1370 = vadd.s32 %v1369, %v1367
        %v1371 = vsel %vm724, %v1337, 0
        %v1372 = vsel %vm724, %v1338, 0
        %v1373 = vadd.s32 %v1371, %v1372
        %v1374 = vand.u32 %v1373, 65535
        %v1375 = vshrl.u32 %v1373, 16
        %v1376 = vcvt.s32.f32 %v1374
        %v1377 = vcvt.s32.f32 %v1375
        %1378 = vadd.xlane.f32.xlu0 %v1376
        %v1379 = vpop.xlane.xlu0 %1378
        %1380 = vadd.xlane.f32.xlu0 %v1377
        %v1381 = vpop.xlane.xlu0 %1380
        %v1382 = vcvt.f32.s32 %v1379
        %v1383 = vcvt.f32.s32 %v1381
        %v1384 = vshll.u32 %v1383, 16
        %v1385 = vadd.s32 %v1384, %v1382
        %v1386 = vsel %vm724, %v1339, 0
        %v1387 = vsel %vm724, %v1340, 0
        %v1388 = vadd.s32 %v1386, %v1387
        %v1389 = vand.u32 %v1388, 65535
        %v1390 = vshrl.u32 %v1388, 16
        %v1391 = vcvt.s32.f32 %v1389
        %v1392 = vcvt.s32.f32 %v1390
        %1393 = vadd.xlane.f32.xlu0 %v1391
        %v1394 = vpop.xlane.xlu0 %1393
        %1395 = vadd.xlane.f32.xlu0 %v1392
        %v1396 = vpop.xlane.xlu0 %1395
        %v1397 = vcvt.f32.s32 %v1394
        %v1398 = vcvt.f32.s32 %v1396
        %v1399 = vshll.u32 %v1398, 16
        %v1400 = vadd.s32 %v1399, %v1397
        %vm1401 = vcmp.ge.s32.totalorder %v1355, 76
        %vm1402 = vcmp.ge.s32.totalorder %v1370, 76
        %vm1403 = vcmp.ge.s32.totalorder %v1385, 76
        %vm1404 = vcmp.ge.s32.totalorder %v1400, 76
        %v1405 = vsel %vm1401, %v1321, %v1317
        %v1406 = vsel %vm1402, %v1322, %v1318
        %v1407 = vsel %vm1403, %v1323, %v1319
        %v1408 = vsel %vm1404, %v1324, %v1320
        %v1409 = vadd.s32 %v1405, 8388608
        %v1410 = vadd.s32 %v1406, 8388608
        %v1411 = vadd.s32 %v1407, 8388608
        %v1412 = vadd.s32 %v1408, 8388608
        %vm1413 = vcmp.ge.s32.totalorder %v700, %v1409
        %vm1414 = vcmp.ge.s32.totalorder %v701, %v1409
        %vm1415 = vcmp.ge.s32.totalorder %v702, %v1410
        %vm1416 = vcmp.ge.s32.totalorder %v703, %v1410
        %vm1417 = vcmp.ge.s32.totalorder %v704, %v1411
        %vm1418 = vcmp.ge.s32.totalorder %v705, %v1411
        %vm1419 = vcmp.ge.s32.totalorder %v706, %v1412
        %vm1420 = vcmp.ge.s32.totalorder %v707, %v1412
        %v1421 = vsel %vm1413, 1, 0
        %v1422 = vsel %vm1414, 1, 0
        %v1423 = vsel %vm1415, 1, 0
        %v1424 = vsel %vm1416, 1, 0
        %v1425 = vsel %vm1417, 1, 0
        %v1426 = vsel %vm1418, 1, 0
        %v1427 = vsel %vm1419, 1, 0
        %v1428 = vsel %vm1420, 1, 0
        %v1429 = vsel %vm724, %v1421, 0
        %v1430 = vsel %vm724, %v1422, 0
        %v1431 = vadd.s32 %v1429, %v1430
        %v1432 = vand.u32 %v1431, 65535
        %v1433 = vshrl.u32 %v1431, 16
        %v1434 = vcvt.s32.f32 %v1432
        %v1435 = vcvt.s32.f32 %v1433
        %1436 = vadd.xlane.f32.xlu0 %v1434
        %v1437 = vpop.xlane.xlu0 %1436
        %1438 = vadd.xlane.f32.xlu0 %v1435
        %v1439 = vpop.xlane.xlu0 %1438
        %v1440 = vcvt.f32.s32 %v1437
        %v1441 = vcvt.f32.s32 %v1439
        %v1442 = vshll.u32 %v1441, 16
        %v1443 = vadd.s32 %v1442, %v1440
        %v1444 = vsel %vm724, %v1423, 0
        %v1445 = vsel %vm724, %v1424, 0
        %v1446 = vadd.s32 %v1444, %v1445
        %v1447 = vand.u32 %v1446, 65535
        %v1448 = vshrl.u32 %v1446, 16
        %v1449 = vcvt.s32.f32 %v1447
        %v1450 = vcvt.s32.f32 %v1448
        %1451 = vadd.xlane.f32.xlu0 %v1449
        %v1452 = vpop.xlane.xlu0 %1451
        %1453 = vadd.xlane.f32.xlu0 %v1450
        %v1454 = vpop.xlane.xlu0 %1453
        %v1455 = vcvt.f32.s32 %v1452
        %v1456 = vcvt.f32.s32 %v1454
        %v1457 = vshll.u32 %v1456, 16
        %v1458 = vadd.s32 %v1457, %v1455
        %v1459 = vsel %vm724, %v1425, 0
        %v1460 = vsel %vm724, %v1426, 0
        %v1461 = vadd.s32 %v1459, %v1460
        %v1462 = vand.u32 %v1461, 65535
        %v1463 = vshrl.u32 %v1461, 16
        %v1464 = vcvt.s32.f32 %v1462
        %v1465 = vcvt.s32.f32 %v1463
        %1466 = vadd.xlane.f32.xlu0 %v1464
        %v1467 = vpop.xlane.xlu0 %1466
        %1468 = vadd.xlane.f32.xlu0 %v1465
        %v1469 = vpop.xlane.xlu0 %1468
        %v1470 = vcvt.f32.s32 %v1467
        %v1471 = vcvt.f32.s32 %v1469
        %v1472 = vshll.u32 %v1471, 16
        %v1473 = vadd.s32 %v1472, %v1470
        %v1474 = vsel %vm724, %v1427, 0
        %v1475 = vsel %vm724, %v1428, 0
        %v1476 = vadd.s32 %v1474, %v1475
        %v1477 = vand.u32 %v1476, 65535
        %v1478 = vshrl.u32 %v1476, 16
        %v1479 = vcvt.s32.f32 %v1477
        %v1480 = vcvt.s32.f32 %v1478
        %1481 = vadd.xlane.f32.xlu0 %v1479
        %v1482 = vpop.xlane.xlu0 %1481
        %1483 = vadd.xlane.f32.xlu0 %v1480
        %v1484 = vpop.xlane.xlu0 %1483
        %v1485 = vcvt.f32.s32 %v1482
        %v1486 = vcvt.f32.s32 %v1484
        %v1487 = vshll.u32 %v1486, 16
        %v1488 = vadd.s32 %v1487, %v1485
        %vm1489 = vcmp.ge.s32.totalorder %v1443, 76
        %vm1490 = vcmp.ge.s32.totalorder %v1458, 76
        %vm1491 = vcmp.ge.s32.totalorder %v1473, 76
        %vm1492 = vcmp.ge.s32.totalorder %v1488, 76
        %v1493 = vsel %vm1489, %v1409, %v1405
        %v1494 = vsel %vm1490, %v1410, %v1406
        %v1495 = vsel %vm1491, %v1411, %v1407
        %v1496 = vsel %vm1492, %v1412, %v1408
        %v1497 = vadd.s32 %v1493, 4194304
        %v1498 = vadd.s32 %v1494, 4194304
        %v1499 = vadd.s32 %v1495, 4194304
        %v1500 = vadd.s32 %v1496, 4194304
        %vm1501 = vcmp.ge.s32.totalorder %v700, %v1497
        %vm1502 = vcmp.ge.s32.totalorder %v701, %v1497
        %vm1503 = vcmp.ge.s32.totalorder %v702, %v1498
        %vm1504 = vcmp.ge.s32.totalorder %v703, %v1498
        %vm1505 = vcmp.ge.s32.totalorder %v704, %v1499
        %vm1506 = vcmp.ge.s32.totalorder %v705, %v1499
        %vm1507 = vcmp.ge.s32.totalorder %v706, %v1500
        %vm1508 = vcmp.ge.s32.totalorder %v707, %v1500
        %v1509 = vsel %vm1501, 1, 0
        %v1510 = vsel %vm1502, 1, 0
        %v1511 = vsel %vm1503, 1, 0
        %v1512 = vsel %vm1504, 1, 0
        %v1513 = vsel %vm1505, 1, 0
        %v1514 = vsel %vm1506, 1, 0
        %v1515 = vsel %vm1507, 1, 0
        %v1516 = vsel %vm1508, 1, 0
        %v1517 = vsel %vm724, %v1509, 0
        %v1518 = vsel %vm724, %v1510, 0
        %v1519 = vadd.s32 %v1517, %v1518
        %v1520 = vand.u32 %v1519, 65535
        %v1521 = vshrl.u32 %v1519, 16
        %v1522 = vcvt.s32.f32 %v1520
        %v1523 = vcvt.s32.f32 %v1521
        %1524 = vadd.xlane.f32.xlu0 %v1522
        %v1525 = vpop.xlane.xlu0 %1524
        %1526 = vadd.xlane.f32.xlu0 %v1523
        %v1527 = vpop.xlane.xlu0 %1526
        %v1528 = vcvt.f32.s32 %v1525
        %v1529 = vcvt.f32.s32 %v1527
        %v1530 = vshll.u32 %v1529, 16
        %v1531 = vadd.s32 %v1530, %v1528
        %v1532 = vsel %vm724, %v1511, 0
        %v1533 = vsel %vm724, %v1512, 0
        %v1534 = vadd.s32 %v1532, %v1533
        %v1535 = vand.u32 %v1534, 65535
        %v1536 = vshrl.u32 %v1534, 16
        %v1537 = vcvt.s32.f32 %v1535
        %v1538 = vcvt.s32.f32 %v1536
        %1539 = vadd.xlane.f32.xlu0 %v1537
        %v1540 = vpop.xlane.xlu0 %1539
        %1541 = vadd.xlane.f32.xlu0 %v1538
        %v1542 = vpop.xlane.xlu0 %1541
        %v1543 = vcvt.f32.s32 %v1540
        %v1544 = vcvt.f32.s32 %v1542
        %v1545 = vshll.u32 %v1544, 16
        %v1546 = vadd.s32 %v1545, %v1543
        %v1547 = vsel %vm724, %v1513, 0
        %v1548 = vsel %vm724, %v1514, 0
        %v1549 = vadd.s32 %v1547, %v1548
        %v1550 = vand.u32 %v1549, 65535
        %v1551 = vshrl.u32 %v1549, 16
        %v1552 = vcvt.s32.f32 %v1550
        %v1553 = vcvt.s32.f32 %v1551
        %1554 = vadd.xlane.f32.xlu0 %v1552
        %v1555 = vpop.xlane.xlu0 %1554
        %1556 = vadd.xlane.f32.xlu0 %v1553
        %v1557 = vpop.xlane.xlu0 %1556
        %v1558 = vcvt.f32.s32 %v1555
        %v1559 = vcvt.f32.s32 %v1557
        %v1560 = vshll.u32 %v1559, 16
        %v1561 = vadd.s32 %v1560, %v1558
        %v1562 = vsel %vm724, %v1515, 0
        %v1563 = vsel %vm724, %v1516, 0
        %v1564 = vadd.s32 %v1562, %v1563
        %v1565 = vand.u32 %v1564, 65535
        %v1566 = vshrl.u32 %v1564, 16
        %v1567 = vcvt.s32.f32 %v1565
        %v1568 = vcvt.s32.f32 %v1566
        %1569 = vadd.xlane.f32.xlu0 %v1567
        %v1570 = vpop.xlane.xlu0 %1569
        %1571 = vadd.xlane.f32.xlu0 %v1568
        %v1572 = vpop.xlane.xlu0 %1571
        %v1573 = vcvt.f32.s32 %v1570
        %v1574 = vcvt.f32.s32 %v1572
        %v1575 = vshll.u32 %v1574, 16
        %v1576 = vadd.s32 %v1575, %v1573
        %vm1577 = vcmp.ge.s32.totalorder %v1531, 76
        %vm1578 = vcmp.ge.s32.totalorder %v1546, 76
        %vm1579 = vcmp.ge.s32.totalorder %v1561, 76
        %vm1580 = vcmp.ge.s32.totalorder %v1576, 76
        %v1581 = vsel %vm1577, %v1497, %v1493
        %v1582 = vsel %vm1578, %v1498, %v1494
        %v1583 = vsel %vm1579, %v1499, %v1495
        %v1584 = vsel %vm1580, %v1500, %v1496
        %v1585 = vadd.s32 %v1581, 2097152
        %v1586 = vadd.s32 %v1582, 2097152
        %v1587 = vadd.s32 %v1583, 2097152
        %v1588 = vadd.s32 %v1584, 2097152
        %vm1589 = vcmp.ge.s32.totalorder %v700, %v1585
        %vm1590 = vcmp.ge.s32.totalorder %v701, %v1585
        %vm1591 = vcmp.ge.s32.totalorder %v702, %v1586
        %vm1592 = vcmp.ge.s32.totalorder %v703, %v1586
        %vm1593 = vcmp.ge.s32.totalorder %v704, %v1587
        %vm1594 = vcmp.ge.s32.totalorder %v705, %v1587
        %vm1595 = vcmp.ge.s32.totalorder %v706, %v1588
        %vm1596 = vcmp.ge.s32.totalorder %v707, %v1588
        %v1597 = vsel %vm1589, 1, 0
        %v1598 = vsel %vm1590, 1, 0
        %v1599 = vsel %vm1591, 1, 0
        %v1600 = vsel %vm1592, 1, 0
        %v1601 = vsel %vm1593, 1, 0
        %v1602 = vsel %vm1594, 1, 0
        %v1603 = vsel %vm1595, 1, 0
        %v1604 = vsel %vm1596, 1, 0
        %v1605 = vsel %vm724, %v1597, 0
        %v1606 = vsel %vm724, %v1598, 0
        %v1607 = vadd.s32 %v1605, %v1606
        %v1608 = vand.u32 %v1607, 65535
        %v1609 = vshrl.u32 %v1607, 16
        %v1610 = vcvt.s32.f32 %v1608
        %v1611 = vcvt.s32.f32 %v1609
        %1612 = vadd.xlane.f32.xlu0 %v1610
        %v1613 = vpop.xlane.xlu0 %1612
        %1614 = vadd.xlane.f32.xlu0 %v1611
        %v1615 = vpop.xlane.xlu0 %1614
        %v1616 = vcvt.f32.s32 %v1613
        %v1617 = vcvt.f32.s32 %v1615
        %v1618 = vshll.u32 %v1617, 16
        %v1619 = vadd.s32 %v1618, %v1616
        %v1620 = vsel %vm724, %v1599, 0
        %v1621 = vsel %vm724, %v1600, 0
        %v1622 = vadd.s32 %v1620, %v1621
        %v1623 = vand.u32 %v1622, 65535
        %v1624 = vshrl.u32 %v1622, 16
        %v1625 = vcvt.s32.f32 %v1623
        %v1626 = vcvt.s32.f32 %v1624
        %1627 = vadd.xlane.f32.xlu0 %v1625
        %v1628 = vpop.xlane.xlu0 %1627
        %1629 = vadd.xlane.f32.xlu0 %v1626
        %v1630 = vpop.xlane.xlu0 %1629
        %v1631 = vcvt.f32.s32 %v1628
        %v1632 = vcvt.f32.s32 %v1630
        %v1633 = vshll.u32 %v1632, 16
        %v1634 = vadd.s32 %v1633, %v1631
        %v1635 = vsel %vm724, %v1601, 0
        %v1636 = vsel %vm724, %v1602, 0
        %v1637 = vadd.s32 %v1635, %v1636
        %v1638 = vand.u32 %v1637, 65535
        %v1639 = vshrl.u32 %v1637, 16
        %v1640 = vcvt.s32.f32 %v1638
        %v1641 = vcvt.s32.f32 %v1639
        %1642 = vadd.xlane.f32.xlu0 %v1640
        %v1643 = vpop.xlane.xlu0 %1642
        %1644 = vadd.xlane.f32.xlu0 %v1641
        %v1645 = vpop.xlane.xlu0 %1644
        %v1646 = vcvt.f32.s32 %v1643
        %v1647 = vcvt.f32.s32 %v1645
        %v1648 = vshll.u32 %v1647, 16
        %v1649 = vadd.s32 %v1648, %v1646
        %v1650 = vsel %vm724, %v1603, 0
        %v1651 = vsel %vm724, %v1604, 0
        %v1652 = vadd.s32 %v1650, %v1651
        %v1653 = vand.u32 %v1652, 65535
        %v1654 = vshrl.u32 %v1652, 16
        %v1655 = vcvt.s32.f32 %v1653
        %v1656 = vcvt.s32.f32 %v1654
        %1657 = vadd.xlane.f32.xlu0 %v1655
        %v1658 = vpop.xlane.xlu0 %1657
        %1659 = vadd.xlane.f32.xlu0 %v1656
        %v1660 = vpop.xlane.xlu0 %1659
        %v1661 = vcvt.f32.s32 %v1658
        %v1662 = vcvt.f32.s32 %v1660
        %v1663 = vshll.u32 %v1662, 16
        %v1664 = vadd.s32 %v1663, %v1661
        %vm1665 = vcmp.ge.s32.totalorder %v1619, 76
        %vm1666 = vcmp.ge.s32.totalorder %v1634, 76
        %vm1667 = vcmp.ge.s32.totalorder %v1649, 76
        %vm1668 = vcmp.ge.s32.totalorder %v1664, 76
        %v1669 = vsel %vm1665, %v1585, %v1581
        %v1670 = vsel %vm1666, %v1586, %v1582
        %v1671 = vsel %vm1667, %v1587, %v1583
        %v1672 = vsel %vm1668, %v1588, %v1584
        %v1673 = vadd.s32 %v1669, 1048576
        %v1674 = vadd.s32 %v1670, 1048576
        %v1675 = vadd.s32 %v1671, 1048576
        %v1676 = vadd.s32 %v1672, 1048576
        %vm1677 = vcmp.ge.s32.totalorder %v700, %v1673
        %vm1678 = vcmp.ge.s32.totalorder %v701, %v1673
        %vm1679 = vcmp.ge.s32.totalorder %v702, %v1674
        %vm1680 = vcmp.ge.s32.totalorder %v703, %v1674
        %vm1681 = vcmp.ge.s32.totalorder %v704, %v1675
        %vm1682 = vcmp.ge.s32.totalorder %v705, %v1675
        %vm1683 = vcmp.ge.s32.totalorder %v706, %v1676
        %vm1684 = vcmp.ge.s32.totalorder %v707, %v1676
        %v1685 = vsel %vm1677, 1, 0
        %v1686 = vsel %vm1678, 1, 0
        %v1687 = vsel %vm1679, 1, 0
        %v1688 = vsel %vm1680, 1, 0
        %v1689 = vsel %vm1681, 1, 0
        %v1690 = vsel %vm1682, 1, 0
        %v1691 = vsel %vm1683, 1, 0
        %v1692 = vsel %vm1684, 1, 0
        %v1693 = vsel %vm724, %v1685, 0
        %v1694 = vsel %vm724, %v1686, 0
        %v1695 = vadd.s32 %v1693, %v1694
        %v1696 = vand.u32 %v1695, 65535
        %v1697 = vshrl.u32 %v1695, 16
        %v1698 = vcvt.s32.f32 %v1696
        %v1699 = vcvt.s32.f32 %v1697
        %1700 = vadd.xlane.f32.xlu0 %v1698
        %v1701 = vpop.xlane.xlu0 %1700
        %1702 = vadd.xlane.f32.xlu0 %v1699
        %v1703 = vpop.xlane.xlu0 %1702
        %v1704 = vcvt.f32.s32 %v1701
        %v1705 = vcvt.f32.s32 %v1703
        %v1706 = vshll.u32 %v1705, 16
        %v1707 = vadd.s32 %v1706, %v1704
        %v1708 = vsel %vm724, %v1687, 0
        %v1709 = vsel %vm724, %v1688, 0
        %v1710 = vadd.s32 %v1708, %v1709
        %v1711 = vand.u32 %v1710, 65535
        %v1712 = vshrl.u32 %v1710, 16
        %v1713 = vcvt.s32.f32 %v1711
        %v1714 = vcvt.s32.f32 %v1712
        %1715 = vadd.xlane.f32.xlu0 %v1713
        %v1716 = vpop.xlane.xlu0 %1715
        %1717 = vadd.xlane.f32.xlu0 %v1714
        %v1718 = vpop.xlane.xlu0 %1717
        %v1719 = vcvt.f32.s32 %v1716
        %v1720 = vcvt.f32.s32 %v1718
        %v1721 = vshll.u32 %v1720, 16
        %v1722 = vadd.s32 %v1721, %v1719
        %v1723 = vsel %vm724, %v1689, 0
        %v1724 = vsel %vm724, %v1690, 0
        %v1725 = vadd.s32 %v1723, %v1724
        %v1726 = vand.u32 %v1725, 65535
        %v1727 = vshrl.u32 %v1725, 16
        %v1728 = vcvt.s32.f32 %v1726
        %v1729 = vcvt.s32.f32 %v1727
        %1730 = vadd.xlane.f32.xlu0 %v1728
        %v1731 = vpop.xlane.xlu0 %1730
        %1732 = vadd.xlane.f32.xlu0 %v1729
        %v1733 = vpop.xlane.xlu0 %1732
        %v1734 = vcvt.f32.s32 %v1731
        %v1735 = vcvt.f32.s32 %v1733
        %v1736 = vshll.u32 %v1735, 16
        %v1737 = vadd.s32 %v1736, %v1734
        %v1738 = vsel %vm724, %v1691, 0
        %v1739 = vsel %vm724, %v1692, 0
        %v1740 = vadd.s32 %v1738, %v1739
        %v1741 = vand.u32 %v1740, 65535
        %v1742 = vshrl.u32 %v1740, 16
        %v1743 = vcvt.s32.f32 %v1741
        %v1744 = vcvt.s32.f32 %v1742
        %1745 = vadd.xlane.f32.xlu0 %v1743
        %v1746 = vpop.xlane.xlu0 %1745
        %1747 = vadd.xlane.f32.xlu0 %v1744
        %v1748 = vpop.xlane.xlu0 %1747
        %v1749 = vcvt.f32.s32 %v1746
        %v1750 = vcvt.f32.s32 %v1748
        %v1751 = vshll.u32 %v1750, 16
        %v1752 = vadd.s32 %v1751, %v1749
        %vm1753 = vcmp.ge.s32.totalorder %v1707, 76
        %vm1754 = vcmp.ge.s32.totalorder %v1722, 76
        %vm1755 = vcmp.ge.s32.totalorder %v1737, 76
        %vm1756 = vcmp.ge.s32.totalorder %v1752, 76
        %v1757 = vsel %vm1753, %v1673, %v1669
        %v1758 = vsel %vm1754, %v1674, %v1670
        %v1759 = vsel %vm1755, %v1675, %v1671
        %v1760 = vsel %vm1756, %v1676, %v1672
        %v1761 = vadd.s32 %v1757, 524288
        %v1762 = vadd.s32 %v1758, 524288
        %v1763 = vadd.s32 %v1759, 524288
        %v1764 = vadd.s32 %v1760, 524288
        %vm1765 = vcmp.ge.s32.totalorder %v700, %v1761
        %vm1766 = vcmp.ge.s32.totalorder %v701, %v1761
        %vm1767 = vcmp.ge.s32.totalorder %v702, %v1762
        %vm1768 = vcmp.ge.s32.totalorder %v703, %v1762
        %vm1769 = vcmp.ge.s32.totalorder %v704, %v1763
        %vm1770 = vcmp.ge.s32.totalorder %v705, %v1763
        %vm1771 = vcmp.ge.s32.totalorder %v706, %v1764
        %vm1772 = vcmp.ge.s32.totalorder %v707, %v1764
        %v1773 = vsel %vm1765, 1, 0
        %v1774 = vsel %vm1766, 1, 0
        %v1775 = vsel %vm1767, 1, 0
        %v1776 = vsel %vm1768, 1, 0
        %v1777 = vsel %vm1769, 1, 0
        %v1778 = vsel %vm1770, 1, 0
        %v1779 = vsel %vm1771, 1, 0
        %v1780 = vsel %vm1772, 1, 0
        %v1781 = vsel %vm724, %v1773, 0
        %v1782 = vsel %vm724, %v1774, 0
        %v1783 = vadd.s32 %v1781, %v1782
        %v1784 = vand.u32 %v1783, 65535
        %v1785 = vshrl.u32 %v1783, 16
        %v1786 = vcvt.s32.f32 %v1784
        %v1787 = vcvt.s32.f32 %v1785
        %1788 = vadd.xlane.f32.xlu0 %v1786
        %v1789 = vpop.xlane.xlu0 %1788
        %1790 = vadd.xlane.f32.xlu0 %v1787
        %v1791 = vpop.xlane.xlu0 %1790
        %v1792 = vcvt.f32.s32 %v1789
        %v1793 = vcvt.f32.s32 %v1791
        %v1794 = vshll.u32 %v1793, 16
        %v1795 = vadd.s32 %v1794, %v1792
        %v1796 = vsel %vm724, %v1775, 0
        %v1797 = vsel %vm724, %v1776, 0
        %v1798 = vadd.s32 %v1796, %v1797
        %v1799 = vand.u32 %v1798, 65535
        %v1800 = vshrl.u32 %v1798, 16
        %v1801 = vcvt.s32.f32 %v1799
        %v1802 = vcvt.s32.f32 %v1800
        %1803 = vadd.xlane.f32.xlu0 %v1801
        %v1804 = vpop.xlane.xlu0 %1803
        %1805 = vadd.xlane.f32.xlu0 %v1802
        %v1806 = vpop.xlane.xlu0 %1805
        %v1807 = vcvt.f32.s32 %v1804
        %v1808 = vcvt.f32.s32 %v1806
        %v1809 = vshll.u32 %v1808, 16
        %v1810 = vadd.s32 %v1809, %v1807
        %v1811 = vsel %vm724, %v1777, 0
        %v1812 = vsel %vm724, %v1778, 0
        %v1813 = vadd.s32 %v1811, %v1812
        %v1814 = vand.u32 %v1813, 65535
        %v1815 = vshrl.u32 %v1813, 16
        %v1816 = vcvt.s32.f32 %v1814
        %v1817 = vcvt.s32.f32 %v1815
        %1818 = vadd.xlane.f32.xlu0 %v1816
        %v1819 = vpop.xlane.xlu0 %1818
        %1820 = vadd.xlane.f32.xlu0 %v1817
        %v1821 = vpop.xlane.xlu0 %1820
        %v1822 = vcvt.f32.s32 %v1819
        %v1823 = vcvt.f32.s32 %v1821
        %v1824 = vshll.u32 %v1823, 16
        %v1825 = vadd.s32 %v1824, %v1822
        %v1826 = vsel %vm724, %v1779, 0
        %v1827 = vsel %vm724, %v1780, 0
        %v1828 = vadd.s32 %v1826, %v1827
        %v1829 = vand.u32 %v1828, 65535
        %v1830 = vshrl.u32 %v1828, 16
        %v1831 = vcvt.s32.f32 %v1829
        %v1832 = vcvt.s32.f32 %v1830
        %1833 = vadd.xlane.f32.xlu0 %v1831
        %v1834 = vpop.xlane.xlu0 %1833
        %1835 = vadd.xlane.f32.xlu0 %v1832
        %v1836 = vpop.xlane.xlu0 %1835
        %v1837 = vcvt.f32.s32 %v1834
        %v1838 = vcvt.f32.s32 %v1836
        %v1839 = vshll.u32 %v1838, 16
        %v1840 = vadd.s32 %v1839, %v1837
        %vm1841 = vcmp.ge.s32.totalorder %v1795, 76
        %vm1842 = vcmp.ge.s32.totalorder %v1810, 76
        %vm1843 = vcmp.ge.s32.totalorder %v1825, 76
        %vm1844 = vcmp.ge.s32.totalorder %v1840, 76
        %v1845 = vsel %vm1841, %v1761, %v1757
        %v1846 = vsel %vm1842, %v1762, %v1758
        %v1847 = vsel %vm1843, %v1763, %v1759
        %v1848 = vsel %vm1844, %v1764, %v1760
        %v1849 = vadd.s32 %v1845, 262144
        %v1850 = vadd.s32 %v1846, 262144
        %v1851 = vadd.s32 %v1847, 262144
        %v1852 = vadd.s32 %v1848, 262144
        %vm1853 = vcmp.ge.s32.totalorder %v700, %v1849
        %vm1854 = vcmp.ge.s32.totalorder %v701, %v1849
        %vm1855 = vcmp.ge.s32.totalorder %v702, %v1850
        %vm1856 = vcmp.ge.s32.totalorder %v703, %v1850
        %vm1857 = vcmp.ge.s32.totalorder %v704, %v1851
        %vm1858 = vcmp.ge.s32.totalorder %v705, %v1851
        %vm1859 = vcmp.ge.s32.totalorder %v706, %v1852
        %vm1860 = vcmp.ge.s32.totalorder %v707, %v1852
        %v1861 = vsel %vm1853, 1, 0
        %v1862 = vsel %vm1854, 1, 0
        %v1863 = vsel %vm1855, 1, 0
        %v1864 = vsel %vm1856, 1, 0
        %v1865 = vsel %vm1857, 1, 0
        %v1866 = vsel %vm1858, 1, 0
        %v1867 = vsel %vm1859, 1, 0
        %v1868 = vsel %vm1860, 1, 0
        %v1869 = vsel %vm724, %v1861, 0
        %v1870 = vsel %vm724, %v1862, 0
        %v1871 = vadd.s32 %v1869, %v1870
        %v1872 = vand.u32 %v1871, 65535
        %v1873 = vshrl.u32 %v1871, 16
        %v1874 = vcvt.s32.f32 %v1872
        %v1875 = vcvt.s32.f32 %v1873
        %1876 = vadd.xlane.f32.xlu0 %v1874
        %v1877 = vpop.xlane.xlu0 %1876
        %1878 = vadd.xlane.f32.xlu0 %v1875
        %v1879 = vpop.xlane.xlu0 %1878
        %v1880 = vcvt.f32.s32 %v1877
        %v1881 = vcvt.f32.s32 %v1879
        %v1882 = vshll.u32 %v1881, 16
        %v1883 = vadd.s32 %v1882, %v1880
        %v1884 = vsel %vm724, %v1863, 0
        %v1885 = vsel %vm724, %v1864, 0
        %v1886 = vadd.s32 %v1884, %v1885
        %v1887 = vand.u32 %v1886, 65535
        %v1888 = vshrl.u32 %v1886, 16
        %v1889 = vcvt.s32.f32 %v1887
        %v1890 = vcvt.s32.f32 %v1888
        %1891 = vadd.xlane.f32.xlu0 %v1889
        %v1892 = vpop.xlane.xlu0 %1891
        %1893 = vadd.xlane.f32.xlu0 %v1890
        %v1894 = vpop.xlane.xlu0 %1893
        %v1895 = vcvt.f32.s32 %v1892
        %v1896 = vcvt.f32.s32 %v1894
        %v1897 = vshll.u32 %v1896, 16
        %v1898 = vadd.s32 %v1897, %v1895
        %v1899 = vsel %vm724, %v1865, 0
        %v1900 = vsel %vm724, %v1866, 0
        %v1901 = vadd.s32 %v1899, %v1900
        %v1902 = vand.u32 %v1901, 65535
        %v1903 = vshrl.u32 %v1901, 16
        %v1904 = vcvt.s32.f32 %v1902
        %v1905 = vcvt.s32.f32 %v1903
        %1906 = vadd.xlane.f32.xlu0 %v1904
        %v1907 = vpop.xlane.xlu0 %1906
        %1908 = vadd.xlane.f32.xlu0 %v1905
        %v1909 = vpop.xlane.xlu0 %1908
        %v1910 = vcvt.f32.s32 %v1907
        %v1911 = vcvt.f32.s32 %v1909
        %v1912 = vshll.u32 %v1911, 16
        %v1913 = vadd.s32 %v1912, %v1910
        %v1914 = vsel %vm724, %v1867, 0
        %v1915 = vsel %vm724, %v1868, 0
        %v1916 = vadd.s32 %v1914, %v1915
        %v1917 = vand.u32 %v1916, 65535
        %v1918 = vshrl.u32 %v1916, 16
        %v1919 = vcvt.s32.f32 %v1917
        %v1920 = vcvt.s32.f32 %v1918
        %1921 = vadd.xlane.f32.xlu0 %v1919
        %v1922 = vpop.xlane.xlu0 %1921
        %1923 = vadd.xlane.f32.xlu0 %v1920
        %v1924 = vpop.xlane.xlu0 %1923
        %v1925 = vcvt.f32.s32 %v1922
        %v1926 = vcvt.f32.s32 %v1924
        %v1927 = vshll.u32 %v1926, 16
        %v1928 = vadd.s32 %v1927, %v1925
        %vm1929 = vcmp.ge.s32.totalorder %v1883, 76
        %vm1930 = vcmp.ge.s32.totalorder %v1898, 76
        %vm1931 = vcmp.ge.s32.totalorder %v1913, 76
        %vm1932 = vcmp.ge.s32.totalorder %v1928, 76
        %v1933 = vsel %vm1929, %v1849, %v1845
        %v1934 = vsel %vm1930, %v1850, %v1846
        %v1935 = vsel %vm1931, %v1851, %v1847
        %v1936 = vsel %vm1932, %v1852, %v1848
        %v1937 = vadd.s32 %v1933, 131072
        %v1938 = vadd.s32 %v1934, 131072
        %v1939 = vadd.s32 %v1935, 131072
        %v1940 = vadd.s32 %v1936, 131072
        %vm1941 = vcmp.ge.s32.totalorder %v700, %v1937
        %vm1942 = vcmp.ge.s32.totalorder %v701, %v1937
        %vm1943 = vcmp.ge.s32.totalorder %v702, %v1938
        %vm1944 = vcmp.ge.s32.totalorder %v703, %v1938
        %vm1945 = vcmp.ge.s32.totalorder %v704, %v1939
        %vm1946 = vcmp.ge.s32.totalorder %v705, %v1939
        %vm1947 = vcmp.ge.s32.totalorder %v706, %v1940
        %vm1948 = vcmp.ge.s32.totalorder %v707, %v1940
        %v1949 = vsel %vm1941, 1, 0
        %v1950 = vsel %vm1942, 1, 0
        %v1951 = vsel %vm1943, 1, 0
        %v1952 = vsel %vm1944, 1, 0
        %v1953 = vsel %vm1945, 1, 0
        %v1954 = vsel %vm1946, 1, 0
        %v1955 = vsel %vm1947, 1, 0
        %v1956 = vsel %vm1948, 1, 0
        %v1957 = vsel %vm724, %v1949, 0
        %v1958 = vsel %vm724, %v1950, 0
        %v1959 = vadd.s32 %v1957, %v1958
        %v1960 = vand.u32 %v1959, 65535
        %v1961 = vshrl.u32 %v1959, 16
        %v1962 = vcvt.s32.f32 %v1960
        %v1963 = vcvt.s32.f32 %v1961
        %1964 = vadd.xlane.f32.xlu0 %v1962
        %v1965 = vpop.xlane.xlu0 %1964
        %1966 = vadd.xlane.f32.xlu0 %v1963
        %v1967 = vpop.xlane.xlu0 %1966
        %v1968 = vcvt.f32.s32 %v1965
        %v1969 = vcvt.f32.s32 %v1967
        %v1970 = vshll.u32 %v1969, 16
        %v1971 = vadd.s32 %v1970, %v1968
        %v1972 = vsel %vm724, %v1951, 0
        %v1973 = vsel %vm724, %v1952, 0
        %v1974 = vadd.s32 %v1972, %v1973
        %v1975 = vand.u32 %v1974, 65535
        %v1976 = vshrl.u32 %v1974, 16
        %v1977 = vcvt.s32.f32 %v1975
        %v1978 = vcvt.s32.f32 %v1976
        %1979 = vadd.xlane.f32.xlu0 %v1977
        %v1980 = vpop.xlane.xlu0 %1979
        %1981 = vadd.xlane.f32.xlu0 %v1978
        %v1982 = vpop.xlane.xlu0 %1981
        %v1983 = vcvt.f32.s32 %v1980
        %v1984 = vcvt.f32.s32 %v1982
        %v1985 = vshll.u32 %v1984, 16
        %v1986 = vadd.s32 %v1985, %v1983
        %v1987 = vsel %vm724, %v1953, 0
        %v1988 = vsel %vm724, %v1954, 0
        %v1989 = vadd.s32 %v1987, %v1988
        %v1990 = vand.u32 %v1989, 65535
        %v1991 = vshrl.u32 %v1989, 16
        %v1992 = vcvt.s32.f32 %v1990
        %v1993 = vcvt.s32.f32 %v1991
        %1994 = vadd.xlane.f32.xlu0 %v1992
        %v1995 = vpop.xlane.xlu0 %1994
        %1996 = vadd.xlane.f32.xlu0 %v1993
        %v1997 = vpop.xlane.xlu0 %1996
        %v1998 = vcvt.f32.s32 %v1995
        %v1999 = vcvt.f32.s32 %v1997
        %v2000 = vshll.u32 %v1999, 16
        %v2001 = vadd.s32 %v2000, %v1998
        %v2002 = vsel %vm724, %v1955, 0
        %v2003 = vsel %vm724, %v1956, 0
        %v2004 = vadd.s32 %v2002, %v2003
        %v2005 = vand.u32 %v2004, 65535
        %v2006 = vshrl.u32 %v2004, 16
        %v2007 = vcvt.s32.f32 %v2005
        %v2008 = vcvt.s32.f32 %v2006
        %2009 = vadd.xlane.f32.xlu0 %v2007
        %v2010 = vpop.xlane.xlu0 %2009
        %2011 = vadd.xlane.f32.xlu0 %v2008
        %v2012 = vpop.xlane.xlu0 %2011
        %v2013 = vcvt.f32.s32 %v2010
        %v2014 = vcvt.f32.s32 %v2012
        %v2015 = vshll.u32 %v2014, 16
        %v2016 = vadd.s32 %v2015, %v2013
        %vm2017 = vcmp.ge.s32.totalorder %v1971, 76
        %vm2018 = vcmp.ge.s32.totalorder %v1986, 76
        %vm2019 = vcmp.ge.s32.totalorder %v2001, 76
        %vm2020 = vcmp.ge.s32.totalorder %v2016, 76
        %v2021 = vsel %vm2017, %v1937, %v1933
        %v2022 = vsel %vm2018, %v1938, %v1934
        %v2023 = vsel %vm2019, %v1939, %v1935
        %v2024 = vsel %vm2020, %v1940, %v1936
        %v2025 = vadd.s32 %v2021, 65536
        %v2026 = vadd.s32 %v2022, 65536
        %v2027 = vadd.s32 %v2023, 65536
        %v2028 = vadd.s32 %v2024, 65536
        %vm2029 = vcmp.ge.s32.totalorder %v700, %v2025
        %vm2030 = vcmp.ge.s32.totalorder %v701, %v2025
        %vm2031 = vcmp.ge.s32.totalorder %v702, %v2026
        %vm2032 = vcmp.ge.s32.totalorder %v703, %v2026
        %vm2033 = vcmp.ge.s32.totalorder %v704, %v2027
        %vm2034 = vcmp.ge.s32.totalorder %v705, %v2027
        %vm2035 = vcmp.ge.s32.totalorder %v706, %v2028
        %vm2036 = vcmp.ge.s32.totalorder %v707, %v2028
        %v2037 = vsel %vm2029, 1, 0
        %v2038 = vsel %vm2030, 1, 0
        %v2039 = vsel %vm2031, 1, 0
        %v2040 = vsel %vm2032, 1, 0
        %v2041 = vsel %vm2033, 1, 0
        %v2042 = vsel %vm2034, 1, 0
        %v2043 = vsel %vm2035, 1, 0
        %v2044 = vsel %vm2036, 1, 0
        %v2045 = vsel %vm724, %v2037, 0
        %v2046 = vsel %vm724, %v2038, 0
        %v2047 = vadd.s32 %v2045, %v2046
        %v2048 = vand.u32 %v2047, 65535
        %v2049 = vshrl.u32 %v2047, 16
        %v2050 = vcvt.s32.f32 %v2048
        %v2051 = vcvt.s32.f32 %v2049
        %2052 = vadd.xlane.f32.xlu0 %v2050
        %v2053 = vpop.xlane.xlu0 %2052
        %2054 = vadd.xlane.f32.xlu0 %v2051
        %v2055 = vpop.xlane.xlu0 %2054
        %v2056 = vcvt.f32.s32 %v2053
        %v2057 = vcvt.f32.s32 %v2055
        %v2058 = vshll.u32 %v2057, 16
        %v2059 = vadd.s32 %v2058, %v2056
        %v2060 = vsel %vm724, %v2039, 0
        %v2061 = vsel %vm724, %v2040, 0
        %v2062 = vadd.s32 %v2060, %v2061
        %v2063 = vand.u32 %v2062, 65535
        %v2064 = vshrl.u32 %v2062, 16
        %v2065 = vcvt.s32.f32 %v2063
        %v2066 = vcvt.s32.f32 %v2064
        %2067 = vadd.xlane.f32.xlu0 %v2065
        %v2068 = vpop.xlane.xlu0 %2067
        %2069 = vadd.xlane.f32.xlu0 %v2066
        %v2070 = vpop.xlane.xlu0 %2069
        %v2071 = vcvt.f32.s32 %v2068
        %v2072 = vcvt.f32.s32 %v2070
        %v2073 = vshll.u32 %v2072, 16
        %v2074 = vadd.s32 %v2073, %v2071
        %v2075 = vsel %vm724, %v2041, 0
        %v2076 = vsel %vm724, %v2042, 0
        %v2077 = vadd.s32 %v2075, %v2076
        %v2078 = vand.u32 %v2077, 65535
        %v2079 = vshrl.u32 %v2077, 16
        %v2080 = vcvt.s32.f32 %v2078
        %v2081 = vcvt.s32.f32 %v2079
        %2082 = vadd.xlane.f32.xlu0 %v2080
        %v2083 = vpop.xlane.xlu0 %2082
        %2084 = vadd.xlane.f32.xlu0 %v2081
        %v2085 = vpop.xlane.xlu0 %2084
        %v2086 = vcvt.f32.s32 %v2083
        %v2087 = vcvt.f32.s32 %v2085
        %v2088 = vshll.u32 %v2087, 16
        %v2089 = vadd.s32 %v2088, %v2086
        %v2090 = vsel %vm724, %v2043, 0
        %v2091 = vsel %vm724, %v2044, 0
        %v2092 = vadd.s32 %v2090, %v2091
        %v2093 = vand.u32 %v2092, 65535
        %v2094 = vshrl.u32 %v2092, 16
        %v2095 = vcvt.s32.f32 %v2093
        %v2096 = vcvt.s32.f32 %v2094
        %2097 = vadd.xlane.f32.xlu0 %v2095
        %v2098 = vpop.xlane.xlu0 %2097
        %2099 = vadd.xlane.f32.xlu0 %v2096
        %v2100 = vpop.xlane.xlu0 %2099
        %v2101 = vcvt.f32.s32 %v2098
        %v2102 = vcvt.f32.s32 %v2100
        %v2103 = vshll.u32 %v2102, 16
        %v2104 = vadd.s32 %v2103, %v2101
        %vm2105 = vcmp.ge.s32.totalorder %v2059, 76
        %vm2106 = vcmp.ge.s32.totalorder %v2074, 76
        %vm2107 = vcmp.ge.s32.totalorder %v2089, 76
        %vm2108 = vcmp.ge.s32.totalorder %v2104, 76
        %v2109 = vsel %vm2105, %v2025, %v2021
        %v2110 = vsel %vm2106, %v2026, %v2022
        %v2111 = vsel %vm2107, %v2027, %v2023
        %v2112 = vsel %vm2108, %v2028, %v2024
        %v2113 = vadd.s32 %v2109, 32768
        %v2114 = vadd.s32 %v2110, 32768
        %v2115 = vadd.s32 %v2111, 32768
        %v2116 = vadd.s32 %v2112, 32768
        %vm2117 = vcmp.ge.s32.totalorder %v700, %v2113
        %vm2118 = vcmp.ge.s32.totalorder %v701, %v2113
        %vm2119 = vcmp.ge.s32.totalorder %v702, %v2114
        %vm2120 = vcmp.ge.s32.totalorder %v703, %v2114
        %vm2121 = vcmp.ge.s32.totalorder %v704, %v2115
        %vm2122 = vcmp.ge.s32.totalorder %v705, %v2115
        %vm2123 = vcmp.ge.s32.totalorder %v706, %v2116
        %vm2124 = vcmp.ge.s32.totalorder %v707, %v2116
        %v2125 = vsel %vm2117, 1, 0
        %v2126 = vsel %vm2118, 1, 0
        %v2127 = vsel %vm2119, 1, 0
        %v2128 = vsel %vm2120, 1, 0
        %v2129 = vsel %vm2121, 1, 0
        %v2130 = vsel %vm2122, 1, 0
        %v2131 = vsel %vm2123, 1, 0
        %v2132 = vsel %vm2124, 1, 0
        %v2133 = vsel %vm724, %v2125, 0
        %v2134 = vsel %vm724, %v2126, 0
        %v2135 = vadd.s32 %v2133, %v2134
        %v2136 = vand.u32 %v2135, 65535
        %v2137 = vshrl.u32 %v2135, 16
        %v2138 = vcvt.s32.f32 %v2136
        %v2139 = vcvt.s32.f32 %v2137
        %2140 = vadd.xlane.f32.xlu0 %v2138
        %v2141 = vpop.xlane.xlu0 %2140
        %2142 = vadd.xlane.f32.xlu0 %v2139
        %v2143 = vpop.xlane.xlu0 %2142
        %v2144 = vcvt.f32.s32 %v2141
        %v2145 = vcvt.f32.s32 %v2143
        %v2146 = vshll.u32 %v2145, 16
        %v2147 = vadd.s32 %v2146, %v2144
        %v2148 = vsel %vm724, %v2127, 0
        %v2149 = vsel %vm724, %v2128, 0
        %v2150 = vadd.s32 %v2148, %v2149
        %v2151 = vand.u32 %v2150, 65535
        %v2152 = vshrl.u32 %v2150, 16
        %v2153 = vcvt.s32.f32 %v2151
        %v2154 = vcvt.s32.f32 %v2152
        %2155 = vadd.xlane.f32.xlu0 %v2153
        %v2156 = vpop.xlane.xlu0 %2155
        %2157 = vadd.xlane.f32.xlu0 %v2154
        %v2158 = vpop.xlane.xlu0 %2157
        %v2159 = vcvt.f32.s32 %v2156
        %v2160 = vcvt.f32.s32 %v2158
        %v2161 = vshll.u32 %v2160, 16
        %v2162 = vadd.s32 %v2161, %v2159
        %v2163 = vsel %vm724, %v2129, 0
        %v2164 = vsel %vm724, %v2130, 0
        %v2165 = vadd.s32 %v2163, %v2164
        %v2166 = vand.u32 %v2165, 65535
        %v2167 = vshrl.u32 %v2165, 16
        %v2168 = vcvt.s32.f32 %v2166
        %v2169 = vcvt.s32.f32 %v2167
        %2170 = vadd.xlane.f32.xlu0 %v2168
        %v2171 = vpop.xlane.xlu0 %2170
        %2172 = vadd.xlane.f32.xlu0 %v2169
        %v2173 = vpop.xlane.xlu0 %2172
        %v2174 = vcvt.f32.s32 %v2171
        %v2175 = vcvt.f32.s32 %v2173
        %v2176 = vshll.u32 %v2175, 16
        %v2177 = vadd.s32 %v2176, %v2174
        %v2178 = vsel %vm724, %v2131, 0
        %v2179 = vsel %vm724, %v2132, 0
        %v2180 = vadd.s32 %v2178, %v2179
        %v2181 = vand.u32 %v2180, 65535
        %v2182 = vshrl.u32 %v2180, 16
        %v2183 = vcvt.s32.f32 %v2181
        %v2184 = vcvt.s32.f32 %v2182
        %2185 = vadd.xlane.f32.xlu0 %v2183
        %v2186 = vpop.xlane.xlu0 %2185
        %2187 = vadd.xlane.f32.xlu0 %v2184
        %v2188 = vpop.xlane.xlu0 %2187
        %v2189 = vcvt.f32.s32 %v2186
        %v2190 = vcvt.f32.s32 %v2188
        %v2191 = vshll.u32 %v2190, 16
        %v2192 = vadd.s32 %v2191, %v2189
        %vm2193 = vcmp.ge.s32.totalorder %v2147, 76
        %vm2194 = vcmp.ge.s32.totalorder %v2162, 76
        %vm2195 = vcmp.ge.s32.totalorder %v2177, 76
        %vm2196 = vcmp.ge.s32.totalorder %v2192, 76
        %v2197 = vsel %vm2193, %v2113, %v2109
        %v2198 = vsel %vm2194, %v2114, %v2110
        %v2199 = vsel %vm2195, %v2115, %v2111
        %v2200 = vsel %vm2196, %v2116, %v2112
        %v2201 = vadd.s32 %v2197, 16384
        %v2202 = vadd.s32 %v2198, 16384
        %v2203 = vadd.s32 %v2199, 16384
        %v2204 = vadd.s32 %v2200, 16384
        %vm2205 = vcmp.ge.s32.totalorder %v700, %v2201
        %vm2206 = vcmp.ge.s32.totalorder %v701, %v2201
        %vm2207 = vcmp.ge.s32.totalorder %v702, %v2202
        %vm2208 = vcmp.ge.s32.totalorder %v703, %v2202
        %vm2209 = vcmp.ge.s32.totalorder %v704, %v2203
        %vm2210 = vcmp.ge.s32.totalorder %v705, %v2203
        %vm2211 = vcmp.ge.s32.totalorder %v706, %v2204
        %vm2212 = vcmp.ge.s32.totalorder %v707, %v2204
        %v2213 = vsel %vm2205, 1, 0
        %v2214 = vsel %vm2206, 1, 0
        %v2215 = vsel %vm2207, 1, 0
        %v2216 = vsel %vm2208, 1, 0
        %v2217 = vsel %vm2209, 1, 0
        %v2218 = vsel %vm2210, 1, 0
        %v2219 = vsel %vm2211, 1, 0
        %v2220 = vsel %vm2212, 1, 0
        %v2221 = vsel %vm724, %v2213, 0
        %v2222 = vsel %vm724, %v2214, 0
        %v2223 = vadd.s32 %v2221, %v2222
        %v2224 = vand.u32 %v2223, 65535
        %v2225 = vshrl.u32 %v2223, 16
        %v2226 = vcvt.s32.f32 %v2224
        %v2227 = vcvt.s32.f32 %v2225
        %2228 = vadd.xlane.f32.xlu0 %v2226
        %v2229 = vpop.xlane.xlu0 %2228
        %2230 = vadd.xlane.f32.xlu0 %v2227
        %v2231 = vpop.xlane.xlu0 %2230
        %v2232 = vcvt.f32.s32 %v2229
        %v2233 = vcvt.f32.s32 %v2231
        %v2234 = vshll.u32 %v2233, 16
        %v2235 = vadd.s32 %v2234, %v2232
        %v2236 = vsel %vm724, %v2215, 0
        %v2237 = vsel %vm724, %v2216, 0
        %v2238 = vadd.s32 %v2236, %v2237
        %v2239 = vand.u32 %v2238, 65535
        %v2240 = vshrl.u32 %v2238, 16
        %v2241 = vcvt.s32.f32 %v2239
        %v2242 = vcvt.s32.f32 %v2240
        %2243 = vadd.xlane.f32.xlu0 %v2241
        %v2244 = vpop.xlane.xlu0 %2243
        %2245 = vadd.xlane.f32.xlu0 %v2242
        %v2246 = vpop.xlane.xlu0 %2245
        %v2247 = vcvt.f32.s32 %v2244
        %v2248 = vcvt.f32.s32 %v2246
        %v2249 = vshll.u32 %v2248, 16
        %v2250 = vadd.s32 %v2249, %v2247
        %v2251 = vsel %vm724, %v2217, 0
        %v2252 = vsel %vm724, %v2218, 0
        %v2253 = vadd.s32 %v2251, %v2252
        %v2254 = vand.u32 %v2253, 65535
        %v2255 = vshrl.u32 %v2253, 16
        %v2256 = vcvt.s32.f32 %v2254
        %v2257 = vcvt.s32.f32 %v2255
        %2258 = vadd.xlane.f32.xlu0 %v2256
        %v2259 = vpop.xlane.xlu0 %2258
        %2260 = vadd.xlane.f32.xlu0 %v2257
        %v2261 = vpop.xlane.xlu0 %2260
        %v2262 = vcvt.f32.s32 %v2259
        %v2263 = vcvt.f32.s32 %v2261
        %v2264 = vshll.u32 %v2263, 16
        %v2265 = vadd.s32 %v2264, %v2262
        %v2266 = vsel %vm724, %v2219, 0
        %v2267 = vsel %vm724, %v2220, 0
        %v2268 = vadd.s32 %v2266, %v2267
        %v2269 = vand.u32 %v2268, 65535
        %v2270 = vshrl.u32 %v2268, 16
        %v2271 = vcvt.s32.f32 %v2269
        %v2272 = vcvt.s32.f32 %v2270
        %2273 = vadd.xlane.f32.xlu0 %v2271
        %v2274 = vpop.xlane.xlu0 %2273
        %2275 = vadd.xlane.f32.xlu0 %v2272
        %v2276 = vpop.xlane.xlu0 %2275
        %v2277 = vcvt.f32.s32 %v2274
        %v2278 = vcvt.f32.s32 %v2276
        %v2279 = vshll.u32 %v2278, 16
        %v2280 = vadd.s32 %v2279, %v2277
        %vm2281 = vcmp.ge.s32.totalorder %v2235, 76
        %vm2282 = vcmp.ge.s32.totalorder %v2250, 76
        %vm2283 = vcmp.ge.s32.totalorder %v2265, 76
        %vm2284 = vcmp.ge.s32.totalorder %v2280, 76
        %v2285 = vsel %vm2281, %v2201, %v2197
        %v2286 = vsel %vm2282, %v2202, %v2198
        %v2287 = vsel %vm2283, %v2203, %v2199
        %v2288 = vsel %vm2284, %v2204, %v2200
        %v2289 = vadd.s32 %v2285, 8192
        %v2290 = vadd.s32 %v2286, 8192
        %v2291 = vadd.s32 %v2287, 8192
        %v2292 = vadd.s32 %v2288, 8192
        %vm2293 = vcmp.ge.s32.totalorder %v700, %v2289
        %vm2294 = vcmp.ge.s32.totalorder %v701, %v2289
        %vm2295 = vcmp.ge.s32.totalorder %v702, %v2290
        %vm2296 = vcmp.ge.s32.totalorder %v703, %v2290
        %vm2297 = vcmp.ge.s32.totalorder %v704, %v2291
        %vm2298 = vcmp.ge.s32.totalorder %v705, %v2291
        %vm2299 = vcmp.ge.s32.totalorder %v706, %v2292
        %vm2300 = vcmp.ge.s32.totalorder %v707, %v2292
        %v2301 = vsel %vm2293, 1, 0
        %v2302 = vsel %vm2294, 1, 0
        %v2303 = vsel %vm2295, 1, 0
        %v2304 = vsel %vm2296, 1, 0
        %v2305 = vsel %vm2297, 1, 0
        %v2306 = vsel %vm2298, 1, 0
        %v2307 = vsel %vm2299, 1, 0
        %v2308 = vsel %vm2300, 1, 0
        %v2309 = vsel %vm724, %v2301, 0
        %v2310 = vsel %vm724, %v2302, 0
        %v2311 = vadd.s32 %v2309, %v2310
        %v2312 = vand.u32 %v2311, 65535
        %v2313 = vshrl.u32 %v2311, 16
        %v2314 = vcvt.s32.f32 %v2312
        %v2315 = vcvt.s32.f32 %v2313
        %2316 = vadd.xlane.f32.xlu0 %v2314
        %v2317 = vpop.xlane.xlu0 %2316
        %2318 = vadd.xlane.f32.xlu0 %v2315
        %v2319 = vpop.xlane.xlu0 %2318
        %v2320 = vcvt.f32.s32 %v2317
        %v2321 = vcvt.f32.s32 %v2319
        %v2322 = vshll.u32 %v2321, 16
        %v2323 = vadd.s32 %v2322, %v2320
        %v2324 = vsel %vm724, %v2303, 0
        %v2325 = vsel %vm724, %v2304, 0
        %v2326 = vadd.s32 %v2324, %v2325
        %v2327 = vand.u32 %v2326, 65535
        %v2328 = vshrl.u32 %v2326, 16
        %v2329 = vcvt.s32.f32 %v2327
        %v2330 = vcvt.s32.f32 %v2328
        %2331 = vadd.xlane.f32.xlu0 %v2329
        %v2332 = vpop.xlane.xlu0 %2331
        %2333 = vadd.xlane.f32.xlu0 %v2330
        %v2334 = vpop.xlane.xlu0 %2333
        %v2335 = vcvt.f32.s32 %v2332
        %v2336 = vcvt.f32.s32 %v2334
        %v2337 = vshll.u32 %v2336, 16
        %v2338 = vadd.s32 %v2337, %v2335
        %v2339 = vsel %vm724, %v2305, 0
        %v2340 = vsel %vm724, %v2306, 0
        %v2341 = vadd.s32 %v2339, %v2340
        %v2342 = vand.u32 %v2341, 65535
        %v2343 = vshrl.u32 %v2341, 16
        %v2344 = vcvt.s32.f32 %v2342
        %v2345 = vcvt.s32.f32 %v2343
        %2346 = vadd.xlane.f32.xlu0 %v2344
        %v2347 = vpop.xlane.xlu0 %2346
        %2348 = vadd.xlane.f32.xlu0 %v2345
        %v2349 = vpop.xlane.xlu0 %2348
        %v2350 = vcvt.f32.s32 %v2347
        %v2351 = vcvt.f32.s32 %v2349
        %v2352 = vshll.u32 %v2351, 16
        %v2353 = vadd.s32 %v2352, %v2350
        %v2354 = vsel %vm724, %v2307, 0
        %v2355 = vsel %vm724, %v2308, 0
        %v2356 = vadd.s32 %v2354, %v2355
        %v2357 = vand.u32 %v2356, 65535
        %v2358 = vshrl.u32 %v2356, 16
        %v2359 = vcvt.s32.f32 %v2357
        %v2360 = vcvt.s32.f32 %v2358
        %2361 = vadd.xlane.f32.xlu0 %v2359
        %v2362 = vpop.xlane.xlu0 %2361
        %2363 = vadd.xlane.f32.xlu0 %v2360
        %v2364 = vpop.xlane.xlu0 %2363
        %v2365 = vcvt.f32.s32 %v2362
        %v2366 = vcvt.f32.s32 %v2364
        %v2367 = vshll.u32 %v2366, 16
        %v2368 = vadd.s32 %v2367, %v2365
        %vm2369 = vcmp.ge.s32.totalorder %v2323, 76
        %vm2370 = vcmp.ge.s32.totalorder %v2338, 76
        %vm2371 = vcmp.ge.s32.totalorder %v2353, 76
        %vm2372 = vcmp.ge.s32.totalorder %v2368, 76
        %v2373 = vsel %vm2369, %v2289, %v2285
        %v2374 = vsel %vm2370, %v2290, %v2286
        %v2375 = vsel %vm2371, %v2291, %v2287
        %v2376 = vsel %vm2372, %v2292, %v2288
        %v2377 = vadd.s32 %v2373, 4096
        %v2378 = vadd.s32 %v2374, 4096
        %v2379 = vadd.s32 %v2375, 4096
        %v2380 = vadd.s32 %v2376, 4096
        %vm2381 = vcmp.ge.s32.totalorder %v700, %v2377
        %vm2382 = vcmp.ge.s32.totalorder %v701, %v2377
        %vm2383 = vcmp.ge.s32.totalorder %v702, %v2378
        %vm2384 = vcmp.ge.s32.totalorder %v703, %v2378
        %vm2385 = vcmp.ge.s32.totalorder %v704, %v2379
        %vm2386 = vcmp.ge.s32.totalorder %v705, %v2379
        %vm2387 = vcmp.ge.s32.totalorder %v706, %v2380
        %vm2388 = vcmp.ge.s32.totalorder %v707, %v2380
        %v2389 = vsel %vm2381, 1, 0
        %v2390 = vsel %vm2382, 1, 0
        %v2391 = vsel %vm2383, 1, 0
        %v2392 = vsel %vm2384, 1, 0
        %v2393 = vsel %vm2385, 1, 0
        %v2394 = vsel %vm2386, 1, 0
        %v2395 = vsel %vm2387, 1, 0
        %v2396 = vsel %vm2388, 1, 0
        %v2397 = vsel %vm724, %v2389, 0
        %v2398 = vsel %vm724, %v2390, 0
        %v2399 = vadd.s32 %v2397, %v2398
        %v2400 = vand.u32 %v2399, 65535
        %v2401 = vshrl.u32 %v2399, 16
        %v2402 = vcvt.s32.f32 %v2400
        %v2403 = vcvt.s32.f32 %v2401
        %2404 = vadd.xlane.f32.xlu0 %v2402
        %v2405 = vpop.xlane.xlu0 %2404
        %2406 = vadd.xlane.f32.xlu0 %v2403
        %v2407 = vpop.xlane.xlu0 %2406
        %v2408 = vcvt.f32.s32 %v2405
        %v2409 = vcvt.f32.s32 %v2407
        %v2410 = vshll.u32 %v2409, 16
        %v2411 = vadd.s32 %v2410, %v2408
        %v2412 = vsel %vm724, %v2391, 0
        %v2413 = vsel %vm724, %v2392, 0
        %v2414 = vadd.s32 %v2412, %v2413
        %v2415 = vand.u32 %v2414, 65535
        %v2416 = vshrl.u32 %v2414, 16
        %v2417 = vcvt.s32.f32 %v2415
        %v2418 = vcvt.s32.f32 %v2416
        %2419 = vadd.xlane.f32.xlu0 %v2417
        %v2420 = vpop.xlane.xlu0 %2419
        %2421 = vadd.xlane.f32.xlu0 %v2418
        %v2422 = vpop.xlane.xlu0 %2421
        %v2423 = vcvt.f32.s32 %v2420
        %v2424 = vcvt.f32.s32 %v2422
        %v2425 = vshll.u32 %v2424, 16
        %v2426 = vadd.s32 %v2425, %v2423
        %v2427 = vsel %vm724, %v2393, 0
        %v2428 = vsel %vm724, %v2394, 0
        %v2429 = vadd.s32 %v2427, %v2428
        %v2430 = vand.u32 %v2429, 65535
        %v2431 = vshrl.u32 %v2429, 16
        %v2432 = vcvt.s32.f32 %v2430
        %v2433 = vcvt.s32.f32 %v2431
        %2434 = vadd.xlane.f32.xlu0 %v2432
        %v2435 = vpop.xlane.xlu0 %2434
        %2436 = vadd.xlane.f32.xlu0 %v2433
        %v2437 = vpop.xlane.xlu0 %2436
        %v2438 = vcvt.f32.s32 %v2435
        %v2439 = vcvt.f32.s32 %v2437
        %v2440 = vshll.u32 %v2439, 16
        %v2441 = vadd.s32 %v2440, %v2438
        %v2442 = vsel %vm724, %v2395, 0
        %v2443 = vsel %vm724, %v2396, 0
        %v2444 = vadd.s32 %v2442, %v2443
        %v2445 = vand.u32 %v2444, 65535
        %v2446 = vshrl.u32 %v2444, 16
        %v2447 = vcvt.s32.f32 %v2445
        %v2448 = vcvt.s32.f32 %v2446
        %2449 = vadd.xlane.f32.xlu0 %v2447
        %v2450 = vpop.xlane.xlu0 %2449
        %2451 = vadd.xlane.f32.xlu0 %v2448
        %v2452 = vpop.xlane.xlu0 %2451
        %v2453 = vcvt.f32.s32 %v2450
        %v2454 = vcvt.f32.s32 %v2452
        %v2455 = vshll.u32 %v2454, 16
        %v2456 = vadd.s32 %v2455, %v2453
        %vm2457 = vcmp.ge.s32.totalorder %v2411, 76
        %vm2458 = vcmp.ge.s32.totalorder %v2426, 76
        %vm2459 = vcmp.ge.s32.totalorder %v2441, 76
        %vm2460 = vcmp.ge.s32.totalorder %v2456, 76
        %v2461 = vsel %vm2457, %v2377, %v2373
        %v2462 = vsel %vm2458, %v2378, %v2374
        %v2463 = vsel %vm2459, %v2379, %v2375
        %v2464 = vsel %vm2460, %v2380, %v2376
        %v2465 = vadd.s32 %v2461, 2048
        %v2466 = vadd.s32 %v2462, 2048
        %v2467 = vadd.s32 %v2463, 2048
        %v2468 = vadd.s32 %v2464, 2048
        %vm2469 = vcmp.ge.s32.totalorder %v700, %v2465
        %vm2470 = vcmp.ge.s32.totalorder %v701, %v2465
        %vm2471 = vcmp.ge.s32.totalorder %v702, %v2466
        %vm2472 = vcmp.ge.s32.totalorder %v703, %v2466
        %vm2473 = vcmp.ge.s32.totalorder %v704, %v2467
        %vm2474 = vcmp.ge.s32.totalorder %v705, %v2467
        %vm2475 = vcmp.ge.s32.totalorder %v706, %v2468
        %vm2476 = vcmp.ge.s32.totalorder %v707, %v2468
        %v2477 = vsel %vm2469, 1, 0
        %v2478 = vsel %vm2470, 1, 0
        %v2479 = vsel %vm2471, 1, 0
        %v2480 = vsel %vm2472, 1, 0
        %v2481 = vsel %vm2473, 1, 0
        %v2482 = vsel %vm2474, 1, 0
        %v2483 = vsel %vm2475, 1, 0
        %v2484 = vsel %vm2476, 1, 0
        %v2485 = vsel %vm724, %v2477, 0
        %v2486 = vsel %vm724, %v2478, 0
        %v2487 = vadd.s32 %v2485, %v2486
        %v2488 = vand.u32 %v2487, 65535
        %v2489 = vshrl.u32 %v2487, 16
        %v2490 = vcvt.s32.f32 %v2488
        %v2491 = vcvt.s32.f32 %v2489
        %2492 = vadd.xlane.f32.xlu0 %v2490
        %v2493 = vpop.xlane.xlu0 %2492
        %2494 = vadd.xlane.f32.xlu0 %v2491
        %v2495 = vpop.xlane.xlu0 %2494
        %v2496 = vcvt.f32.s32 %v2493
        %v2497 = vcvt.f32.s32 %v2495
        %v2498 = vshll.u32 %v2497, 16
        %v2499 = vadd.s32 %v2498, %v2496
        %v2500 = vsel %vm724, %v2479, 0
        %v2501 = vsel %vm724, %v2480, 0
        %v2502 = vadd.s32 %v2500, %v2501
        %v2503 = vand.u32 %v2502, 65535
        %v2504 = vshrl.u32 %v2502, 16
        %v2505 = vcvt.s32.f32 %v2503
        %v2506 = vcvt.s32.f32 %v2504
        %2507 = vadd.xlane.f32.xlu0 %v2505
        %v2508 = vpop.xlane.xlu0 %2507
        %2509 = vadd.xlane.f32.xlu0 %v2506
        %v2510 = vpop.xlane.xlu0 %2509
        %v2511 = vcvt.f32.s32 %v2508
        %v2512 = vcvt.f32.s32 %v2510
        %v2513 = vshll.u32 %v2512, 16
        %v2514 = vadd.s32 %v2513, %v2511
        %v2515 = vsel %vm724, %v2481, 0
        %v2516 = vsel %vm724, %v2482, 0
        %v2517 = vadd.s32 %v2515, %v2516
        %v2518 = vand.u32 %v2517, 65535
        %v2519 = vshrl.u32 %v2517, 16
        %v2520 = vcvt.s32.f32 %v2518
        %v2521 = vcvt.s32.f32 %v2519
        %2522 = vadd.xlane.f32.xlu0 %v2520
        %v2523 = vpop.xlane.xlu0 %2522
        %2524 = vadd.xlane.f32.xlu0 %v2521
        %v2525 = vpop.xlane.xlu0 %2524
        %v2526 = vcvt.f32.s32 %v2523
        %v2527 = vcvt.f32.s32 %v2525
        %v2528 = vshll.u32 %v2527, 16
        %v2529 = vadd.s32 %v2528, %v2526
        %v2530 = vsel %vm724, %v2483, 0
        %v2531 = vsel %vm724, %v2484, 0
        %v2532 = vadd.s32 %v2530, %v2531
        %v2533 = vand.u32 %v2532, 65535
        %v2534 = vshrl.u32 %v2532, 16
        %v2535 = vcvt.s32.f32 %v2533
        %v2536 = vcvt.s32.f32 %v2534
        %2537 = vadd.xlane.f32.xlu0 %v2535
        %v2538 = vpop.xlane.xlu0 %2537
        %2539 = vadd.xlane.f32.xlu0 %v2536
        %v2540 = vpop.xlane.xlu0 %2539
        %v2541 = vcvt.f32.s32 %v2538
        %v2542 = vcvt.f32.s32 %v2540
        %v2543 = vshll.u32 %v2542, 16
        %v2544 = vadd.s32 %v2543, %v2541
        %vm2545 = vcmp.ge.s32.totalorder %v2499, 76
        %vm2546 = vcmp.ge.s32.totalorder %v2514, 76
        %vm2547 = vcmp.ge.s32.totalorder %v2529, 76
        %vm2548 = vcmp.ge.s32.totalorder %v2544, 76
        %v2549 = vsel %vm2545, %v2465, %v2461
        %v2550 = vsel %vm2546, %v2466, %v2462
        %v2551 = vsel %vm2547, %v2467, %v2463
        %v2552 = vsel %vm2548, %v2468, %v2464
        %v2553 = vadd.s32 %v2549, 1024
        %v2554 = vadd.s32 %v2550, 1024
        %v2555 = vadd.s32 %v2551, 1024
        %v2556 = vadd.s32 %v2552, 1024
        %vm2557 = vcmp.ge.s32.totalorder %v700, %v2553
        %vm2558 = vcmp.ge.s32.totalorder %v701, %v2553
        %vm2559 = vcmp.ge.s32.totalorder %v702, %v2554
        %vm2560 = vcmp.ge.s32.totalorder %v703, %v2554
        %vm2561 = vcmp.ge.s32.totalorder %v704, %v2555
        %vm2562 = vcmp.ge.s32.totalorder %v705, %v2555
        %vm2563 = vcmp.ge.s32.totalorder %v706, %v2556
        %vm2564 = vcmp.ge.s32.totalorder %v707, %v2556
        %v2565 = vsel %vm2557, 1, 0
        %v2566 = vsel %vm2558, 1, 0
        %v2567 = vsel %vm2559, 1, 0
        %v2568 = vsel %vm2560, 1, 0
        %v2569 = vsel %vm2561, 1, 0
        %v2570 = vsel %vm2562, 1, 0
        %v2571 = vsel %vm2563, 1, 0
        %v2572 = vsel %vm2564, 1, 0
        %v2573 = vsel %vm724, %v2565, 0
        %v2574 = vsel %vm724, %v2566, 0
        %v2575 = vadd.s32 %v2573, %v2574
        %v2576 = vand.u32 %v2575, 65535
        %v2577 = vshrl.u32 %v2575, 16
        %v2578 = vcvt.s32.f32 %v2576
        %v2579 = vcvt.s32.f32 %v2577
        %2580 = vadd.xlane.f32.xlu0 %v2578
        %v2581 = vpop.xlane.xlu0 %2580
        %2582 = vadd.xlane.f32.xlu0 %v2579
        %v2583 = vpop.xlane.xlu0 %2582
        %v2584 = vcvt.f32.s32 %v2581
        %v2585 = vcvt.f32.s32 %v2583
        %v2586 = vshll.u32 %v2585, 16
        %v2587 = vadd.s32 %v2586, %v2584
        %v2588 = vsel %vm724, %v2567, 0
        %v2589 = vsel %vm724, %v2568, 0
        %v2590 = vadd.s32 %v2588, %v2589
        %v2591 = vand.u32 %v2590, 65535
        %v2592 = vshrl.u32 %v2590, 16
        %v2593 = vcvt.s32.f32 %v2591
        %v2594 = vcvt.s32.f32 %v2592
        %2595 = vadd.xlane.f32.xlu0 %v2593
        %v2596 = vpop.xlane.xlu0 %2595
        %2597 = vadd.xlane.f32.xlu0 %v2594
        %v2598 = vpop.xlane.xlu0 %2597
        %v2599 = vcvt.f32.s32 %v2596
        %v2600 = vcvt.f32.s32 %v2598
        %v2601 = vshll.u32 %v2600, 16
        %v2602 = vadd.s32 %v2601, %v2599
        %v2603 = vsel %vm724, %v2569, 0
        %v2604 = vsel %vm724, %v2570, 0
        %v2605 = vadd.s32 %v2603, %v2604
        %v2606 = vand.u32 %v2605, 65535
        %v2607 = vshrl.u32 %v2605, 16
        %v2608 = vcvt.s32.f32 %v2606
        %v2609 = vcvt.s32.f32 %v2607
        %2610 = vadd.xlane.f32.xlu0 %v2608
        %v2611 = vpop.xlane.xlu0 %2610
        %2612 = vadd.xlane.f32.xlu0 %v2609
        %v2613 = vpop.xlane.xlu0 %2612
        %v2614 = vcvt.f32.s32 %v2611
        %v2615 = vcvt.f32.s32 %v2613
        %v2616 = vshll.u32 %v2615, 16
        %v2617 = vadd.s32 %v2616, %v2614
        %v2618 = vsel %vm724, %v2571, 0
        %v2619 = vsel %vm724, %v2572, 0
        %v2620 = vadd.s32 %v2618, %v2619
        %v2621 = vand.u32 %v2620, 65535
        %v2622 = vshrl.u32 %v2620, 16
        %v2623 = vcvt.s32.f32 %v2621
        %v2624 = vcvt.s32.f32 %v2622
        %2625 = vadd.xlane.f32.xlu0 %v2623
        %v2626 = vpop.xlane.xlu0 %2625
        %2627 = vadd.xlane.f32.xlu0 %v2624
        %v2628 = vpop.xlane.xlu0 %2627
        %v2629 = vcvt.f32.s32 %v2626
        %v2630 = vcvt.f32.s32 %v2628
        %v2631 = vshll.u32 %v2630, 16
        %v2632 = vadd.s32 %v2631, %v2629
        %vm2633 = vcmp.ge.s32.totalorder %v2587, 76
        %vm2634 = vcmp.ge.s32.totalorder %v2602, 76
        %vm2635 = vcmp.ge.s32.totalorder %v2617, 76
        %vm2636 = vcmp.ge.s32.totalorder %v2632, 76
        %v2637 = vsel %vm2633, %v2553, %v2549
        %v2638 = vsel %vm2634, %v2554, %v2550
        %v2639 = vsel %vm2635, %v2555, %v2551
        %v2640 = vsel %vm2636, %v2556, %v2552
        %v2641 = vadd.s32 %v2637, 512
        %v2642 = vadd.s32 %v2638, 512
        %v2643 = vadd.s32 %v2639, 512
        %v2644 = vadd.s32 %v2640, 512
        %vm2645 = vcmp.ge.s32.totalorder %v700, %v2641
        %vm2646 = vcmp.ge.s32.totalorder %v701, %v2641
        %vm2647 = vcmp.ge.s32.totalorder %v702, %v2642
        %vm2648 = vcmp.ge.s32.totalorder %v703, %v2642
        %vm2649 = vcmp.ge.s32.totalorder %v704, %v2643
        %vm2650 = vcmp.ge.s32.totalorder %v705, %v2643
        %vm2651 = vcmp.ge.s32.totalorder %v706, %v2644
        %vm2652 = vcmp.ge.s32.totalorder %v707, %v2644
        %v2653 = vsel %vm2645, 1, 0
        %v2654 = vsel %vm2646, 1, 0
        %v2655 = vsel %vm2647, 1, 0
        %v2656 = vsel %vm2648, 1, 0
        %v2657 = vsel %vm2649, 1, 0
        %v2658 = vsel %vm2650, 1, 0
        %v2659 = vsel %vm2651, 1, 0
        %v2660 = vsel %vm2652, 1, 0
        %v2661 = vsel %vm724, %v2653, 0
        %v2662 = vsel %vm724, %v2654, 0
        %v2663 = vadd.s32 %v2661, %v2662
        %v2664 = vand.u32 %v2663, 65535
        %v2665 = vshrl.u32 %v2663, 16
        %v2666 = vcvt.s32.f32 %v2664
        %v2667 = vcvt.s32.f32 %v2665
        %2668 = vadd.xlane.f32.xlu0 %v2666
        %v2669 = vpop.xlane.xlu0 %2668
        %2670 = vadd.xlane.f32.xlu0 %v2667
        %v2671 = vpop.xlane.xlu0 %2670
        %v2672 = vcvt.f32.s32 %v2669
        %v2673 = vcvt.f32.s32 %v2671
        %v2674 = vshll.u32 %v2673, 16
        %v2675 = vadd.s32 %v2674, %v2672
        %v2676 = vsel %vm724, %v2655, 0
        %v2677 = vsel %vm724, %v2656, 0
        %v2678 = vadd.s32 %v2676, %v2677
        %v2679 = vand.u32 %v2678, 65535
        %v2680 = vshrl.u32 %v2678, 16
        %v2681 = vcvt.s32.f32 %v2679
        %v2682 = vcvt.s32.f32 %v2680
        %2683 = vadd.xlane.f32.xlu0 %v2681
        %v2684 = vpop.xlane.xlu0 %2683
        %2685 = vadd.xlane.f32.xlu0 %v2682
        %v2686 = vpop.xlane.xlu0 %2685
        %v2687 = vcvt.f32.s32 %v2684
        %v2688 = vcvt.f32.s32 %v2686
        %v2689 = vshll.u32 %v2688, 16
        %v2690 = vadd.s32 %v2689, %v2687
        %v2691 = vsel %vm724, %v2657, 0
        %v2692 = vsel %vm724, %v2658, 0
        %v2693 = vadd.s32 %v2691, %v2692
        %v2694 = vand.u32 %v2693, 65535
        %v2695 = vshrl.u32 %v2693, 16
        %v2696 = vcvt.s32.f32 %v2694
        %v2697 = vcvt.s32.f32 %v2695
        %2698 = vadd.xlane.f32.xlu0 %v2696
        %v2699 = vpop.xlane.xlu0 %2698
        %2700 = vadd.xlane.f32.xlu0 %v2697
        %v2701 = vpop.xlane.xlu0 %2700
        %v2702 = vcvt.f32.s32 %v2699
        %v2703 = vcvt.f32.s32 %v2701
        %v2704 = vshll.u32 %v2703, 16
        %v2705 = vadd.s32 %v2704, %v2702
        %v2706 = vsel %vm724, %v2659, 0
        %v2707 = vsel %vm724, %v2660, 0
        %v2708 = vadd.s32 %v2706, %v2707
        %v2709 = vand.u32 %v2708, 65535
        %v2710 = vshrl.u32 %v2708, 16
        %v2711 = vcvt.s32.f32 %v2709
        %v2712 = vcvt.s32.f32 %v2710
        %2713 = vadd.xlane.f32.xlu0 %v2711
        %v2714 = vpop.xlane.xlu0 %2713
        %2715 = vadd.xlane.f32.xlu0 %v2712
        %v2716 = vpop.xlane.xlu0 %2715
        %v2717 = vcvt.f32.s32 %v2714
        %v2718 = vcvt.f32.s32 %v2716
        %v2719 = vshll.u32 %v2718, 16
        %v2720 = vadd.s32 %v2719, %v2717
        %vm2721 = vcmp.ge.s32.totalorder %v2675, 76
        %vm2722 = vcmp.ge.s32.totalorder %v2690, 76
        %vm2723 = vcmp.ge.s32.totalorder %v2705, 76
        %vm2724 = vcmp.ge.s32.totalorder %v2720, 76
        %v2725 = vsel %vm2721, %v2641, %v2637
        %v2726 = vsel %vm2722, %v2642, %v2638
        %v2727 = vsel %vm2723, %v2643, %v2639
        %v2728 = vsel %vm2724, %v2644, %v2640
        %v2729 = vadd.s32 %v2725, 256
        %v2730 = vadd.s32 %v2726, 256
        %v2731 = vadd.s32 %v2727, 256
        %v2732 = vadd.s32 %v2728, 256
        %vm2733 = vcmp.ge.s32.totalorder %v700, %v2729
        %vm2734 = vcmp.ge.s32.totalorder %v701, %v2729
        %vm2735 = vcmp.ge.s32.totalorder %v702, %v2730
        %vm2736 = vcmp.ge.s32.totalorder %v703, %v2730
        %vm2737 = vcmp.ge.s32.totalorder %v704, %v2731
        %vm2738 = vcmp.ge.s32.totalorder %v705, %v2731
        %vm2739 = vcmp.ge.s32.totalorder %v706, %v2732
        %vm2740 = vcmp.ge.s32.totalorder %v707, %v2732
        %v2741 = vsel %vm2733, 1, 0
        %v2742 = vsel %vm2734, 1, 0
        %v2743 = vsel %vm2735, 1, 0
        %v2744 = vsel %vm2736, 1, 0
        %v2745 = vsel %vm2737, 1, 0
        %v2746 = vsel %vm2738, 1, 0
        %v2747 = vsel %vm2739, 1, 0
        %v2748 = vsel %vm2740, 1, 0
        %v2749 = vsel %vm724, %v2741, 0
        %v2750 = vsel %vm724, %v2742, 0
        %v2751 = vadd.s32 %v2749, %v2750
        %v2752 = vand.u32 %v2751, 65535
        %v2753 = vshrl.u32 %v2751, 16
        %v2754 = vcvt.s32.f32 %v2752
        %v2755 = vcvt.s32.f32 %v2753
        %2756 = vadd.xlane.f32.xlu0 %v2754
        %v2757 = vpop.xlane.xlu0 %2756
        %2758 = vadd.xlane.f32.xlu0 %v2755
        %v2759 = vpop.xlane.xlu0 %2758
        %v2760 = vcvt.f32.s32 %v2757
        %v2761 = vcvt.f32.s32 %v2759
        %v2762 = vshll.u32 %v2761, 16
        %v2763 = vadd.s32 %v2762, %v2760
        %v2764 = vsel %vm724, %v2743, 0
        %v2765 = vsel %vm724, %v2744, 0
        %v2766 = vadd.s32 %v2764, %v2765
        %v2767 = vand.u32 %v2766, 65535
        %v2768 = vshrl.u32 %v2766, 16
        %v2769 = vcvt.s32.f32 %v2767
        %v2770 = vcvt.s32.f32 %v2768
        %2771 = vadd.xlane.f32.xlu0 %v2769
        %v2772 = vpop.xlane.xlu0 %2771
        %2773 = vadd.xlane.f32.xlu0 %v2770
        %v2774 = vpop.xlane.xlu0 %2773
        %v2775 = vcvt.f32.s32 %v2772
        %v2776 = vcvt.f32.s32 %v2774
        %v2777 = vshll.u32 %v2776, 16
        %v2778 = vadd.s32 %v2777, %v2775
        %v2779 = vsel %vm724, %v2745, 0
        %v2780 = vsel %vm724, %v2746, 0
        %v2781 = vadd.s32 %v2779, %v2780
        %v2782 = vand.u32 %v2781, 65535
        %v2783 = vshrl.u32 %v2781, 16
        %v2784 = vcvt.s32.f32 %v2782
        %v2785 = vcvt.s32.f32 %v2783
        %2786 = vadd.xlane.f32.xlu0 %v2784
        %v2787 = vpop.xlane.xlu0 %2786
        %2788 = vadd.xlane.f32.xlu0 %v2785
        %v2789 = vpop.xlane.xlu0 %2788
        %v2790 = vcvt.f32.s32 %v2787
        %v2791 = vcvt.f32.s32 %v2789
        %v2792 = vshll.u32 %v2791, 16
        %v2793 = vadd.s32 %v2792, %v2790
        %v2794 = vsel %vm724, %v2747, 0
        %v2795 = vsel %vm724, %v2748, 0
        %v2796 = vadd.s32 %v2794, %v2795
        %v2797 = vand.u32 %v2796, 65535
        %v2798 = vshrl.u32 %v2796, 16
        %v2799 = vcvt.s32.f32 %v2797
        %v2800 = vcvt.s32.f32 %v2798
        %2801 = vadd.xlane.f32.xlu0 %v2799
        %v2802 = vpop.xlane.xlu0 %2801
        %2803 = vadd.xlane.f32.xlu0 %v2800
        %v2804 = vpop.xlane.xlu0 %2803
        %v2805 = vcvt.f32.s32 %v2802
        %v2806 = vcvt.f32.s32 %v2804
        %v2807 = vshll.u32 %v2806, 16
        %v2808 = vadd.s32 %v2807, %v2805
        %vm2809 = vcmp.ge.s32.totalorder %v2763, 76
        %vm2810 = vcmp.ge.s32.totalorder %v2778, 76
        %vm2811 = vcmp.ge.s32.totalorder %v2793, 76
        %vm2812 = vcmp.ge.s32.totalorder %v2808, 76
        %v2813 = vsel %vm2809, %v2729, %v2725
        %v2814 = vsel %vm2810, %v2730, %v2726
        %v2815 = vsel %vm2811, %v2731, %v2727
        %v2816 = vsel %vm2812, %v2732, %v2728
        %v2817 = vadd.s32 %v2813, 128
        %v2818 = vadd.s32 %v2814, 128
        %v2819 = vadd.s32 %v2815, 128
        %v2820 = vadd.s32 %v2816, 128
        %vm2821 = vcmp.ge.s32.totalorder %v700, %v2817
        %vm2822 = vcmp.ge.s32.totalorder %v701, %v2817
        %vm2823 = vcmp.ge.s32.totalorder %v702, %v2818
        %vm2824 = vcmp.ge.s32.totalorder %v703, %v2818
        %vm2825 = vcmp.ge.s32.totalorder %v704, %v2819
        %vm2826 = vcmp.ge.s32.totalorder %v705, %v2819
        %vm2827 = vcmp.ge.s32.totalorder %v706, %v2820
        %vm2828 = vcmp.ge.s32.totalorder %v707, %v2820
        %v2829 = vsel %vm2821, 1, 0
        %v2830 = vsel %vm2822, 1, 0
        %v2831 = vsel %vm2823, 1, 0
        %v2832 = vsel %vm2824, 1, 0
        %v2833 = vsel %vm2825, 1, 0
        %v2834 = vsel %vm2826, 1, 0
        %v2835 = vsel %vm2827, 1, 0
        %v2836 = vsel %vm2828, 1, 0
        %v2837 = vsel %vm724, %v2829, 0
        %v2838 = vsel %vm724, %v2830, 0
        %v2839 = vadd.s32 %v2837, %v2838
        %v2840 = vand.u32 %v2839, 65535
        %v2841 = vshrl.u32 %v2839, 16
        %v2842 = vcvt.s32.f32 %v2840
        %v2843 = vcvt.s32.f32 %v2841
        %2844 = vadd.xlane.f32.xlu0 %v2842
        %v2845 = vpop.xlane.xlu0 %2844
        %2846 = vadd.xlane.f32.xlu0 %v2843
        %v2847 = vpop.xlane.xlu0 %2846
        %v2848 = vcvt.f32.s32 %v2845
        %v2849 = vcvt.f32.s32 %v2847
        %v2850 = vshll.u32 %v2849, 16
        %v2851 = vadd.s32 %v2850, %v2848
        %v2852 = vsel %vm724, %v2831, 0
        %v2853 = vsel %vm724, %v2832, 0
        %v2854 = vadd.s32 %v2852, %v2853
        %v2855 = vand.u32 %v2854, 65535
        %v2856 = vshrl.u32 %v2854, 16
        %v2857 = vcvt.s32.f32 %v2855
        %v2858 = vcvt.s32.f32 %v2856
        %2859 = vadd.xlane.f32.xlu0 %v2857
        %v2860 = vpop.xlane.xlu0 %2859
        %2861 = vadd.xlane.f32.xlu0 %v2858
        %v2862 = vpop.xlane.xlu0 %2861
        %v2863 = vcvt.f32.s32 %v2860
        %v2864 = vcvt.f32.s32 %v2862
        %v2865 = vshll.u32 %v2864, 16
        %v2866 = vadd.s32 %v2865, %v2863
        %v2867 = vsel %vm724, %v2833, 0
        %v2868 = vsel %vm724, %v2834, 0
        %v2869 = vadd.s32 %v2867, %v2868
        %v2870 = vand.u32 %v2869, 65535
        %v2871 = vshrl.u32 %v2869, 16
        %v2872 = vcvt.s32.f32 %v2870
        %v2873 = vcvt.s32.f32 %v2871
        %2874 = vadd.xlane.f32.xlu0 %v2872
        %v2875 = vpop.xlane.xlu0 %2874
        %2876 = vadd.xlane.f32.xlu0 %v2873
        %v2877 = vpop.xlane.xlu0 %2876
        %v2878 = vcvt.f32.s32 %v2875
        %v2879 = vcvt.f32.s32 %v2877
        %v2880 = vshll.u32 %v2879, 16
        %v2881 = vadd.s32 %v2880, %v2878
        %v2882 = vsel %vm724, %v2835, 0
        %v2883 = vsel %vm724, %v2836, 0
        %v2884 = vadd.s32 %v2882, %v2883
        %v2885 = vand.u32 %v2884, 65535
        %v2886 = vshrl.u32 %v2884, 16
        %v2887 = vcvt.s32.f32 %v2885
        %v2888 = vcvt.s32.f32 %v2886
        %2889 = vadd.xlane.f32.xlu0 %v2887
        %v2890 = vpop.xlane.xlu0 %2889
        %2891 = vadd.xlane.f32.xlu0 %v2888
        %v2892 = vpop.xlane.xlu0 %2891
        %v2893 = vcvt.f32.s32 %v2890
        %v2894 = vcvt.f32.s32 %v2892
        %v2895 = vshll.u32 %v2894, 16
        %v2896 = vadd.s32 %v2895, %v2893
        %vm2897 = vcmp.ge.s32.totalorder %v2851, 76
        %vm2898 = vcmp.ge.s32.totalorder %v2866, 76
        %vm2899 = vcmp.ge.s32.totalorder %v2881, 76
        %vm2900 = vcmp.ge.s32.totalorder %v2896, 76
        %v2901 = vsel %vm2897, %v2817, %v2813
        %v2902 = vsel %vm2898, %v2818, %v2814
        %v2903 = vsel %vm2899, %v2819, %v2815
        %v2904 = vsel %vm2900, %v2820, %v2816
        %v2905 = vadd.s32 %v2901, 64
        %v2906 = vadd.s32 %v2902, 64
        %v2907 = vadd.s32 %v2903, 64
        %v2908 = vadd.s32 %v2904, 64
        %vm2909 = vcmp.ge.s32.totalorder %v700, %v2905
        %vm2910 = vcmp.ge.s32.totalorder %v701, %v2905
        %vm2911 = vcmp.ge.s32.totalorder %v702, %v2906
        %vm2912 = vcmp.ge.s32.totalorder %v703, %v2906
        %vm2913 = vcmp.ge.s32.totalorder %v704, %v2907
        %vm2914 = vcmp.ge.s32.totalorder %v705, %v2907
        %vm2915 = vcmp.ge.s32.totalorder %v706, %v2908
        %vm2916 = vcmp.ge.s32.totalorder %v707, %v2908
        %v2917 = vsel %vm2909, 1, 0
        %v2918 = vsel %vm2910, 1, 0
        %v2919 = vsel %vm2911, 1, 0
        %v2920 = vsel %vm2912, 1, 0
        %v2921 = vsel %vm2913, 1, 0
        %v2922 = vsel %vm2914, 1, 0
        %v2923 = vsel %vm2915, 1, 0
        %v2924 = vsel %vm2916, 1, 0
        %v2925 = vsel %vm724, %v2917, 0
        %v2926 = vsel %vm724, %v2918, 0
        %v2927 = vadd.s32 %v2925, %v2926
        %v2928 = vand.u32 %v2927, 65535
        %v2929 = vshrl.u32 %v2927, 16
        %v2930 = vcvt.s32.f32 %v2928
        %v2931 = vcvt.s32.f32 %v2929
        %2932 = vadd.xlane.f32.xlu0 %v2930
        %v2933 = vpop.xlane.xlu0 %2932
        %2934 = vadd.xlane.f32.xlu0 %v2931
        %v2935 = vpop.xlane.xlu0 %2934
        %v2936 = vcvt.f32.s32 %v2933
        %v2937 = vcvt.f32.s32 %v2935
        %v2938 = vshll.u32 %v2937, 16
        %v2939 = vadd.s32 %v2938, %v2936
        %v2940 = vsel %vm724, %v2919, 0
        %v2941 = vsel %vm724, %v2920, 0
        %v2942 = vadd.s32 %v2940, %v2941
        %v2943 = vand.u32 %v2942, 65535
        %v2944 = vshrl.u32 %v2942, 16
        %v2945 = vcvt.s32.f32 %v2943
        %v2946 = vcvt.s32.f32 %v2944
        %2947 = vadd.xlane.f32.xlu0 %v2945
        %v2948 = vpop.xlane.xlu0 %2947
        %2949 = vadd.xlane.f32.xlu0 %v2946
        %v2950 = vpop.xlane.xlu0 %2949
        %v2951 = vcvt.f32.s32 %v2948
        %v2952 = vcvt.f32.s32 %v2950
        %v2953 = vshll.u32 %v2952, 16
        %v2954 = vadd.s32 %v2953, %v2951
        %v2955 = vsel %vm724, %v2921, 0
        %v2956 = vsel %vm724, %v2922, 0
        %v2957 = vadd.s32 %v2955, %v2956
        %v2958 = vand.u32 %v2957, 65535
        %v2959 = vshrl.u32 %v2957, 16
        %v2960 = vcvt.s32.f32 %v2958
        %v2961 = vcvt.s32.f32 %v2959
        %2962 = vadd.xlane.f32.xlu0 %v2960
        %v2963 = vpop.xlane.xlu0 %2962
        %2964 = vadd.xlane.f32.xlu0 %v2961
        %v2965 = vpop.xlane.xlu0 %2964
        %v2966 = vcvt.f32.s32 %v2963
        %v2967 = vcvt.f32.s32 %v2965
        %v2968 = vshll.u32 %v2967, 16
        %v2969 = vadd.s32 %v2968, %v2966
        %v2970 = vsel %vm724, %v2923, 0
        %v2971 = vsel %vm724, %v2924, 0
        %v2972 = vadd.s32 %v2970, %v2971
        %v2973 = vand.u32 %v2972, 65535
        %v2974 = vshrl.u32 %v2972, 16
        %v2975 = vcvt.s32.f32 %v2973
        %v2976 = vcvt.s32.f32 %v2974
        %2977 = vadd.xlane.f32.xlu0 %v2975
        %v2978 = vpop.xlane.xlu0 %2977
        %2979 = vadd.xlane.f32.xlu0 %v2976
        %v2980 = vpop.xlane.xlu0 %2979
        %v2981 = vcvt.f32.s32 %v2978
        %v2982 = vcvt.f32.s32 %v2980
        %v2983 = vshll.u32 %v2982, 16
        %v2984 = vadd.s32 %v2983, %v2981
        %vm2985 = vcmp.ge.s32.totalorder %v2939, 76
        %vm2986 = vcmp.ge.s32.totalorder %v2954, 76
        %vm2987 = vcmp.ge.s32.totalorder %v2969, 76
        %vm2988 = vcmp.ge.s32.totalorder %v2984, 76
        %v2989 = vsel %vm2985, %v2905, %v2901
        %v2990 = vsel %vm2986, %v2906, %v2902
        %v2991 = vsel %vm2987, %v2907, %v2903
        %v2992 = vsel %vm2988, %v2908, %v2904
        %v2993 = vadd.s32 %v2989, 32
        %v2994 = vadd.s32 %v2990, 32
        %v2995 = vadd.s32 %v2991, 32
        %v2996 = vadd.s32 %v2992, 32
        %vm2997 = vcmp.ge.s32.totalorder %v700, %v2993
        %vm2998 = vcmp.ge.s32.totalorder %v701, %v2993
        %vm2999 = vcmp.ge.s32.totalorder %v702, %v2994
        %vm3000 = vcmp.ge.s32.totalorder %v703, %v2994
        %vm3001 = vcmp.ge.s32.totalorder %v704, %v2995
        %vm3002 = vcmp.ge.s32.totalorder %v705, %v2995
        %vm3003 = vcmp.ge.s32.totalorder %v706, %v2996
        %vm3004 = vcmp.ge.s32.totalorder %v707, %v2996
        %v3005 = vsel %vm2997, 1, 0
        %v3006 = vsel %vm2998, 1, 0
        %v3007 = vsel %vm2999, 1, 0
        %v3008 = vsel %vm3000, 1, 0
        %v3009 = vsel %vm3001, 1, 0
        %v3010 = vsel %vm3002, 1, 0
        %v3011 = vsel %vm3003, 1, 0
        %v3012 = vsel %vm3004, 1, 0
        %v3013 = vsel %vm724, %v3005, 0
        %v3014 = vsel %vm724, %v3006, 0
        %v3015 = vadd.s32 %v3013, %v3014
        %v3016 = vand.u32 %v3015, 65535
        %v3017 = vshrl.u32 %v3015, 16
        %v3018 = vcvt.s32.f32 %v3016
        %v3019 = vcvt.s32.f32 %v3017
        %3020 = vadd.xlane.f32.xlu0 %v3018
        %v3021 = vpop.xlane.xlu0 %3020
        %3022 = vadd.xlane.f32.xlu0 %v3019
        %v3023 = vpop.xlane.xlu0 %3022
        %v3024 = vcvt.f32.s32 %v3021
        %v3025 = vcvt.f32.s32 %v3023
        %v3026 = vshll.u32 %v3025, 16
        %v3027 = vadd.s32 %v3026, %v3024
        %v3028 = vsel %vm724, %v3007, 0
        %v3029 = vsel %vm724, %v3008, 0
        %v3030 = vadd.s32 %v3028, %v3029
        %v3031 = vand.u32 %v3030, 65535
        %v3032 = vshrl.u32 %v3030, 16
        %v3033 = vcvt.s32.f32 %v3031
        %v3034 = vcvt.s32.f32 %v3032
        %3035 = vadd.xlane.f32.xlu0 %v3033
        %v3036 = vpop.xlane.xlu0 %3035
        %3037 = vadd.xlane.f32.xlu0 %v3034
        %v3038 = vpop.xlane.xlu0 %3037
        %v3039 = vcvt.f32.s32 %v3036
        %v3040 = vcvt.f32.s32 %v3038
        %v3041 = vshll.u32 %v3040, 16
        %v3042 = vadd.s32 %v3041, %v3039
        %v3043 = vsel %vm724, %v3009, 0
        %v3044 = vsel %vm724, %v3010, 0
        %v3045 = vadd.s32 %v3043, %v3044
        %v3046 = vand.u32 %v3045, 65535
        %v3047 = vshrl.u32 %v3045, 16
        %v3048 = vcvt.s32.f32 %v3046
        %v3049 = vcvt.s32.f32 %v3047
        %3050 = vadd.xlane.f32.xlu0 %v3048
        %v3051 = vpop.xlane.xlu0 %3050
        %3052 = vadd.xlane.f32.xlu0 %v3049
        %v3053 = vpop.xlane.xlu0 %3052
        %v3054 = vcvt.f32.s32 %v3051
        %v3055 = vcvt.f32.s32 %v3053
        %v3056 = vshll.u32 %v3055, 16
        %v3057 = vadd.s32 %v3056, %v3054
        %v3058 = vsel %vm724, %v3011, 0
        %v3059 = vsel %vm724, %v3012, 0
        %v3060 = vadd.s32 %v3058, %v3059
        %v3061 = vand.u32 %v3060, 65535
        %v3062 = vshrl.u32 %v3060, 16
        %v3063 = vcvt.s32.f32 %v3061
        %v3064 = vcvt.s32.f32 %v3062
        %3065 = vadd.xlane.f32.xlu0 %v3063
        %v3066 = vpop.xlane.xlu0 %3065
        %3067 = vadd.xlane.f32.xlu0 %v3064
        %v3068 = vpop.xlane.xlu0 %3067
        %v3069 = vcvt.f32.s32 %v3066
        %v3070 = vcvt.f32.s32 %v3068
        %v3071 = vshll.u32 %v3070, 16
        %v3072 = vadd.s32 %v3071, %v3069
        %vm3073 = vcmp.ge.s32.totalorder %v3027, 76
        %vm3074 = vcmp.ge.s32.totalorder %v3042, 76
        %vm3075 = vcmp.ge.s32.totalorder %v3057, 76
        %vm3076 = vcmp.ge.s32.totalorder %v3072, 76
        %v3077 = vsel %vm3073, %v2993, %v2989
        %v3078 = vsel %vm3074, %v2994, %v2990
        %v3079 = vsel %vm3075, %v2995, %v2991
        %v3080 = vsel %vm3076, %v2996, %v2992
        %v3081 = vadd.s32 %v3077, 16
        %v3082 = vadd.s32 %v3078, 16
        %v3083 = vadd.s32 %v3079, 16
        %v3084 = vadd.s32 %v3080, 16
        %vm3085 = vcmp.ge.s32.totalorder %v700, %v3081
        %vm3086 = vcmp.ge.s32.totalorder %v701, %v3081
        %vm3087 = vcmp.ge.s32.totalorder %v702, %v3082
        %vm3088 = vcmp.ge.s32.totalorder %v703, %v3082
        %vm3089 = vcmp.ge.s32.totalorder %v704, %v3083
        %vm3090 = vcmp.ge.s32.totalorder %v705, %v3083
        %vm3091 = vcmp.ge.s32.totalorder %v706, %v3084
        %vm3092 = vcmp.ge.s32.totalorder %v707, %v3084
        %v3093 = vsel %vm3085, 1, 0
        %v3094 = vsel %vm3086, 1, 0
        %v3095 = vsel %vm3087, 1, 0
        %v3096 = vsel %vm3088, 1, 0
        %v3097 = vsel %vm3089, 1, 0
        %v3098 = vsel %vm3090, 1, 0
        %v3099 = vsel %vm3091, 1, 0
        %v3100 = vsel %vm3092, 1, 0
        %v3101 = vsel %vm724, %v3093, 0
        %v3102 = vsel %vm724, %v3094, 0
        %v3103 = vadd.s32 %v3101, %v3102
        %v3104 = vand.u32 %v3103, 65535
        %v3105 = vshrl.u32 %v3103, 16
        %v3106 = vcvt.s32.f32 %v3104
        %v3107 = vcvt.s32.f32 %v3105
        %3108 = vadd.xlane.f32.xlu0 %v3106
        %v3109 = vpop.xlane.xlu0 %3108
        %3110 = vadd.xlane.f32.xlu0 %v3107
        %v3111 = vpop.xlane.xlu0 %3110
        %v3112 = vcvt.f32.s32 %v3109
        %v3113 = vcvt.f32.s32 %v3111
        %v3114 = vshll.u32 %v3113, 16
        %v3115 = vadd.s32 %v3114, %v3112
        %v3116 = vsel %vm724, %v3095, 0
        %v3117 = vsel %vm724, %v3096, 0
        %v3118 = vadd.s32 %v3116, %v3117
        %v3119 = vand.u32 %v3118, 65535
        %v3120 = vshrl.u32 %v3118, 16
        %v3121 = vcvt.s32.f32 %v3119
        %v3122 = vcvt.s32.f32 %v3120
        %3123 = vadd.xlane.f32.xlu0 %v3121
        %v3124 = vpop.xlane.xlu0 %3123
        %3125 = vadd.xlane.f32.xlu0 %v3122
        %v3126 = vpop.xlane.xlu0 %3125
        %v3127 = vcvt.f32.s32 %v3124
        %v3128 = vcvt.f32.s32 %v3126
        %v3129 = vshll.u32 %v3128, 16
        %v3130 = vadd.s32 %v3129, %v3127
        %v3131 = vsel %vm724, %v3097, 0
        %v3132 = vsel %vm724, %v3098, 0
        %v3133 = vadd.s32 %v3131, %v3132
        %v3134 = vand.u32 %v3133, 65535
        %v3135 = vshrl.u32 %v3133, 16
        %v3136 = vcvt.s32.f32 %v3134
        %v3137 = vcvt.s32.f32 %v3135
        %3138 = vadd.xlane.f32.xlu0 %v3136
        %v3139 = vpop.xlane.xlu0 %3138
        %3140 = vadd.xlane.f32.xlu0 %v3137
        %v3141 = vpop.xlane.xlu0 %3140
        %v3142 = vcvt.f32.s32 %v3139
        %v3143 = vcvt.f32.s32 %v3141
        %v3144 = vshll.u32 %v3143, 16
        %v3145 = vadd.s32 %v3144, %v3142
        %v3146 = vsel %vm724, %v3099, 0
        %v3147 = vsel %vm724, %v3100, 0
        %v3148 = vadd.s32 %v3146, %v3147
        %v3149 = vand.u32 %v3148, 65535
        %v3150 = vshrl.u32 %v3148, 16
        %v3151 = vcvt.s32.f32 %v3149
        %v3152 = vcvt.s32.f32 %v3150
        %3153 = vadd.xlane.f32.xlu0 %v3151
        %v3154 = vpop.xlane.xlu0 %3153
        %3155 = vadd.xlane.f32.xlu0 %v3152
        %v3156 = vpop.xlane.xlu0 %3155
        %v3157 = vcvt.f32.s32 %v3154
        %v3158 = vcvt.f32.s32 %v3156
        %v3159 = vshll.u32 %v3158, 16
        %v3160 = vadd.s32 %v3159, %v3157
        %vm3161 = vcmp.ge.s32.totalorder %v3115, 76
        %vm3162 = vcmp.ge.s32.totalorder %v3130, 76
        %vm3163 = vcmp.ge.s32.totalorder %v3145, 76
        %vm3164 = vcmp.ge.s32.totalorder %v3160, 76
        %v3165 = vsel %vm3161, %v3081, %v3077
        %v3166 = vsel %vm3162, %v3082, %v3078
        %v3167 = vsel %vm3163, %v3083, %v3079
        %v3168 = vsel %vm3164, %v3084, %v3080
        %v3169 = vadd.s32 %v3165, 8
        %v3170 = vadd.s32 %v3166, 8
        %v3171 = vadd.s32 %v3167, 8
        %v3172 = vadd.s32 %v3168, 8
        %vm3173 = vcmp.ge.s32.totalorder %v700, %v3169
        %vm3174 = vcmp.ge.s32.totalorder %v701, %v3169
        %vm3175 = vcmp.ge.s32.totalorder %v702, %v3170
        %vm3176 = vcmp.ge.s32.totalorder %v703, %v3170
        %vm3177 = vcmp.ge.s32.totalorder %v704, %v3171
        %vm3178 = vcmp.ge.s32.totalorder %v705, %v3171
        %vm3179 = vcmp.ge.s32.totalorder %v706, %v3172
        %vm3180 = vcmp.ge.s32.totalorder %v707, %v3172
        %v3181 = vsel %vm3173, 1, 0
        %v3182 = vsel %vm3174, 1, 0
        %v3183 = vsel %vm3175, 1, 0
        %v3184 = vsel %vm3176, 1, 0
        %v3185 = vsel %vm3177, 1, 0
        %v3186 = vsel %vm3178, 1, 0
        %v3187 = vsel %vm3179, 1, 0
        %v3188 = vsel %vm3180, 1, 0
        %v3189 = vsel %vm724, %v3181, 0
        %v3190 = vsel %vm724, %v3182, 0
        %v3191 = vadd.s32 %v3189, %v3190
        %v3192 = vand.u32 %v3191, 65535
        %v3193 = vshrl.u32 %v3191, 16
        %v3194 = vcvt.s32.f32 %v3192
        %v3195 = vcvt.s32.f32 %v3193
        %3196 = vadd.xlane.f32.xlu0 %v3194
        %v3197 = vpop.xlane.xlu0 %3196
        %3198 = vadd.xlane.f32.xlu0 %v3195
        %v3199 = vpop.xlane.xlu0 %3198
        %v3200 = vcvt.f32.s32 %v3197
        %v3201 = vcvt.f32.s32 %v3199
        %v3202 = vshll.u32 %v3201, 16
        %v3203 = vadd.s32 %v3202, %v3200
        %v3204 = vsel %vm724, %v3183, 0
        %v3205 = vsel %vm724, %v3184, 0
        %v3206 = vadd.s32 %v3204, %v3205
        %v3207 = vand.u32 %v3206, 65535
        %v3208 = vshrl.u32 %v3206, 16
        %v3209 = vcvt.s32.f32 %v3207
        %v3210 = vcvt.s32.f32 %v3208
        %3211 = vadd.xlane.f32.xlu0 %v3209
        %v3212 = vpop.xlane.xlu0 %3211
        %3213 = vadd.xlane.f32.xlu0 %v3210
        %v3214 = vpop.xlane.xlu0 %3213
        %v3215 = vcvt.f32.s32 %v3212
        %v3216 = vcvt.f32.s32 %v3214
        %v3217 = vshll.u32 %v3216, 16
        %v3218 = vadd.s32 %v3217, %v3215
        %v3219 = vsel %vm724, %v3185, 0
        %v3220 = vsel %vm724, %v3186, 0
        %v3221 = vadd.s32 %v3219, %v3220
        %v3222 = vand.u32 %v3221, 65535
        %v3223 = vshrl.u32 %v3221, 16
        %v3224 = vcvt.s32.f32 %v3222
        %v3225 = vcvt.s32.f32 %v3223
        %3226 = vadd.xlane.f32.xlu0 %v3224
        %v3227 = vpop.xlane.xlu0 %3226
        %3228 = vadd.xlane.f32.xlu0 %v3225
        %v3229 = vpop.xlane.xlu0 %3228
        %v3230 = vcvt.f32.s32 %v3227
        %v3231 = vcvt.f32.s32 %v3229
        %v3232 = vshll.u32 %v3231, 16
        %v3233 = vadd.s32 %v3232, %v3230
        %v3234 = vsel %vm724, %v3187, 0
        %v3235 = vsel %vm724, %v3188, 0
        %v3236 = vadd.s32 %v3234, %v3235
        %v3237 = vand.u32 %v3236, 65535
        %v3238 = vshrl.u32 %v3236, 16
        %v3239 = vcvt.s32.f32 %v3237
        %v3240 = vcvt.s32.f32 %v3238
        %3241 = vadd.xlane.f32.xlu0 %v3239
        %v3242 = vpop.xlane.xlu0 %3241
        %3243 = vadd.xlane.f32.xlu0 %v3240
        %v3244 = vpop.xlane.xlu0 %3243
        %v3245 = vcvt.f32.s32 %v3242
        %v3246 = vcvt.f32.s32 %v3244
        %v3247 = vshll.u32 %v3246, 16
        %v3248 = vadd.s32 %v3247, %v3245
        %vm3249 = vcmp.ge.s32.totalorder %v3203, 76
        %vm3250 = vcmp.ge.s32.totalorder %v3218, 76
        %vm3251 = vcmp.ge.s32.totalorder %v3233, 76
        %vm3252 = vcmp.ge.s32.totalorder %v3248, 76
        %v3253 = vsel %vm3249, %v3169, %v3165
        %v3254 = vsel %vm3250, %v3170, %v3166
        %v3255 = vsel %vm3251, %v3171, %v3167
        %v3256 = vsel %vm3252, %v3172, %v3168
        %v3257 = vadd.s32 %v3253, 4
        %v3258 = vadd.s32 %v3254, 4
        %v3259 = vadd.s32 %v3255, 4
        %v3260 = vadd.s32 %v3256, 4
        %vm3261 = vcmp.ge.s32.totalorder %v700, %v3257
        %vm3262 = vcmp.ge.s32.totalorder %v701, %v3257
        %vm3263 = vcmp.ge.s32.totalorder %v702, %v3258
        %vm3264 = vcmp.ge.s32.totalorder %v703, %v3258
        %vm3265 = vcmp.ge.s32.totalorder %v704, %v3259
        %vm3266 = vcmp.ge.s32.totalorder %v705, %v3259
        %vm3267 = vcmp.ge.s32.totalorder %v706, %v3260
        %vm3268 = vcmp.ge.s32.totalorder %v707, %v3260
        %v3269 = vsel %vm3261, 1, 0
        %v3270 = vsel %vm3262, 1, 0
        %v3271 = vsel %vm3263, 1, 0
        %v3272 = vsel %vm3264, 1, 0
        %v3273 = vsel %vm3265, 1, 0
        %v3274 = vsel %vm3266, 1, 0
        %v3275 = vsel %vm3267, 1, 0
        %v3276 = vsel %vm3268, 1, 0
        %v3277 = vsel %vm724, %v3269, 0
        %v3278 = vsel %vm724, %v3270, 0
        %v3279 = vadd.s32 %v3277, %v3278
        %v3280 = vand.u32 %v3279, 65535
        %v3281 = vshrl.u32 %v3279, 16
        %v3282 = vcvt.s32.f32 %v3280
        %v3283 = vcvt.s32.f32 %v3281
        %3284 = vadd.xlane.f32.xlu0 %v3282
        %v3285 = vpop.xlane.xlu0 %3284
        %3286 = vadd.xlane.f32.xlu0 %v3283
        %v3287 = vpop.xlane.xlu0 %3286
        %v3288 = vcvt.f32.s32 %v3285
        %v3289 = vcvt.f32.s32 %v3287
        %v3290 = vshll.u32 %v3289, 16
        %v3291 = vadd.s32 %v3290, %v3288
        %v3292 = vsel %vm724, %v3271, 0
        %v3293 = vsel %vm724, %v3272, 0
        %v3294 = vadd.s32 %v3292, %v3293
        %v3295 = vand.u32 %v3294, 65535
        %v3296 = vshrl.u32 %v3294, 16
        %v3297 = vcvt.s32.f32 %v3295
        %v3298 = vcvt.s32.f32 %v3296
        %3299 = vadd.xlane.f32.xlu0 %v3297
        %v3300 = vpop.xlane.xlu0 %3299
        %3301 = vadd.xlane.f32.xlu0 %v3298
        %v3302 = vpop.xlane.xlu0 %3301
        %v3303 = vcvt.f32.s32 %v3300
        %v3304 = vcvt.f32.s32 %v3302
        %v3305 = vshll.u32 %v3304, 16
        %v3306 = vadd.s32 %v3305, %v3303
        %v3307 = vsel %vm724, %v3273, 0
        %v3308 = vsel %vm724, %v3274, 0
        %v3309 = vadd.s32 %v3307, %v3308
        %v3310 = vand.u32 %v3309, 65535
        %v3311 = vshrl.u32 %v3309, 16
        %v3312 = vcvt.s32.f32 %v3310
        %v3313 = vcvt.s32.f32 %v3311
        %3314 = vadd.xlane.f32.xlu0 %v3312
        %v3315 = vpop.xlane.xlu0 %3314
        %3316 = vadd.xlane.f32.xlu0 %v3313
        %v3317 = vpop.xlane.xlu0 %3316
        %v3318 = vcvt.f32.s32 %v3315
        %v3319 = vcvt.f32.s32 %v3317
        %v3320 = vshll.u32 %v3319, 16
        %v3321 = vadd.s32 %v3320, %v3318
        %v3322 = vsel %vm724, %v3275, 0
        %v3323 = vsel %vm724, %v3276, 0
        %v3324 = vadd.s32 %v3322, %v3323
        %v3325 = vand.u32 %v3324, 65535
        %v3326 = vshrl.u32 %v3324, 16
        %v3327 = vcvt.s32.f32 %v3325
        %v3328 = vcvt.s32.f32 %v3326
        %3329 = vadd.xlane.f32.xlu0 %v3327
        %v3330 = vpop.xlane.xlu0 %3329
        %3331 = vadd.xlane.f32.xlu0 %v3328
        %v3332 = vpop.xlane.xlu0 %3331
        %v3333 = vcvt.f32.s32 %v3330
        %v3334 = vcvt.f32.s32 %v3332
        %v3335 = vshll.u32 %v3334, 16
        %v3336 = vadd.s32 %v3335, %v3333
        %vm3337 = vcmp.ge.s32.totalorder %v3291, 76
        %vm3338 = vcmp.ge.s32.totalorder %v3306, 76
        %vm3339 = vcmp.ge.s32.totalorder %v3321, 76
        %vm3340 = vcmp.ge.s32.totalorder %v3336, 76
        %v3341 = vsel %vm3337, %v3257, %v3253
        %v3342 = vsel %vm3338, %v3258, %v3254
        %v3343 = vsel %vm3339, %v3259, %v3255
        %v3344 = vsel %vm3340, %v3260, %v3256
        %v3345 = vadd.s32 %v3341, 2
        %v3346 = vadd.s32 %v3342, 2
        %v3347 = vadd.s32 %v3343, 2
        %v3348 = vadd.s32 %v3344, 2
        %vm3349 = vcmp.ge.s32.totalorder %v700, %v3345
        %vm3350 = vcmp.ge.s32.totalorder %v701, %v3345
        %vm3351 = vcmp.ge.s32.totalorder %v702, %v3346
        %vm3352 = vcmp.ge.s32.totalorder %v703, %v3346
        %vm3353 = vcmp.ge.s32.totalorder %v704, %v3347
        %vm3354 = vcmp.ge.s32.totalorder %v705, %v3347
        %vm3355 = vcmp.ge.s32.totalorder %v706, %v3348
        %vm3356 = vcmp.ge.s32.totalorder %v707, %v3348
        %v3357 = vsel %vm3349, 1, 0
        %v3358 = vsel %vm3350, 1, 0
        %v3359 = vsel %vm3351, 1, 0
        %v3360 = vsel %vm3352, 1, 0
        %v3361 = vsel %vm3353, 1, 0
        %v3362 = vsel %vm3354, 1, 0
        %v3363 = vsel %vm3355, 1, 0
        %v3364 = vsel %vm3356, 1, 0
        %v3365 = vsel %vm724, %v3357, 0
        %v3366 = vsel %vm724, %v3358, 0
        %v3367 = vadd.s32 %v3365, %v3366
        %v3368 = vand.u32 %v3367, 65535
        %v3369 = vshrl.u32 %v3367, 16
        %v3370 = vcvt.s32.f32 %v3368
        %v3371 = vcvt.s32.f32 %v3369
        %3372 = vadd.xlane.f32.xlu0 %v3370
        %v3373 = vpop.xlane.xlu0 %3372
        %3374 = vadd.xlane.f32.xlu0 %v3371
        %v3375 = vpop.xlane.xlu0 %3374
        %v3376 = vcvt.f32.s32 %v3373
        %v3377 = vcvt.f32.s32 %v3375
        %v3378 = vshll.u32 %v3377, 16
        %v3379 = vadd.s32 %v3378, %v3376
        %v3380 = vsel %vm724, %v3359, 0
        %v3381 = vsel %vm724, %v3360, 0
        %v3382 = vadd.s32 %v3380, %v3381
        %v3383 = vand.u32 %v3382, 65535
        %v3384 = vshrl.u32 %v3382, 16
        %v3385 = vcvt.s32.f32 %v3383
        %v3386 = vcvt.s32.f32 %v3384
        %3387 = vadd.xlane.f32.xlu0 %v3385
        %v3388 = vpop.xlane.xlu0 %3387
        %3389 = vadd.xlane.f32.xlu0 %v3386
        %v3390 = vpop.xlane.xlu0 %3389
        %v3391 = vcvt.f32.s32 %v3388
        %v3392 = vcvt.f32.s32 %v3390
        %v3393 = vshll.u32 %v3392, 16
        %v3394 = vadd.s32 %v3393, %v3391
        %v3395 = vsel %vm724, %v3361, 0
        %v3396 = vsel %vm724, %v3362, 0
        %v3397 = vadd.s32 %v3395, %v3396
        %v3398 = vand.u32 %v3397, 65535
        %v3399 = vshrl.u32 %v3397, 16
        %v3400 = vcvt.s32.f32 %v3398
        %v3401 = vcvt.s32.f32 %v3399
        %3402 = vadd.xlane.f32.xlu0 %v3400
        %v3403 = vpop.xlane.xlu0 %3402
        %3404 = vadd.xlane.f32.xlu0 %v3401
        %v3405 = vpop.xlane.xlu0 %3404
        %v3406 = vcvt.f32.s32 %v3403
        %v3407 = vcvt.f32.s32 %v3405
        %v3408 = vshll.u32 %v3407, 16
        %v3409 = vadd.s32 %v3408, %v3406
        %v3410 = vsel %vm724, %v3363, 0
        %v3411 = vsel %vm724, %v3364, 0
        %v3412 = vadd.s32 %v3410, %v3411
        %v3413 = vand.u32 %v3412, 65535
        %v3414 = vshrl.u32 %v3412, 16
        %v3415 = vcvt.s32.f32 %v3413
        %v3416 = vcvt.s32.f32 %v3414
        %3417 = vadd.xlane.f32.xlu0 %v3415
        %v3418 = vpop.xlane.xlu0 %3417
        %3419 = vadd.xlane.f32.xlu0 %v3416
        %v3420 = vpop.xlane.xlu0 %3419
        %v3421 = vcvt.f32.s32 %v3418
        %v3422 = vcvt.f32.s32 %v3420
        %v3423 = vshll.u32 %v3422, 16
        %v3424 = vadd.s32 %v3423, %v3421
        %vm3425 = vcmp.ge.s32.totalorder %v3379, 76
        %vm3426 = vcmp.ge.s32.totalorder %v3394, 76
        %vm3427 = vcmp.ge.s32.totalorder %v3409, 76
        %vm3428 = vcmp.ge.s32.totalorder %v3424, 76
        %v3429 = vsel %vm3425, %v3345, %v3341
        %v3430 = vsel %vm3426, %v3346, %v3342
        %v3431 = vsel %vm3427, %v3347, %v3343
        %v3432 = vsel %vm3428, %v3348, %v3344
        %v3433 = vadd.s32 %v3429, 1
        %v3434 = vadd.s32 %v3430, 1
        %v3435 = vadd.s32 %v3431, 1
        %v3436 = vadd.s32 %v3432, 1
        %vm3437 = vcmp.ge.s32.totalorder %v700, %v3433
        %vm3438 = vcmp.ge.s32.totalorder %v701, %v3433
        %vm3439 = vcmp.ge.s32.totalorder %v702, %v3434
        %vm3440 = vcmp.ge.s32.totalorder %v703, %v3434
        %vm3441 = vcmp.ge.s32.totalorder %v704, %v3435
        %vm3442 = vcmp.ge.s32.totalorder %v705, %v3435
        %vm3443 = vcmp.ge.s32.totalorder %v706, %v3436
        %vm3444 = vcmp.ge.s32.totalorder %v707, %v3436
        %v3445 = vsel %vm3437, 1, 0
        %v3446 = vsel %vm3438, 1, 0
        %v3447 = vsel %vm3439, 1, 0
        %v3448 = vsel %vm3440, 1, 0
        %v3449 = vsel %vm3441, 1, 0
        %v3450 = vsel %vm3442, 1, 0
        %v3451 = vsel %vm3443, 1, 0
        %v3452 = vsel %vm3444, 1, 0
        %v3453 = vsel %vm724, %v3445, 0
        %v3454 = vsel %vm724, %v3446, 0
        %v3455 = vadd.s32 %v3453, %v3454
        %v3456 = vand.u32 %v3455, 65535
        %v3457 = vshrl.u32 %v3455, 16
        %v3458 = vcvt.s32.f32 %v3456
        %v3459 = vcvt.s32.f32 %v3457
        %3460 = vadd.xlane.f32.xlu0 %v3458
        %v3461 = vpop.xlane.xlu0 %3460
        %3462 = vadd.xlane.f32.xlu0 %v3459
        %v3463 = vpop.xlane.xlu0 %3462
        %v3464 = vcvt.f32.s32 %v3461
        %v3465 = vcvt.f32.s32 %v3463
        %v3466 = vshll.u32 %v3465, 16
        %v3467 = vadd.s32 %v3466, %v3464
        %v3468 = vsel %vm724, %v3447, 0
        %v3469 = vsel %vm724, %v3448, 0
        %v3470 = vadd.s32 %v3468, %v3469
        %v3471 = vand.u32 %v3470, 65535
        %v3472 = vshrl.u32 %v3470, 16
        %v3473 = vcvt.s32.f32 %v3471
        %v3474 = vcvt.s32.f32 %v3472
        %3475 = vadd.xlane.f32.xlu0 %v3473
        %v3476 = vpop.xlane.xlu0 %3475
        %3477 = vadd.xlane.f32.xlu0 %v3474
        %v3478 = vpop.xlane.xlu0 %3477
        %v3479 = vcvt.f32.s32 %v3476
        %v3480 = vcvt.f32.s32 %v3478
        %v3481 = vshll.u32 %v3480, 16
        %v3482 = vadd.s32 %v3481, %v3479
        %v3483 = vsel %vm724, %v3449, 0
        %v3484 = vsel %vm724, %v3450, 0
        %v3485 = vadd.s32 %v3483, %v3484
        %v3486 = vand.u32 %v3485, 65535
        %v3487 = vshrl.u32 %v3485, 16
        %v3488 = vcvt.s32.f32 %v3486
        %v3489 = vcvt.s32.f32 %v3487
        %3490 = vadd.xlane.f32.xlu0 %v3488
        %v3491 = vpop.xlane.xlu0 %3490
        %3492 = vadd.xlane.f32.xlu0 %v3489
        %v3493 = vpop.xlane.xlu0 %3492
        %v3494 = vcvt.f32.s32 %v3491
        %v3495 = vcvt.f32.s32 %v3493
        %v3496 = vshll.u32 %v3495, 16
        %v3497 = vadd.s32 %v3496, %v3494
        %v3498 = vsel %vm724, %v3451, 0
        %v3499 = vsel %vm724, %v3452, 0
        %v3500 = vadd.s32 %v3498, %v3499
        %v3501 = vand.u32 %v3500, 65535
        %v3502 = vshrl.u32 %v3500, 16
        %v3503 = vcvt.s32.f32 %v3501
        %v3504 = vcvt.s32.f32 %v3502
        %3505 = vadd.xlane.f32.xlu0 %v3503
        %v3506 = vpop.xlane.xlu0 %3505
        %3507 = vadd.xlane.f32.xlu0 %v3504
        %v3508 = vpop.xlane.xlu0 %3507
        %v3509 = vcvt.f32.s32 %v3506
        %v3510 = vcvt.f32.s32 %v3508
        %v3511 = vshll.u32 %v3510, 16
        %v3512 = vadd.s32 %v3511, %v3509
        %vm3513 = vcmp.ge.s32.totalorder %v3467, 76
        %vm3514 = vcmp.ge.s32.totalorder %v3482, 76
        %vm3515 = vcmp.ge.s32.totalorder %v3497, 76
        %vm3516 = vcmp.ge.s32.totalorder %v3512, 76
        %v3517 = vsel %vm3513, %v3433, %v3429
        %v3518 = vsel %vm3514, %v3434, %v3430
        %v3519 = vsel %vm3515, %v3435, %v3431
        %v3520 = vsel %vm3516, %v3436, %v3432
        %vm3521 = vcmp.gt.s32.totalorder %v700, %v3517
        %vm3522 = vcmp.gt.s32.totalorder %v701, %v3517
        %vm3523 = vcmp.gt.s32.totalorder %v702, %v3518
        %vm3524 = vcmp.gt.s32.totalorder %v703, %v3518
        %vm3525 = vcmp.gt.s32.totalorder %v704, %v3519
        %vm3526 = vcmp.gt.s32.totalorder %v705, %v3519
        %vm3527 = vcmp.gt.s32.totalorder %v706, %v3520
        %vm3528 = vcmp.gt.s32.totalorder %v707, %v3520
        %v3529 = vsel %vm3521, 1, 0
        %v3530 = vsel %vm3522, 1, 0
        %v3531 = vsel %vm3523, 1, 0
        %v3532 = vsel %vm3524, 1, 0
        %v3533 = vsel %vm3525, 1, 0
        %v3534 = vsel %vm3526, 1, 0
        %v3535 = vsel %vm3527, 1, 0
        %v3536 = vsel %vm3528, 1, 0
        %v3537 = vlaneseq
        %v3538 = vshrl.u32 %v3537, 7
        %v3539 = vsub.s32 0, %v3538
        %v3540 = vrot.slane %v3529, %v3539
        %v3541 = vlaneseq
        %v3542 = vshrl.u32 %v3541, 7
        %v3543 = vsub.s32 0, %v3542
        %v3544 = vrot.slane %v3530, %v3543
        %v3545 = vlaneseq
        %v3546 = vshrl.u32 %v3545, 7
        %v3547 = vsub.s32 0, %v3546
        %v3548 = vrot.slane %v3531, %v3547
        %v3549 = vlaneseq
        %v3550 = vshrl.u32 %v3549, 7
        %v3551 = vsub.s32 0, %v3550
        %v3552 = vrot.slane %v3532, %v3551
        %v3553 = vlaneseq
        %v3554 = vshrl.u32 %v3553, 7
        %v3555 = vsub.s32 0, %v3554
        %v3556 = vrot.slane %v3533, %v3555
        %v3557 = vlaneseq
        %v3558 = vshrl.u32 %v3557, 7
        %v3559 = vsub.s32 0, %v3558
        %v3560 = vrot.slane %v3534, %v3559
        %v3561 = vlaneseq
        %v3562 = vshrl.u32 %v3561, 7
        %v3563 = vsub.s32 0, %v3562
        %v3564 = vrot.slane %v3535, %v3563
        %v3565 = vlaneseq
        %v3566 = vshrl.u32 %v3565, 7
        %v3567 = vsub.s32 0, %v3566
        %v3568 = vrot.slane %v3536, %v3567
        %vm3569 = vcmp.eq.s32.totalorder %v3540, 1
        %vm3570 = vcmp.eq.s32.totalorder %v3544, 1
        %vm3571 = vcmp.eq.s32.totalorder %v3548, 1
        %vm3572 = vcmp.eq.s32.totalorder %v3552, 1
        %vm3573 = vcmp.eq.s32.totalorder %v3556, 1
        %vm3574 = vcmp.eq.s32.totalorder %v3560, 1
        %vm3575 = vcmp.eq.s32.totalorder %v3564, 1
        %vm3576 = vcmp.eq.s32.totalorder %v3568, 1
        %v3577 = vsel %vm3569, %v261, 0.0
        %v3578 = vsel %vm3570, %v262, 0.0
        %v3579 = vsel %vm3569, %v263, 0.0
        %v3580 = vsel %vm3570, %v264, 0.0
        %v3581 = vsel %vm3569, %v265, 0.0
        %v3582 = vsel %vm3570, %v266, 0.0
        %v3583 = vsel %vm3569, %v267, 0.0
        %v3584 = vsel %vm3570, %v268, 0.0
        %v3585 = vsel %vm3569, %v269, 0.0
        %v3586 = vsel %vm3570, %v270, 0.0
        %v3587 = vsel %vm3569, %v271, 0.0
        %v3588 = vsel %vm3570, %v272, 0.0
        %v3589 = vsel %vm3569, %v273, 0.0
        %v3590 = vsel %vm3570, %v274, 0.0
        %v3591 = vsel %vm3569, %v275, 0.0
        %v3592 = vsel %vm3570, %v276, 0.0
        %v3593 = vsel %vm3569, %v277, 0.0
        %v3594 = vsel %vm3570, %v278, 0.0
        %v3595 = vsel %vm3569, %v279, 0.0
        %v3596 = vsel %vm3570, %v280, 0.0
        %v3597 = vsel %vm3569, %v281, 0.0
        %v3598 = vsel %vm3570, %v282, 0.0
        %v3599 = vsel %vm3569, %v283, 0.0
        %v3600 = vsel %vm3570, %v284, 0.0
        %v3601 = vsel %vm3569, %v285, 0.0
        %v3602 = vsel %vm3570, %v286, 0.0
        %v3603 = vsel %vm3569, %v287, 0.0
        %v3604 = vsel %vm3570, %v288, 0.0
        %v3605 = vsel %vm3569, %v289, 0.0
        %v3606 = vsel %vm3570, %v290, 0.0
        %v3607 = vsel %vm3569, %v291, 0.0
        %v3608 = vsel %vm3570, %v292, 0.0
        %v3609 = vsel %vm3571, %v293, 0.0
        %v3610 = vsel %vm3572, %v294, 0.0
        %v3611 = vsel %vm3571, %v295, 0.0
        %v3612 = vsel %vm3572, %v296, 0.0
        %v3613 = vsel %vm3571, %v297, 0.0
        %v3614 = vsel %vm3572, %v298, 0.0
        %v3615 = vsel %vm3571, %v299, 0.0
        %v3616 = vsel %vm3572, %v300, 0.0
        %v3617 = vsel %vm3571, %v301, 0.0
        %v3618 = vsel %vm3572, %v302, 0.0
        %v3619 = vsel %vm3571, %v303, 0.0
        %v3620 = vsel %vm3572, %v304, 0.0
        %v3621 = vsel %vm3571, %v305, 0.0
        %v3622 = vsel %vm3572, %v306, 0.0
        %v3623 = vsel %vm3571, %v307, 0.0
        %v3624 = vsel %vm3572, %v308, 0.0
        %v3625 = vsel %vm3571, %v309, 0.0
        %v3626 = vsel %vm3572, %v310, 0.0
        %v3627 = vsel %vm3571, %v311, 0.0
        %v3628 = vsel %vm3572, %v312, 0.0
        %v3629 = vsel %vm3571, %v313, 0.0
        %v3630 = vsel %vm3572, %v314, 0.0
        %v3631 = vsel %vm3571, %v315, 0.0
        %v3632 = vsel %vm3572, %v316, 0.0
        %v3633 = vsel %vm3571, %v317, 0.0
        %v3634 = vsel %vm3572, %v318, 0.0
        %v3635 = vsel %vm3571, %v319, 0.0
        %v3636 = vsel %vm3572, %v320, 0.0
        %v3637 = vsel %vm3571, %v321, 0.0
        %v3638 = vsel %vm3572, %v322, 0.0
        %v3639 = vsel %vm3571, %v323, 0.0
        %v3640 = vsel %vm3572, %v324, 0.0
        %v3641 = vsel %vm3573, %v325, 0.0
        %v3642 = vsel %vm3574, %v326, 0.0
        %v3643 = vsel %vm3573, %v327, 0.0
        %v3644 = vsel %vm3574, %v328, 0.0
        %v3645 = vsel %vm3573, %v329, 0.0
        %v3646 = vsel %vm3574, %v330, 0.0
        %v3647 = vsel %vm3573, %v331, 0.0
        %v3648 = vsel %vm3574, %v332, 0.0
        %v3649 = vsel %vm3573, %v333, 0.0
        %v3650 = vsel %vm3574, %v334, 0.0
        %v3651 = vsel %vm3573, %v335, 0.0
        %v3652 = vsel %vm3574, %v336, 0.0
        %v3653 = vsel %vm3573, %v337, 0.0
        %v3654 = vsel %vm3574, %v338, 0.0
        %v3655 = vsel %vm3573, %v339, 0.0
        %v3656 = vsel %vm3574, %v340, 0.0
        %v3657 = vsel %vm3573, %v341, 0.0
        %v3658 = vsel %vm3574, %v342, 0.0
        %v3659 = vsel %vm3573, %v343, 0.0
        %v3660 = vsel %vm3574, %v344, 0.0
        %v3661 = vsel %vm3573, %v345, 0.0
        %v3662 = vsel %vm3574, %v346, 0.0
        %v3663 = vsel %vm3573, %v347, 0.0
        %v3664 = vsel %vm3574, %v348, 0.0
        %v3665 = vsel %vm3573, %v349, 0.0
        %v3666 = vsel %vm3574, %v350, 0.0
        %v3667 = vsel %vm3573, %v351, 0.0
        %v3668 = vsel %vm3574, %v352, 0.0
        %v3669 = vsel %vm3573, %v353, 0.0
        %v3670 = vsel %vm3574, %v354, 0.0
        %v3671 = vsel %vm3573, %v355, 0.0
        %v3672 = vsel %vm3574, %v356, 0.0
        %v3673 = vsel %vm3575, %v357, 0.0
        %v3674 = vsel %vm3576, %v358, 0.0
        %v3675 = vsel %vm3575, %v359, 0.0
        %v3676 = vsel %vm3576, %v360, 0.0
        %v3677 = vsel %vm3575, %v361, 0.0
        %v3678 = vsel %vm3576, %v362, 0.0
        %v3679 = vsel %vm3575, %v363, 0.0
        %v3680 = vsel %vm3576, %v364, 0.0
        %v3681 = vsel %vm3575, %v365, 0.0
        %v3682 = vsel %vm3576, %v366, 0.0
        %v3683 = vsel %vm3575, %v367, 0.0
        %v3684 = vsel %vm3576, %v368, 0.0
        %v3685 = vsel %vm3575, %v369, 0.0
        %v3686 = vsel %vm3576, %v370, 0.0
        %v3687 = vsel %vm3575, %v371, 0.0
        %v3688 = vsel %vm3576, %v372, 0.0
        %v3689 = vsel %vm3575, %v373, 0.0
        %v3690 = vsel %vm3576, %v374, 0.0
        %v3691 = vsel %vm3575, %v375, 0.0
        %v3692 = vsel %vm3576, %v376, 0.0
        %v3693 = vsel %vm3575, %v377, 0.0
        %v3694 = vsel %vm3576, %v378, 0.0
        %v3695 = vsel %vm3575, %v379, 0.0
        %v3696 = vsel %vm3576, %v380, 0.0
        %v3697 = vsel %vm3575, %v381, 0.0
        %v3698 = vsel %vm3576, %v382, 0.0
        %v3699 = vsel %vm3575, %v383, 0.0
        %v3700 = vsel %vm3576, %v384, 0.0
        %v3701 = vsel %vm3575, %v385, 0.0
        %v3702 = vsel %vm3576, %v386, 0.0
        %v3703 = vsel %vm3575, %v387, 0.0
        %v3704 = vsel %vm3576, %v388, 0.0
        %v3705 = vadd.f32 %v3577, %v3578
        %3706 = vadd.xlane.f32.xlu0 %v3705
        %v3707 = vpop.xlane.xlu0 %3706
        %v3708 = vadd.f32 %v3579, %v3580
        %3709 = vadd.xlane.f32.xlu0 %v3708
        %v3710 = vpop.xlane.xlu0 %3709
        %v3711 = vadd.f32 %v3581, %v3582
        %3712 = vadd.xlane.f32.xlu0 %v3711
        %v3713 = vpop.xlane.xlu0 %3712
        %v3714 = vadd.f32 %v3583, %v3584
        %3715 = vadd.xlane.f32.xlu0 %v3714
        %v3716 = vpop.xlane.xlu0 %3715
        %v3717 = vadd.f32 %v3585, %v3586
        %3718 = vadd.xlane.f32.xlu0 %v3717
        %v3719 = vpop.xlane.xlu0 %3718
        %v3720 = vadd.f32 %v3587, %v3588
        %3721 = vadd.xlane.f32.xlu0 %v3720
        %v3722 = vpop.xlane.xlu0 %3721
        %v3723 = vadd.f32 %v3589, %v3590
        %3724 = vadd.xlane.f32.xlu0 %v3723
        %v3725 = vpop.xlane.xlu0 %3724
        %v3726 = vadd.f32 %v3591, %v3592
        %3727 = vadd.xlane.f32.xlu0 %v3726
        %v3728 = vpop.xlane.xlu0 %3727
        %v3729 = vadd.f32 %v3593, %v3594
        %3730 = vadd.xlane.f32.xlu0 %v3729
        %v3731 = vpop.xlane.xlu0 %3730
        %v3732 = vadd.f32 %v3595, %v3596
        %3733 = vadd.xlane.f32.xlu0 %v3732
        %v3734 = vpop.xlane.xlu0 %3733
        %v3735 = vadd.f32 %v3597, %v3598
        %3736 = vadd.xlane.f32.xlu0 %v3735
        %v3737 = vpop.xlane.xlu0 %3736
        %v3738 = vadd.f32 %v3599, %v3600
        %3739 = vadd.xlane.f32.xlu0 %v3738
        %v3740 = vpop.xlane.xlu0 %3739
        %v3741 = vadd.f32 %v3601, %v3602
        %3742 = vadd.xlane.f32.xlu0 %v3741
        %v3743 = vpop.xlane.xlu0 %3742
        %v3744 = vadd.f32 %v3603, %v3604
        %3745 = vadd.xlane.f32.xlu0 %v3744
        %v3746 = vpop.xlane.xlu0 %3745
        %v3747 = vadd.f32 %v3605, %v3606
        %3748 = vadd.xlane.f32.xlu0 %v3747
        %v3749 = vpop.xlane.xlu0 %3748
        %v3750 = vadd.f32 %v3607, %v3608
        %3751 = vadd.xlane.f32.xlu0 %v3750
        %v3752 = vpop.xlane.xlu0 %3751
        %v3753 = vadd.f32 %v3609, %v3610
        %3754 = vadd.xlane.f32.xlu0 %v3753
        %v3755 = vpop.xlane.xlu0 %3754
        %v3756 = vadd.f32 %v3611, %v3612
        %3757 = vadd.xlane.f32.xlu0 %v3756
        %v3758 = vpop.xlane.xlu0 %3757
        %v3759 = vadd.f32 %v3613, %v3614
        %3760 = vadd.xlane.f32.xlu0 %v3759
        %v3761 = vpop.xlane.xlu0 %3760
        %v3762 = vadd.f32 %v3615, %v3616
        %3763 = vadd.xlane.f32.xlu0 %v3762
        %v3764 = vpop.xlane.xlu0 %3763
        %v3765 = vadd.f32 %v3617, %v3618
        %3766 = vadd.xlane.f32.xlu0 %v3765
        %v3767 = vpop.xlane.xlu0 %3766
        %v3768 = vadd.f32 %v3619, %v3620
        %3769 = vadd.xlane.f32.xlu0 %v3768
        %v3770 = vpop.xlane.xlu0 %3769
        %v3771 = vadd.f32 %v3621, %v3622
        %3772 = vadd.xlane.f32.xlu0 %v3771
        %v3773 = vpop.xlane.xlu0 %3772
        %v3774 = vadd.f32 %v3623, %v3624
        %3775 = vadd.xlane.f32.xlu0 %v3774
        %v3776 = vpop.xlane.xlu0 %3775
        %v3777 = vadd.f32 %v3625, %v3626
        %3778 = vadd.xlane.f32.xlu0 %v3777
        %v3779 = vpop.xlane.xlu0 %3778
        %v3780 = vadd.f32 %v3627, %v3628
        %3781 = vadd.xlane.f32.xlu0 %v3780
        %v3782 = vpop.xlane.xlu0 %3781
        %v3783 = vadd.f32 %v3629, %v3630
        %3784 = vadd.xlane.f32.xlu0 %v3783
        %v3785 = vpop.xlane.xlu0 %3784
        %v3786 = vadd.f32 %v3631, %v3632
        %3787 = vadd.xlane.f32.xlu0 %v3786
        %v3788 = vpop.xlane.xlu0 %3787
        %v3789 = vadd.f32 %v3633, %v3634
        %3790 = vadd.xlane.f32.xlu0 %v3789
        %v3791 = vpop.xlane.xlu0 %3790
        %v3792 = vadd.f32 %v3635, %v3636
        %3793 = vadd.xlane.f32.xlu0 %v3792
        %v3794 = vpop.xlane.xlu0 %3793
        %v3795 = vadd.f32 %v3637, %v3638
        %3796 = vadd.xlane.f32.xlu0 %v3795
        %v3797 = vpop.xlane.xlu0 %3796
        %v3798 = vadd.f32 %v3639, %v3640
        %3799 = vadd.xlane.f32.xlu0 %v3798
        %v3800 = vpop.xlane.xlu0 %3799
        %v3801 = vadd.f32 %v3641, %v3642
        %3802 = vadd.xlane.f32.xlu0 %v3801
        %v3803 = vpop.xlane.xlu0 %3802
        %v3804 = vadd.f32 %v3643, %v3644
        %3805 = vadd.xlane.f32.xlu0 %v3804
        %v3806 = vpop.xlane.xlu0 %3805
        %v3807 = vadd.f32 %v3645, %v3646
        %3808 = vadd.xlane.f32.xlu0 %v3807
        %v3809 = vpop.xlane.xlu0 %3808
        %v3810 = vadd.f32 %v3647, %v3648
        %3811 = vadd.xlane.f32.xlu0 %v3810
        %v3812 = vpop.xlane.xlu0 %3811
        %v3813 = vadd.f32 %v3649, %v3650
        %3814 = vadd.xlane.f32.xlu0 %v3813
        %v3815 = vpop.xlane.xlu0 %3814
        %v3816 = vadd.f32 %v3651, %v3652
        %3817 = vadd.xlane.f32.xlu0 %v3816
        %v3818 = vpop.xlane.xlu0 %3817
        %v3819 = vadd.f32 %v3653, %v3654
        %3820 = vadd.xlane.f32.xlu0 %v3819
        %v3821 = vpop.xlane.xlu0 %3820
        %v3822 = vadd.f32 %v3655, %v3656
        %3823 = vadd.xlane.f32.xlu0 %v3822
        %v3824 = vpop.xlane.xlu0 %3823
        %v3825 = vadd.f32 %v3657, %v3658
        %3826 = vadd.xlane.f32.xlu0 %v3825
        %v3827 = vpop.xlane.xlu0 %3826
        %v3828 = vadd.f32 %v3659, %v3660
        %3829 = vadd.xlane.f32.xlu0 %v3828
        %v3830 = vpop.xlane.xlu0 %3829
        %v3831 = vadd.f32 %v3661, %v3662
        %3832 = vadd.xlane.f32.xlu0 %v3831
        %v3833 = vpop.xlane.xlu0 %3832
        %v3834 = vadd.f32 %v3663, %v3664
        %3835 = vadd.xlane.f32.xlu0 %v3834
        %v3836 = vpop.xlane.xlu0 %3835
        %v3837 = vadd.f32 %v3665, %v3666
        %3838 = vadd.xlane.f32.xlu0 %v3837
        %v3839 = vpop.xlane.xlu0 %3838
        %v3840 = vadd.f32 %v3667, %v3668
        %3841 = vadd.xlane.f32.xlu0 %v3840
        %v3842 = vpop.xlane.xlu0 %3841
        %v3843 = vadd.f32 %v3669, %v3670
        %3844 = vadd.xlane.f32.xlu0 %v3843
        %v3845 = vpop.xlane.xlu0 %3844
        %v3846 = vadd.f32 %v3671, %v3672
        %3847 = vadd.xlane.f32.xlu0 %v3846
        %v3848 = vpop.xlane.xlu0 %3847
        %v3849 = vadd.f32 %v3673, %v3674
        %3850 = vadd.xlane.f32.xlu0 %v3849
        %v3851 = vpop.xlane.xlu0 %3850
        %v3852 = vadd.f32 %v3675, %v3676
        %3853 = vadd.xlane.f32.xlu0 %v3852
        %v3854 = vpop.xlane.xlu0 %3853
        %v3855 = vadd.f32 %v3677, %v3678
        %3856 = vadd.xlane.f32.xlu0 %v3855
        %v3857 = vpop.xlane.xlu0 %3856
        %v3858 = vadd.f32 %v3679, %v3680
        %3859 = vadd.xlane.f32.xlu0 %v3858
        %v3860 = vpop.xlane.xlu0 %3859
        %v3861 = vadd.f32 %v3681, %v3682
        %3862 = vadd.xlane.f32.xlu0 %v3861
        %v3863 = vpop.xlane.xlu0 %3862
        %v3864 = vadd.f32 %v3683, %v3684
        %3865 = vadd.xlane.f32.xlu0 %v3864
        %v3866 = vpop.xlane.xlu0 %3865
        %v3867 = vadd.f32 %v3685, %v3686
        %3868 = vadd.xlane.f32.xlu0 %v3867
        %v3869 = vpop.xlane.xlu0 %3868
        %v3870 = vadd.f32 %v3687, %v3688
        %3871 = vadd.xlane.f32.xlu0 %v3870
        %v3872 = vpop.xlane.xlu0 %3871
        %v3873 = vadd.f32 %v3689, %v3690
        %3874 = vadd.xlane.f32.xlu0 %v3873
        %v3875 = vpop.xlane.xlu0 %3874
        %v3876 = vadd.f32 %v3691, %v3692
        %3877 = vadd.xlane.f32.xlu0 %v3876
        %v3878 = vpop.xlane.xlu0 %3877
        %v3879 = vadd.f32 %v3693, %v3694
        %3880 = vadd.xlane.f32.xlu0 %v3879
        %v3881 = vpop.xlane.xlu0 %3880
        %v3882 = vadd.f32 %v3695, %v3696
        %3883 = vadd.xlane.f32.xlu0 %v3882
        %v3884 = vpop.xlane.xlu0 %3883
        %v3885 = vadd.f32 %v3697, %v3698
        %3886 = vadd.xlane.f32.xlu0 %v3885
        %v3887 = vpop.xlane.xlu0 %3886
        %v3888 = vadd.f32 %v3699, %v3700
        %3889 = vadd.xlane.f32.xlu0 %v3888
        %v3890 = vpop.xlane.xlu0 %3889
        %v3891 = vadd.f32 %v3701, %v3702
        %3892 = vadd.xlane.f32.xlu0 %v3891
        %v3893 = vpop.xlane.xlu0 %3892
        %v3894 = vadd.f32 %v3703, %v3704
        %3895 = vadd.xlane.f32.xlu0 %v3894
        %v3896 = vpop.xlane.xlu0 %3895
        %v3897 = vmul.f32 %v3707, 0.00390625
        %v3898 = vmul.f32 %v3710, 0.00390625
        %v3899 = vmul.f32 %v3713, 0.00390625
        %v3900 = vmul.f32 %v3716, 0.00390625
        %v3901 = vmul.f32 %v3719, 0.00390625
        %v3902 = vmul.f32 %v3722, 0.00390625
        %v3903 = vmul.f32 %v3725, 0.00390625
        %v3904 = vmul.f32 %v3728, 0.00390625
        %v3905 = vmul.f32 %v3731, 0.00390625
        %v3906 = vmul.f32 %v3734, 0.00390625
        %v3907 = vmul.f32 %v3737, 0.00390625
        %v3908 = vmul.f32 %v3740, 0.00390625
        %v3909 = vmul.f32 %v3743, 0.00390625
        %v3910 = vmul.f32 %v3746, 0.00390625
        %v3911 = vmul.f32 %v3749, 0.00390625
        %v3912 = vmul.f32 %v3752, 0.00390625
        %v3913 = vmul.f32 %v3755, 0.00390625
        %v3914 = vmul.f32 %v3758, 0.00390625
        %v3915 = vmul.f32 %v3761, 0.00390625
        %v3916 = vmul.f32 %v3764, 0.00390625
        %v3917 = vmul.f32 %v3767, 0.00390625
        %v3918 = vmul.f32 %v3770, 0.00390625
        %v3919 = vmul.f32 %v3773, 0.00390625
        %v3920 = vmul.f32 %v3776, 0.00390625
        %v3921 = vmul.f32 %v3779, 0.00390625
        %v3922 = vmul.f32 %v3782, 0.00390625
        %v3923 = vmul.f32 %v3785, 0.00390625
        %v3924 = vmul.f32 %v3788, 0.00390625
        %v3925 = vmul.f32 %v3791, 0.00390625
        %v3926 = vmul.f32 %v3794, 0.00390625
        %v3927 = vmul.f32 %v3797, 0.00390625
        %v3928 = vmul.f32 %v3800, 0.00390625
        %v3929 = vmul.f32 %v3803, 0.00390625
        %v3930 = vmul.f32 %v3806, 0.00390625
        %v3931 = vmul.f32 %v3809, 0.00390625
        %v3932 = vmul.f32 %v3812, 0.00390625
        %v3933 = vmul.f32 %v3815, 0.00390625
        %v3934 = vmul.f32 %v3818, 0.00390625
        %v3935 = vmul.f32 %v3821, 0.00390625
        %v3936 = vmul.f32 %v3824, 0.00390625
        %v3937 = vmul.f32 %v3827, 0.00390625
        %v3938 = vmul.f32 %v3830, 0.00390625
        %v3939 = vmul.f32 %v3833, 0.00390625
        %v3940 = vmul.f32 %v3836, 0.00390625
        %v3941 = vmul.f32 %v3839, 0.00390625
        %v3942 = vmul.f32 %v3842, 0.00390625
        %v3943 = vmul.f32 %v3845, 0.00390625
        %v3944 = vmul.f32 %v3848, 0.00390625
        %v3945 = vmul.f32 %v3851, 0.00390625
        %v3946 = vmul.f32 %v3854, 0.00390625
        %v3947 = vmul.f32 %v3857, 0.00390625
        %v3948 = vmul.f32 %v3860, 0.00390625
        %v3949 = vmul.f32 %v3863, 0.00390625
        %v3950 = vmul.f32 %v3866, 0.00390625
        %v3951 = vmul.f32 %v3869, 0.00390625
        %v3952 = vmul.f32 %v3872, 0.00390625
        %v3953 = vmul.f32 %v3875, 0.00390625
        %v3954 = vmul.f32 %v3878, 0.00390625
        %v3955 = vmul.f32 %v3881, 0.00390625
        %v3956 = vmul.f32 %v3884, 0.00390625
        %v3957 = vmul.f32 %v3887, 0.00390625
        %v3958 = vmul.f32 %v3890, 0.00390625
        %v3959 = vmul.f32 %v3893, 0.00390625
        %v3960 = vmul.f32 %v3896, 0.00390625
        %v3961 = vld [vmem:[#allocation6] sm:$0xff]
        %v3962 = vld [vmem:[#allocation6 + $0x8] sm:$0xff]
        %v3963 = vld [vmem:[#allocation6 + $0x10] sm:$0xff]
        %v3964 = vld [vmem:[#allocation6 + $0x18] sm:$0xff]
        %v3965 = vld [vmem:[#allocation6 + $0x20] sm:$0xff]
        %v3966 = vld [vmem:[#allocation6 + $0x28] sm:$0xff]
        %v3967 = vld [vmem:[#allocation6 + $0x30] sm:$0xff]
        %v3968 = vld [vmem:[#allocation6 + $0x38] sm:$0xff]
        %v3969 = vld [vmem:[#allocation6 + $0x40] sm:$0xff]
        %v3970 = vld [vmem:[#allocation6 + $0x48] sm:$0xff]
        %v3971 = vld [vmem:[#allocation6 + $0x50] sm:$0xff]
        %v3972 = vld [vmem:[#allocation6 + $0x58] sm:$0xff]
        %v3973 = vld [vmem:[#allocation6 + $0x60] sm:$0xff]
        %v3974 = vld [vmem:[#allocation6 + $0x68] sm:$0xff]
        %v3975 = vld [vmem:[#allocation6 + $0x70] sm:$0xff]
        %v3976 = vld [vmem:[#allocation6 + $0x78] sm:$0xff]
        %v3977 = vld [vmem:[%s4] sm:$0x1]
        %v3979 = vlaneseq
        %v3980 = vshrl.u32 %v3979, 7
        %v3981 = vsub.s32 0, %v3980
        %v3982 = vrot.slane %v3977, %v3981
        %v4048 = vlaneseq
        %v4049 = vand.u32 %v4048, 127
        %v4050 = vlaneseq
        %v4051 = vshrl.u32 %v4050, 7
        %v4052 = vsub.s32 %v4049, %v4051
        %v4053 = vrot.slane %v3897, %v4052
        %v4054 = vadd.s32 %v4049, 4294967288
        %v4055 = vlaneseq
        %v4056 = vshrl.u32 %v4055, 7
        %v4057 = vsub.s32 %v4054, %v4056
        %v4058 = vrot.slane %v3898, %v4057
        %vm4059 = vcmask 130112
        %v4060 = vsel %vm4059, %v4058, %v4053
        %v4061 = vadd.s32 %v4049, 4294967280
        %v4062 = vlaneseq
        %v4063 = vshrl.u32 %v4062, 7
        %v4064 = vsub.s32 %v4061, %v4063
        %v4065 = vrot.slane %v3899, %v4064
        %vm4066 = vcmask 195712
        %v4067 = vsel %vm4066, %v4065, %v4060
        %v4068 = vadd.s32 %v4049, 4294967272
        %v4069 = vlaneseq
        %v4070 = vshrl.u32 %v4069, 7
        %v4071 = vsub.s32 %v4068, %v4070
        %v4072 = vrot.slane %v3900, %v4071
        %vm4073 = vcmask 261312
        %v4074 = vsel %vm4073, %v4072, %v4067
        %v4075 = vadd.s32 %v4049, 4294967264
        %v4076 = vlaneseq
        %v4077 = vshrl.u32 %v4076, 7
        %v4078 = vsub.s32 %v4075, %v4077
        %v4079 = vrot.slane %v3901, %v4078
        %vm4080 = vcmask 326912
        %v4081 = vsel %vm4080, %v4079, %v4074
        %v4082 = vadd.s32 %v4049, 4294967256
        %v4083 = vlaneseq
        %v4084 = vshrl.u32 %v4083, 7
        %v4085 = vsub.s32 %v4082, %v4084
        %v4086 = vrot.slane %v3902, %v4085
        %vm4087 = vcmask 392512
        %v4088 = vsel %vm4087, %v4086, %v4081
        %v4089 = vadd.s32 %v4049, 4294967248
        %v4090 = vlaneseq
        %v4091 = vshrl.u32 %v4090, 7
        %v4092 = vsub.s32 %v4089, %v4091
        %v4093 = vrot.slane %v3903, %v4092
        %vm4094 = vcmask 458112
        %v4095 = vsel %vm4094, %v4093, %v4088
        %v4096 = vadd.s32 %v4049, 4294967240
        %v4097 = vlaneseq
        %v4098 = vshrl.u32 %v4097, 7
        %v4099 = vsub.s32 %v4096, %v4098
        %v4100 = vrot.slane %v3904, %v4099
        %vm4101 = vcmask 523712
        %v4102 = vsel %vm4101, %v4100, %v4095
        %v4103 = vadd.s32 %v4049, 4294967232
        %v4104 = vlaneseq
        %v4105 = vshrl.u32 %v4104, 7
        %v4106 = vsub.s32 %v4103, %v4105
        %v4107 = vrot.slane %v3905, %v4106
        %vm4108 = vcmask 589312
        %v4109 = vsel %vm4108, %v4107, %v4102
        %v4110 = vadd.s32 %v4049, 4294967224
        %v4111 = vlaneseq
        %v4112 = vshrl.u32 %v4111, 7
        %v4113 = vsub.s32 %v4110, %v4112
        %v4114 = vrot.slane %v3906, %v4113
        %vm4115 = vcmask 654912
        %v4116 = vsel %vm4115, %v4114, %v4109
        %v4117 = vadd.s32 %v4049, 4294967216
        %v4118 = vlaneseq
        %v4119 = vshrl.u32 %v4118, 7
        %v4120 = vsub.s32 %v4117, %v4119
        %v4121 = vrot.slane %v3907, %v4120
        %vm4122 = vcmask 720512
        %v4123 = vsel %vm4122, %v4121, %v4116
        %v4124 = vadd.s32 %v4049, 4294967208
        %v4125 = vlaneseq
        %v4126 = vshrl.u32 %v4125, 7
        %v4127 = vsub.s32 %v4124, %v4126
        %v4128 = vrot.slane %v3908, %v4127
        %vm4129 = vcmask 786112
        %v4130 = vsel %vm4129, %v4128, %v4123
        %v4131 = vadd.s32 %v4049, 4294967200
        %v4132 = vlaneseq
        %v4133 = vshrl.u32 %v4132, 7
        %v4134 = vsub.s32 %v4131, %v4133
        %v4135 = vrot.slane %v3909, %v4134
        %vm4136 = vcmask 851712
        %v4137 = vsel %vm4136, %v4135, %v4130
        %v4138 = vadd.s32 %v4049, 4294967192
        %v4139 = vlaneseq
        %v4140 = vshrl.u32 %v4139, 7
        %v4141 = vsub.s32 %v4138, %v4140
        %v4142 = vrot.slane %v3910, %v4141
        %vm4143 = vcmask 917312
        %v4144 = vsel %vm4143, %v4142, %v4137
        %v4145 = vadd.s32 %v4049, 4294967184
        %v4146 = vlaneseq
        %v4147 = vshrl.u32 %v4146, 7
        %v4148 = vsub.s32 %v4145, %v4147
        %v4149 = vrot.slane %v3911, %v4148
        %vm4150 = vcmask 982912
        %v4151 = vsel %vm4150, %v4149, %v4144
        %v4152 = vadd.s32 %v4049, 4294967176
        %v4153 = vlaneseq
        %v4154 = vshrl.u32 %v4153, 7
        %v4155 = vsub.s32 %v4152, %v4154
        %v4156 = vrot.slane %v3912, %v4155
        %vm4157 = vcmask 1048512
        %v4158 = vsel %vm4157, %v4156, %v4151
        %v4159 = vlaneseq
        %v4160 = vshrl.u32 %v4159, 7
        %v4161 = vsub.s32 %v4049, %v4160
        %v4162 = vrot.slane %v3913, %v4161
        %v4163 = vlaneseq
        %v4164 = vshrl.u32 %v4163, 7
        %v4165 = vsub.s32 %v4054, %v4164
        %v4166 = vrot.slane %v3914, %v4165
        %v4167 = vsel %vm4059, %v4166, %v4162
        %v4168 = vlaneseq
        %v4169 = vshrl.u32 %v4168, 7
        %v4170 = vsub.s32 %v4061, %v4169
        %v4171 = vrot.slane %v3915, %v4170
        %v4172 = vsel %vm4066, %v4171, %v4167
        %v4173 = vlaneseq
        %v4174 = vshrl.u32 %v4173, 7
        %v4175 = vsub.s32 %v4068, %v4174
        %v4176 = vrot.slane %v3916, %v4175
        %v4177 = vsel %vm4073, %v4176, %v4172
        %v4178 = vlaneseq
        %v4179 = vshrl.u32 %v4178, 7
        %v4180 = vsub.s32 %v4075, %v4179
        %v4181 = vrot.slane %v3917, %v4180
        %v4182 = vsel %vm4080, %v4181, %v4177
        %v4183 = vlaneseq
        %v4184 = vshrl.u32 %v4183, 7
        %v4185 = vsub.s32 %v4082, %v4184
        %v4186 = vrot.slane %v3918, %v4185
        %v4187 = vsel %vm4087, %v4186, %v4182
        %v4188 = vlaneseq
        %v4189 = vshrl.u32 %v4188, 7
        %v4190 = vsub.s32 %v4089, %v4189
        %v4191 = vrot.slane %v3919, %v4190
        %v4192 = vsel %vm4094, %v4191, %v4187
        %v4193 = vlaneseq
        %v4194 = vshrl.u32 %v4193, 7
        %v4195 = vsub.s32 %v4096, %v4194
        %v4196 = vrot.slane %v3920, %v4195
        %v4197 = vsel %vm4101, %v4196, %v4192
        %v4198 = vlaneseq
        %v4199 = vshrl.u32 %v4198, 7
        %v4200 = vsub.s32 %v4103, %v4199
        %v4201 = vrot.slane %v3921, %v4200
        %v4202 = vsel %vm4108, %v4201, %v4197
        %v4203 = vlaneseq
        %v4204 = vshrl.u32 %v4203, 7
        %v4205 = vsub.s32 %v4110, %v4204
        %v4206 = vrot.slane %v3922, %v4205
        %v4207 = vsel %vm4115, %v4206, %v4202
        %v4208 = vlaneseq
        %v4209 = vshrl.u32 %v4208, 7
        %v4210 = vsub.s32 %v4117, %v4209
        %v4211 = vrot.slane %v3923, %v4210
        %v4212 = vsel %vm4122, %v4211, %v4207
        %v4213 = vlaneseq
        %v4214 = vshrl.u32 %v4213, 7
        %v4215 = vsub.s32 %v4124, %v4214
        %v4216 = vrot.slane %v3924, %v4215
        %v4217 = vsel %vm4129, %v4216, %v4212
        %v4218 = vlaneseq
        %v4219 = vshrl.u32 %v4218, 7
        %v4220 = vsub.s32 %v4131, %v4219
        %v4221 = vrot.slane %v3925, %v4220
        %v4222 = vsel %vm4136, %v4221, %v4217
        %v4223 = vlaneseq
        %v4224 = vshrl.u32 %v4223, 7
        %v4225 = vsub.s32 %v4138, %v4224
        %v4226 = vrot.slane %v3926, %v4225
        %v4227 = vsel %vm4143, %v4226, %v4222
        %v4228 = vlaneseq
        %v4229 = vshrl.u32 %v4228, 7
        %v4230 = vsub.s32 %v4145, %v4229
        %v4231 = vrot.slane %v3927, %v4230
        %v4232 = vsel %vm4150, %v4231, %v4227
        %v4233 = vlaneseq
        %v4234 = vshrl.u32 %v4233, 7
        %v4235 = vsub.s32 %v4152, %v4234
        %v4236 = vrot.slane %v3928, %v4235
        %v4237 = vsel %vm4157, %v4236, %v4232
        %v4238 = vlaneseq
        %v4239 = vshrl.u32 %v4238, 7
        %v4240 = vsub.s32 %v4049, %v4239
        %v4241 = vrot.slane %v3929, %v4240
        %v4242 = vlaneseq
        %v4243 = vshrl.u32 %v4242, 7
        %v4244 = vsub.s32 %v4054, %v4243
        %v4245 = vrot.slane %v3930, %v4244
        %v4246 = vsel %vm4059, %v4245, %v4241
        %v4247 = vlaneseq
        %v4248 = vshrl.u32 %v4247, 7
        %v4249 = vsub.s32 %v4061, %v4248
        %v4250 = vrot.slane %v3931, %v4249
        %v4251 = vsel %vm4066, %v4250, %v4246
        %v4252 = vlaneseq
        %v4253 = vshrl.u32 %v4252, 7
        %v4254 = vsub.s32 %v4068, %v4253
        %v4255 = vrot.slane %v3932, %v4254
        %v4256 = vsel %vm4073, %v4255, %v4251
        %v4257 = vlaneseq
        %v4258 = vshrl.u32 %v4257, 7
        %v4259 = vsub.s32 %v4075, %v4258
        %v4260 = vrot.slane %v3933, %v4259
        %v4261 = vsel %vm4080, %v4260, %v4256
        %v4262 = vlaneseq
        %v4263 = vshrl.u32 %v4262, 7
        %v4264 = vsub.s32 %v4082, %v4263
        %v4265 = vrot.slane %v3934, %v4264
        %v4266 = vsel %vm4087, %v4265, %v4261
        %v4267 = vlaneseq
        %v4268 = vshrl.u32 %v4267, 7
        %v4269 = vsub.s32 %v4089, %v4268
        %v4270 = vrot.slane %v3935, %v4269
        %v4271 = vsel %vm4094, %v4270, %v4266
        %v4272 = vlaneseq
        %v4273 = vshrl.u32 %v4272, 7
        %v4274 = vsub.s32 %v4096, %v4273
        %v4275 = vrot.slane %v3936, %v4274
        %v4276 = vsel %vm4101, %v4275, %v4271
        %v4277 = vlaneseq
        %v4278 = vshrl.u32 %v4277, 7
        %v4279 = vsub.s32 %v4103, %v4278
        %v4280 = vrot.slane %v3937, %v4279
        %v4281 = vsel %vm4108, %v4280, %v4276
        %v4282 = vlaneseq
        %v4283 = vshrl.u32 %v4282, 7
        %v4284 = vsub.s32 %v4110, %v4283
        %v4285 = vrot.slane %v3938, %v4284
        %v4286 = vsel %vm4115, %v4285, %v4281
        %v4287 = vlaneseq
        %v4288 = vshrl.u32 %v4287, 7
        %v4289 = vsub.s32 %v4117, %v4288
        %v4290 = vrot.slane %v3939, %v4289
        %v4291 = vsel %vm4122, %v4290, %v4286
        %v4292 = vlaneseq
        %v4293 = vshrl.u32 %v4292, 7
        %v4294 = vsub.s32 %v4124, %v4293
        %v4295 = vrot.slane %v3940, %v4294
        %v4296 = vsel %vm4129, %v4295, %v4291
        %v4297 = vlaneseq
        %v4298 = vshrl.u32 %v4297, 7
        %v4299 = vsub.s32 %v4131, %v4298
        %v4300 = vrot.slane %v3941, %v4299
        %v4301 = vsel %vm4136, %v4300, %v4296
        %v4302 = vlaneseq
        %v4303 = vshrl.u32 %v4302, 7
        %v4304 = vsub.s32 %v4138, %v4303
        %v4305 = vrot.slane %v3942, %v4304
        %v4306 = vsel %vm4143, %v4305, %v4301
        %v4307 = vlaneseq
        %v4308 = vshrl.u32 %v4307, 7
        %v4309 = vsub.s32 %v4145, %v4308
        %v4310 = vrot.slane %v3943, %v4309
        %v4311 = vsel %vm4150, %v4310, %v4306
        %v4312 = vlaneseq
        %v4313 = vshrl.u32 %v4312, 7
        %v4314 = vsub.s32 %v4152, %v4313
        %v4315 = vrot.slane %v3944, %v4314
        %v4316 = vsel %vm4157, %v4315, %v4311
        %v4317 = vlaneseq
        %v4318 = vshrl.u32 %v4317, 7
        %v4319 = vsub.s32 %v4049, %v4318
        %v4320 = vrot.slane %v3945, %v4319
        %v4321 = vlaneseq
        %v4322 = vshrl.u32 %v4321, 7
        %v4323 = vsub.s32 %v4054, %v4322
        %v4324 = vrot.slane %v3946, %v4323
        %v4325 = vsel %vm4059, %v4324, %v4320
        %v4326 = vlaneseq
        %v4327 = vshrl.u32 %v4326, 7
        %v4328 = vsub.s32 %v4061, %v4327
        %v4329 = vrot.slane %v3947, %v4328
        %v4330 = vsel %vm4066, %v4329, %v4325
        %v4331 = vlaneseq
        %v4332 = vshrl.u32 %v4331, 7
        %v4333 = vsub.s32 %v4068, %v4332
        %v4334 = vrot.slane %v3948, %v4333
        %v4335 = vsel %vm4073, %v4334, %v4330
        %v4336 = vlaneseq
        %v4337 = vshrl.u32 %v4336, 7
        %v4338 = vsub.s32 %v4075, %v4337
        %v4339 = vrot.slane %v3949, %v4338
        %v4340 = vsel %vm4080, %v4339, %v4335
        %v4341 = vlaneseq
        %v4342 = vshrl.u32 %v4341, 7
        %v4343 = vsub.s32 %v4082, %v4342
        %v4344 = vrot.slane %v3950, %v4343
        %v4345 = vsel %vm4087, %v4344, %v4340
        %v4346 = vlaneseq
        %v4347 = vshrl.u32 %v4346, 7
        %v4348 = vsub.s32 %v4089, %v4347
        %v4349 = vrot.slane %v3951, %v4348
        %v4350 = vsel %vm4094, %v4349, %v4345
        %v4351 = vlaneseq
        %v4352 = vshrl.u32 %v4351, 7
        %v4353 = vsub.s32 %v4096, %v4352
        %v4354 = vrot.slane %v3952, %v4353
        %v4355 = vsel %vm4101, %v4354, %v4350
        %v4356 = vlaneseq
        %v4357 = vshrl.u32 %v4356, 7
        %v4358 = vsub.s32 %v4103, %v4357
        %v4359 = vrot.slane %v3953, %v4358
        %v4360 = vsel %vm4108, %v4359, %v4355
        %v4361 = vlaneseq
        %v4362 = vshrl.u32 %v4361, 7
        %v4363 = vsub.s32 %v4110, %v4362
        %v4364 = vrot.slane %v3954, %v4363
        %v4365 = vsel %vm4115, %v4364, %v4360
        %v4366 = vlaneseq
        %v4367 = vshrl.u32 %v4366, 7
        %v4368 = vsub.s32 %v4117, %v4367
        %v4369 = vrot.slane %v3955, %v4368
        %v4370 = vsel %vm4122, %v4369, %v4365
        %v4371 = vlaneseq
        %v4372 = vshrl.u32 %v4371, 7
        %v4373 = vsub.s32 %v4124, %v4372
        %v4374 = vrot.slane %v3956, %v4373
        %v4375 = vsel %vm4129, %v4374, %v4370
        %v4376 = vlaneseq
        %v4377 = vshrl.u32 %v4376, 7
        %v4378 = vsub.s32 %v4131, %v4377
        %v4379 = vrot.slane %v3957, %v4378
        %v4380 = vsel %vm4136, %v4379, %v4375
        %v4381 = vlaneseq
        %v4382 = vshrl.u32 %v4381, 7
        %v4383 = vsub.s32 %v4138, %v4382
        %v4384 = vrot.slane %v3958, %v4383
        %v4385 = vsel %vm4143, %v4384, %v4380
        %v4386 = vlaneseq
        %v4387 = vshrl.u32 %v4386, 7
        %v4388 = vsub.s32 %v4145, %v4387
        %v4389 = vrot.slane %v3959, %v4388
        %v4390 = vsel %vm4150, %v4389, %v4385
        %v4391 = vlaneseq
        %v4392 = vshrl.u32 %v4391, 7
        %v4393 = vsub.s32 %v4152, %v4392
        %v4394 = vrot.slane %v3960, %v4393
        %v4395 = vsel %vm4157, %v4394, %v4390
        %vm4396 = vcmask 1041409
        %v4397 = vsel %vm4396, %v4237, %v4158
        %vm4398 = vcmask 1042434
        %v4399 = vsel %vm4398, %v4316, %v4397
        %vm4400 = vcmask 1043459
        %v4401 = vsel %vm4400, %v4395, %v4399
        %4403 = vmatprep.subr.mxu0 0.0
        %4404 = vmatpush1.msra.mxu0 %v3961
        %4405 = vmatprep.subr.mxu0 0.0
        %4406 = vmatpush1.msra.mxu0 %v3962
        %4407 = vmatprep.subr.mxu0 0.0
        %4408 = vmatpush1.msra.mxu0 %v3963
        %4409 = vmatprep.subr.mxu0 0.0
        %4410 = vmatpush1.msra.mxu0 %v3964
        %4411 = vmatprep.subr.mxu0 0.0
        %4412 = vmatpush1.msra.mxu0 %v3965
        %4413 = vmatprep.subr.mxu0 0.0
        %4414 = vmatpush1.msra.mxu0 %v3966
        %4415 = vmatprep.subr.mxu0 0.0
        %4416 = vmatpush1.msra.mxu0 %v3967
        %4417 = vmatprep.subr.mxu0 0.0
        %4418 = vmatpush1.msra.mxu0 %v3968
        %4419 = vmatprep.subr.mxu0 0.0
        %4420 = vmatpush1.msra.mxu0 %v3969
        %4421 = vmatprep.subr.mxu0 0.0
        %4422 = vmatpush1.msra.mxu0 %v3970
        %4423 = vmatprep.subr.mxu0 0.0
        %4424 = vmatpush1.msra.mxu0 %v3971
        %4425 = vmatprep.subr.mxu0 0.0
        %4426 = vmatpush1.msra.mxu0 %v3972
        %4427 = vmatprep.subr.mxu0 0.0
        %4428 = vmatpush1.msra.mxu0 %v3973
        %4429 = vmatprep.subr.mxu0 0.0
        %4430 = vmatpush1.msra.mxu0 %v3974
        %4431 = vmatprep.subr.mxu0 0.0
        %4432 = vmatpush1.msra.mxu0 %v3975
        %4433 = vmatprep.subr.mxu0 0.0
        %4434 = vmatpush1.msra.mxu0 %v3976
        %4435 = vmatprep.subr.mxu0 0.0
        %4436 = vmatpush1.msra.mxu0 0.0
        %4437 = vmatprep.subr.mxu0 0.0
        %4438 = vmatpush1.msra.mxu0 0.0
        %4439 = vmatprep.subr.mxu0 0.0
        %4440 = vmatpush1.msra.mxu0 0.0
        %4441 = vmatprep.subr.mxu0 0.0
        %4442 = vmatpush1.msra.mxu0 0.0
        %4443 = vmatprep.subr.mxu0 0.0
        %4444 = vmatpush1.msra.mxu0 0.0
        %4445 = vmatprep.subr.mxu0 0.0
        %4446 = vmatpush1.msra.mxu0 0.0
        %4447 = vmatprep.subr.mxu0 0.0
        %4448 = vmatpush1.msra.mxu0 0.0
        %4449 = vmatprep.subr.mxu0 0.0
        %4450 = vmatpush1.msra.mxu0 0.0
        %4451 = vmatprep.subr.mxu0 0.0
        %4452 = vmatpush1.msra.mxu0 0.0
        %4453 = vmatprep.subr.mxu0 0.0
        %4454 = vmatpush1.msra.mxu0 0.0
        %4455 = vmatprep.subr.mxu0 0.0
        %4456 = vmatpush1.msra.mxu0 0.0
        %4457 = vmatprep.subr.mxu0 0.0
        %4458 = vmatpush1.msra.mxu0 0.0
        %4459 = vmatprep.subr.mxu0 0.0
        %4460 = vmatpush1.msra.mxu0 0.0
        %4461 = vmatprep.subr.mxu0 0.0
        %4462 = vmatpush1.msra.mxu0 0.0
        %4463 = vmatprep.subr.mxu0 0.0
        %4464 = vmatpush1.msra.mxu0 0.0
        %4465 = vmatprep.subr.mxu0 0.0
        %4466 = vmatpush1.msra.mxu0 0.0
        %4467 = vmatprep.mubr.f32.mxu0 0.0
        %4468 = vmatmul.mubr.f32.gmra.mrb[0].mxu0 %v4401
        %v4469 = vpop.f32.mrb[0].mxu0
        %v4470 = vadd.f32 %v3982, %v4469
        %v4471 = vpop.f32.mrb[0].mxu0
        %4472 = vdwg.mxu0
        %4473 = vst [vmem:[%s259] sm:$0xf] %v4470
        %s4474 = sand.u32 %s142, 1
        %s4475 = scalar_lea.sflag [#allocation5], %s4474
        %s4476 = sand.u32 %s142, 1
        %s4477 = smul.addr %s4476, 4
        %s4478 = scalar_lea.vmem [#allocation8], %s4477
        // Predicated region
        $region49: #{tpu_custom_call.1} parent=39 // pred_check
          %p4479 = pneg %p152
        $region50: #{tpu_custom_call.1} parent=39 // pred_check_branch
          %4481 = sbr.rel (%p4479) target = $region52
        $region51: #{tpu_custom_call.1} parent=39 // pred_region
          %s4483 = ssub.s32 64, 64
          %4484 = vsyncadd %s4475, %s4483
          %s4485 = smul.addr %s24, 64
          %s4486 = scalar_lea.hbm %s5, %s4485
          %s4488 = sshll.u32 %s4478, 4
          %s4489 = int_to_ptr.vmem [resolvable:$true] %s4488
          %4491 = dma.vmem_to_hbm [thread:$0]  %s4489, 64, %s4486, %s4475
        $region52: #{tpu_custom_call.1} parent=39 // pred_fallthru
          _
      $region40: #{tpu_custom_call.1} parent=5 // pred_fallthru
        _
      %p4492 = scmp.le.s32.totalorder 2, %s19
      // Predicated region
      $region53: #{tpu_custom_call.1} parent=5 // pred_check
        %p4493 = pneg %p4492
      $region54: #{tpu_custom_call.1} parent=5 // pred_check_branch
        %4495 = sbr.rel (%p4493) target = $region56
      $region55: #{tpu_custom_call.1} parent=5 // pred_region
        %s4496 = ssub.s32 %s19, 2
        // Predicated region
        $region57: #{tpu_custom_call.1} parent=55 // pred_check
          %p4497 = pneg %p158
        $region58: #{tpu_custom_call.1} parent=55 // pred_check_branch
          %4499 = sbr.rel (%p4497) target = $region60
        $region59: #{tpu_custom_call.1} parent=55 // pred_region
          %s4500 = sand.u32 %s143, 1
          %s4501 = scalar_lea.sflag [#allocation5], %s4500
          %s4502 = sand.u32 %s143, 1
          %s4503 = smul.addr %s4502, 4
          %s4504 = scalar_lea.vmem [#allocation8], %s4503
          %4505 = dma.done %s4501, 64
        $region60: #{tpu_custom_call.1} parent=55 // pred_fallthru
          _
      $region56: #{tpu_custom_call.1} parent=5 // pred_fallthru
        _
    $region6: #{tpu_custom_call.1} parent=1 // loop_footer
      %s23 = sadd.s32 1, %s19
    $region7: #{tpu_custom_call.1} parent=1 // loop_footer_branch
      %18 = sbr.rel target = $region3
    $region8: #{tpu_custom_call.1} parent=1 // loop_exit
      _
    %4506 = vsyncpa [#allocation4], 1
    %s4507 = scalar_lea.sflag [#allocation4], 1
    %4508 = vsyncpa %s4507, 1
    %4509 = vsyncpa [#allocation7], 1
    %4510 = vsyncpa [#allocation5], 1
    %s4511 = scalar_lea.sflag [#allocation5], 1
    %4512 = vsyncpa %s4511, 1

</llo_original>
